<compile_context>
chip_gen: v6e
topology: v6e:2x2x1
jax: 0.10.0
libtpu: 0.0.40
codegen_flags: <defaults>
</compile_context>

<pallas_src>
import functools
import math

import jax
import jax.numpy as jnp
from jax.experimental import pallas as pl
from jax.experimental.pallas import tpu as pltpu


def _round_up(n, m):
    return ((n + m - 1) // m) * m


def ntm_seq_kernel(
    x_ref, h0_ref, c0_ref, mem0_ref,
    wh_ref, bh_ref, wx_ref, wr_ref, whn_ref, bhn_ref,
    out_ref, h_ref, c_ref, ww_ref, mem_ref,
    *, CS, MS, MD, MD_pad, OUT_pad,
):
    f32 = jnp.float32
    t = pl.program_id(1)

    # t == 0: seed the recurrent state.  The state lives in the output blocks,
    # whose index_maps are constant over the time axis, so they stay resident
    # in VMEM for the whole sequence of this batch tile.
    @pl.when(t == 0)
    def _():
        h_ref[...] = h0_ref[...]
        c_ref[...] = c0_ref[...]
        mem_ref[...] = jnp.broadcast_to(
            mem0_ref[...][None, :, :], mem_ref.shape).astype(mem_ref.dtype)

    h = h_ref[...].astype(f32)        # (bt, CS)
    c = c_ref[...].astype(f32)        # (bt, CS)
    mem = mem_ref[...].astype(f32)    # (bt, MD, MS)  -- MS on lanes
    x = x_ref[0].astype(f32)          # (bt, IN)

    def softmax(logits):
        m = jnp.max(logits, axis=-1, keepdims=True)
        e = jnp.exp(logits - m)
        return e * pl.reciprocal(jnp.sum(e, axis=-1, keepdims=True), approx=False)

    # ---- fused projection of old h: [read-attn logits | LSTM gates (h part)] ----
    hh = jnp.dot(h, wh_ref[...], preferred_element_type=f32) + bh_ref[...]
    read_w = softmax(hh[:, :MS])                                   # (bt, MS)
    # Read from per-sample memory.  MS is the lane dim of both operands, so
    # this is a cheap VPU multiply + lane reduction (no relayout, no tiny MXU op).
    read_data = jnp.sum(read_w[:, None, :] * mem, axis=-1)         # (bt, MD)

    # ---- LSTMCell controller (PyTorch gate order i | f | g | o) ----
    rr = jnp.dot(read_data, wr_ref[...], preferred_element_type=f32)  # (bt, 4CS+OUT_pad)
    gx = jnp.dot(x, wx_ref[...], preferred_element_type=f32)          # (bt, 4CS)
    gates = hh[:, MS:] + rr[:, :4 * CS] + gx                          # bias in hh
    i_g = jax.nn.sigmoid(gates[:, 0 * CS:1 * CS])
    f_g = jax.nn.sigmoid(gates[:, 1 * CS:2 * CS])
    g_g = jnp.tanh(gates[:, 2 * CS:3 * CS])
    o_g = jax.nn.sigmoid(gates[:, 3 * CS:4 * CS])
    c_new = f_g * c + i_g * g_g
    h_new = o_g * jnp.tanh(c_new)

    # ---- fused projection of h_new: [write-attn | erase | add | out(h)] ----
    hn = jnp.dot(h_new, whn_ref[...], preferred_element_type=f32) + bhn_ref[...]
    write_w = softmax(hn[:, :MS])                                  # (bt, MS)
    erase_v = jax.nn.sigmoid(hn[:, MS:MS + MD])                    # (bt, MD)
    add_v = jnp.tanh(hn[:, MS + MD_pad:MS + MD_pad + MD])          # (bt, MD)
    out = hn[:, MS + 2 * MD_pad:] + rr[:, 4 * CS:]                 # (bt, OUT_pad)

    # ---- fused rank-1 memory update, lane-dense in MS:  m' = m + w (x) (a - m*e) ----
    mem_ref[...] = (mem + write_w[:, None, :]
                    * (add_v[:, :, None] - mem * erase_v[:, :, None])
                    ).astype(mem_ref.dtype)

    out_ref[0] = out.astype(out_ref.dtype)
    h_ref[...] = h_new.astype(h_ref.dtype)
    c_ref[...] = c_new.astype(c_ref.dtype)
    ww_ref[...] = write_w.astype(ww_ref.dtype)


def ntm_forward(x_seq, memory, params, prev_state=None, *, batch_tile=None):
    """Fused multi-step NTM.

    x_seq: [T, B, input_size], memory: [MS, MD].
    Returns (outputs [T, B, out], (h, c, read_weights, write_weights),
             new_memory [B, MS, MD]).
    Each step reproduces the PyTorch single-step forward; memory evolves per
    batch sample (see TODO in the header)."""
    T, B, input_size = x_seq.shape
    MS, MD = memory.shape
    CS = params["w_hh"].shape[0]
    OUT = params["b_o"].shape[1]
    MD_pad = _round_up(MD, 128)
    OUT_pad = _round_up(OUT, 128)
    dt = x_seq.dtype

    if prev_state is None:
        h0 = jnp.zeros((B, CS), dt)
        c0 = jnp.zeros((B, CS), dt)
        read_w = jnp.zeros((B, MS), dt)
        write_w0 = jnp.zeros((B, MS), dt)
    else:
        h0, c0, read_w, write_w0 = prev_state

    # Batch tile: big tiles amortise per-step overhead; >=2 tiles lets v7x's
    # two TensorCores split the "parallel" batch axis once B is large enough.
    if batch_tile is not None:
        bt = batch_tile
    elif B >= 16 and B % 2 == 0 and (B // 2) % 8 == 0:
        bt = min(256, B // 2)
    else:
        bt = min(B, 256)
    if B % bt != 0:
        bt = B
    assert B % bt == 0 and (bt == B or bt % 8 == 0), "batch tile must divide B"
    nb = B // bt

    # ---- pack the small projections into wide, 128-lane-aligned matmuls ----
    def pad_cols(a, width):
        if a.shape[-1] == width:
            return a
        return jnp.pad(a, ((0, 0), (0, width - a.shape[-1])))

    w_h = jnp.concatenate([params["w_ra"], params["w_hh"]], axis=1)              # (CS, MS+4CS)
    b_h = jnp.concatenate([params["b_ra"], params["b_lstm"]], axis=1)            # (1, MS+4CS)
    w_r = jnp.concatenate([params["w_ir"],
                           pad_cols(params["w_or"], OUT_pad)], axis=1)           # (MD, 4CS+OUT_pad)
    w_x = params["w_ix"]                                                         # (IN, 4CS)
    w_hn = jnp.concatenate([params["w_wa"],
                            pad_cols(params["w_e"], MD_pad),
                            pad_cols(params["w_a"], MD_pad),
                            pad_cols(params["w_oh"], OUT_pad)], axis=1)          # (CS, MS+2MD_pad+OUT_pad)
    b_hn = jnp.concatenate([params["b_wa"],
                            pad_cols(params["b_e"], MD_pad),
                            pad_cols(params["b_a"], MD_pad),
                            pad_cols(params["b_o"], OUT_pad)], axis=1)
    mem_t = memory.T                                                             # (MD, MS) lane-dense

    def const_spec(shape):
        return pl.BlockSpec(shape, lambda b, t, _n=len(shape): (0,) * _n)

    in_specs = [
        pl.BlockSpec((1, bt, input_size), lambda b, t: (t, b, 0)),   # x_seq
        pl.BlockSpec((bt, CS), lambda b, t: (b, 0)),                 # h0
        pl.BlockSpec((bt, CS), lambda b, t: (b, 0)),                 # c0
        const_spec((MD, MS)),                                        # memory^T
        const_spec(w_h.shape), const_spec(b_h.shape),
        const_spec(w_x.shape), const_spec(w_r.shape),
        const_spec(w_hn.shape), const_spec(b_hn.shape),
    ]
    out_specs = (
        pl.BlockSpec((1, bt, OUT_pad), lambda b, t: (t, b, 0)),      # per-step output
        pl.BlockSpec((bt, CS), lambda b, t: (b, 0)),                 # h   (resident over t)
        pl.BlockSpec((bt, CS), lambda b, t: (b, 0)),                 # c
        pl.BlockSpec((bt, MS), lambda b, t: (b, 0)),                 # write weights
        pl.BlockSpec((bt, MD, MS), lambda b, t: (b, 0, 0)),          # per-sample memory
    )
    out_shape = (
        jax.ShapeDtypeStruct((T, B, OUT_pad), dt),
        jax.ShapeDtypeStruct((B, CS), dt),
        jax.ShapeDtypeStruct((B, CS), dt),
        jax.ShapeDtypeStruct((B, MS), dt),
        jax.ShapeDtypeStruct((B, MD, MS), dt),
    )

    n_weight = w_h.size + b_h.size + w_x.size + w_r.size + w_hn.size + b_hn.size
    flops = T * B * 2 * (CS * w_h.shape[1] + MD * w_r.shape[1]
                         + input_size * w_x.shape[1] + CS * w_hn.shape[1]
                         + 4 * MD * MS)
    cost = pl.CostEstimate(
        flops=int(flops),
        transcendentals=int(T * B * (2 * MS + 6 * CS + 3 * MD)),
        bytes_accessed=int(4 * (x_seq.size + T * B * OUT_pad + n_weight
                                + MD * MS + B * (4 * CS + 2 * MS) + B * MD * MS)),
    )

    kernel = functools.partial(ntm_seq_kernel, CS=CS, MS=MS, MD=MD,
                               MD_pad=MD_pad, OUT_pad=OUT_pad)
    out_seq, h1, c1, ww1, mem_out = pl.pallas_call(
        kernel,
        out_shape=out_shape,
        grid=(nb, T),
        in_specs=in_specs,
        out_specs=out_specs,
        compiler_params=pltpu.CompilerParams(
            dimension_semantics=("parallel", "arbitrary")),
        cost_estimate=cost,
    )(x_seq, h0, c0, mem_t, w_h, b_h, w_x, w_r, w_hn, b_hn)

    outputs = out_seq[..., :OUT]                 # drop lane padding
    new_memory = jnp.swapaxes(mem_out, 1, 2)     # back to (B, MS, MD)
    # read_weights pass through unchanged (the PyTorch ReadHead never updates them).
    return outputs, (h1, c1, read_w, ww1), new_memory


def init_params(key, input_size, output_size, memory_size, memory_dim, controller_size):
    """Deterministic synthetic init. Linear weights stored as [in, out]."""
    ks = jax.random.split(key, 15)

    def lin(kw, kb, fan_in, fan_out):
        bound = 1.0 / math.sqrt(fan_in)
        w = jax.random.uniform(kw, (fan_in, fan_out), jnp.float32, -bound, bound)
        b = jax.random.uniform(kb, (1, fan_out), jnp.float32, -bound, bound)
        return w, b

    w_ra, b_ra = lin(ks[0], ks[1], controller_size, memory_size)   # read attention
    w_wa, b_wa = lin(ks[2], ks[3], controller_size, memory_size)   # write attention

    # LSTMCell (gate order i|f|g|o); input weight split across (x, read_data).
    bound = 1.0 / math.sqrt(controller_size)
    w_ix = jax.random.uniform(ks[4], (input_size, 4 * controller_size), jnp.float32, -bound, bound)
    w_ir = jax.random.uniform(ks[5], (memory_dim, 4 * controller_size), jnp.float32, -bound, bound)
    w_hh = jax.random.uniform(ks[6], (controller_size, 4 * controller_size), jnp.float32, -bound, bound)
    b_lstm = jax.random.uniform(ks[7], (1, 4 * controller_size), jnp.float32, -bound, bound)

    w_e, b_e = lin(ks[8], ks[9], controller_size, memory_dim)      # erase vector
    w_a, b_a = lin(ks[10], ks[11], controller_size, memory_dim)    # add vector

    # Output projection over cat([h, read_data]) - split across the two inputs.
    bound_o = 1.0 / math.sqrt(controller_size + memory_dim)
    w_oh = jax.random.uniform(ks[12], (controller_size, output_size), jnp.float32, -bound_o, bound_o)
    w_or = jax.random.uniform(ks[13], (memory_dim, output_size), jnp.float32, -bound_o, bound_o)
    b_o = jax.random.uniform(ks[14], (1, output_size), jnp.float32, -bound_o, bound_o)

    return dict(
        w_ra=w_ra, b_ra=b_ra, w_wa=w_wa, b_wa=b_wa,
        w_ix=w_ix, w_ir=w_ir, w_hh=w_hh, b_lstm=b_lstm,
        w_e=w_e, b_e=b_e, w_a=w_a, b_a=b_a,
        w_oh=w_oh, w_or=w_or, b_o=b_o,
    )


def reference(x_seq, memory, h, c, p, CS):
    """Pure-JAX reference: the PyTorch NTM single step applied recurrently,
    with per-sample memory (shared memory broadcast at t=0)."""
    hp = jax.lax.Precision.HIGHEST
    T, B, _ = x_seq.shape
    mem = jnp.broadcast_to(memory[None], (B,) + memory.shape)   # (B, MS, MD)
    outs, write_w = [], None
    for t in range(T):
        x = x_seq[t]
        read_w = jax.nn.softmax(jnp.dot(h, p["w_ra"], precision=hp) + p["b_ra"], axis=1)
        read_data = jnp.einsum("bs,bsd->bd", read_w, mem, precision=hp)
        gates = (jnp.dot(x, p["w_ix"], precision=hp)
                 + jnp.dot(read_data, p["w_ir"], precision=hp)
                 + jnp.dot(h, p["w_hh"], precision=hp)
                 + p["b_lstm"])
        i_g = jax.nn.sigmoid(gates[:, :CS])
        f_g = jax.nn.sigmoid(gates[:, CS:2 * CS])
        g_g = jnp.tanh(gates[:, 2 * CS:3 * CS])
        o_g = jax.nn.sigmoid(gates[:, 3 * CS:])
        c = f_g * c + i_g * g_g
        h = o_g * jnp.tanh(c)
        write_w = jax.nn.softmax(jnp.dot(h, p["w_wa"], precision=hp) + p["b_wa"], axis=1)
        erase_v = jax.nn.sigmoid(jnp.dot(h, p["w_e"], precision=hp) + p["b_e"])
        add_v = jnp.tanh(jnp.dot(h, p["w_a"], precision=hp) + p["b_a"])
        mem = (mem * (1.0 - write_w[:, :, None] * erase_v[:, None, :])
               + write_w[:, :, None] * add_v[:, None, :])
        outs.append(jnp.dot(h, p["w_oh"], precision=hp)
                    + jnp.dot(read_data, p["w_or"], precision=hp) + p["b_o"])
    return jnp.stack(outs), h, c, write_w, mem


if __name__ == "__main__":
    T, B = 8, 8
    INPUT_SIZE, OUTPUT_SIZE = 32, 32
    MEMORY_SIZE, MEMORY_DIM, CONTROLLER_SIZE = 128, 32, 128

    key = jax.random.PRNGKey(0)
    k_x, k_mem, k_h, k_c, k_p = jax.random.split(key, 5)
    x_seq = jax.random.normal(k_x, (T, B, INPUT_SIZE), jnp.float32)
    memory = 0.1 * jax.random.normal(k_mem, (MEMORY_SIZE, MEMORY_DIM), jnp.float32)
    params = init_params(k_p, INPUT_SIZE, OUTPUT_SIZE, MEMORY_SIZE, MEMORY_DIM, CONTROLLER_SIZE)

    # Non-zero previous controller state to exercise the h/c paths.
    h0 = 0.5 * jax.random.normal(k_h, (B, CONTROLLER_SIZE), jnp.float32)
    c0 = 0.5 * jax.random.normal(k_c, (B, CONTROLLER_SIZE), jnp.float32)
    rw0 = jnp.zeros((B, MEMORY_SIZE), jnp.float32)
    ww0 = jnp.zeros((B, MEMORY_SIZE), jnp.float32)

    outs, (h1, c1, rw1, ww1), new_mem = ntm_forward(
        x_seq, memory, params, prev_state=(h0, c0, rw0, ww0))
    jax.block_until_ready((outs, h1, c1, ww1, new_mem))

    ref_outs, ref_h, ref_c, ref_ww, ref_mem = reference(
        x_seq, memory, h0, c0, params, CONTROLLER_SIZE)

    def check(name, a, b, tol):
        err = float(jnp.max(jnp.abs(a - b)))
        assert jnp.allclose(a, b, atol=tol, rtol=tol), (
            f"{name} mismatch vs reference: max abs err = {err:g}")

    assert outs.shape == (T, B, OUTPUT_SIZE)
    assert new_mem.shape == (B, MEMORY_SIZE, MEMORY_DIM)
    check("output[t=0]", outs[0], ref_outs[0], 3e-4)     # single-step parity
    check("outputs", outs, ref_outs, 1e-3)               # T recurrent steps
    check("h", h1, ref_h, 1e-3)
    check("c", c1, ref_c, 1e-3)
    check("write_weights", ww1, ref_ww, 1e-3)
    check("memory", new_mem, ref_mem, 1e-3)
    print("KERNEL_OK")
</pallas_src>

<mosaic_0001>
module attributes {stable_mosaic.version = 11 : i64} {
  func.func @ntm_seq_kernel(%arg0: i32, %arg1: i32, %arg2: memref<1x8x32xf32, #tpu.memory_space<vmem>>, %arg3: memref<8x128xf32, #tpu.memory_space<vmem>>, %arg4: memref<8x128xf32, #tpu.memory_space<vmem>>, %arg5: memref<32x128xf32, #tpu.memory_space<vmem>>, %arg6: memref<128x640xf32, #tpu.memory_space<vmem>>, %arg7: memref<1x640xf32, #tpu.memory_space<vmem>>, %arg8: memref<32x512xf32, #tpu.memory_space<vmem>>, %arg9: memref<32x640xf32, #tpu.memory_space<vmem>>, %arg10: memref<128x512xf32, #tpu.memory_space<vmem>>, %arg11: memref<1x512xf32, #tpu.memory_space<vmem>>, %arg12: memref<1x8x128xf32, #tpu.memory_space<vmem>>, %arg13: memref<8x128xf32, #tpu.memory_space<vmem>>, %arg14: memref<8x128xf32, #tpu.memory_space<vmem>>, %arg15: memref<8x128xf32, #tpu.memory_space<vmem>>, %arg16: memref<8x32x128xf32, #tpu.memory_space<vmem>>) attributes {dimension_semantics = [#tpu.dimension_semantics<parallel>, #tpu.dimension_semantics<arbitrary>], iteration_bounds = array<i64: 1, 8>, scalar_prefetch = 0 : i64, scratch_operands = 0 : i64, tpu.core_type = #tpu.core_type<tc>, window_params = [{transform_indices = @transform_0, window_bounds = array<i64: 1, 8, 32>}, {transform_indices = @transform_1, window_bounds = array<i64: 8, 128>}, {transform_indices = @transform_2, window_bounds = array<i64: 8, 128>}, {pipeline_mode = #tpu.pipeline_mode<synchronous>, transform_indices = @transform_3, window_bounds = array<i64: 32, 128>}, {pipeline_mode = #tpu.pipeline_mode<synchronous>, transform_indices = @transform_4, window_bounds = array<i64: 128, 640>}, {pipeline_mode = #tpu.pipeline_mode<synchronous>, transform_indices = @transform_5, window_bounds = array<i64: 1, 640>}, {pipeline_mode = #tpu.pipeline_mode<synchronous>, transform_indices = @transform_6, window_bounds = array<i64: 32, 512>}, {pipeline_mode = #tpu.pipeline_mode<synchronous>, transform_indices = @transform_7, window_bounds = array<i64: 32, 640>}, {pipeline_mode = #tpu.pipeline_mode<synchronous>, transform_indices = @transform_8, window_bounds = array<i64: 128, 512>}, {pipeline_mode = #tpu.pipeline_mode<synchronous>, transform_indices = @transform_9, window_bounds = array<i64: 1, 512>}, {transform_indices = @transform_10, window_bounds = array<i64: 1, 8, 128>}, {transform_indices = @transform_11, window_bounds = array<i64: 8, 128>}, {transform_indices = @transform_12, window_bounds = array<i64: 8, 128>}, {transform_indices = @transform_13, window_bounds = array<i64: 8, 128>}, {transform_indices = @transform_14, window_bounds = array<i64: 8, 32, 128>}]} {
    %c0_i32 = arith.constant 0 : i32
    %0 = arith.cmpi eq, %arg1, %c0_i32 : i32
    %1 = arith.extui %0 : i1 to i32
    %c0_i32_0 = arith.constant 0 : i32
    %2 = arith.cmpi ne, %1, %c0_i32_0 : i32
    scf.if %2 {
      %c0_46 = arith.constant 0 : index
      %c0_47 = arith.constant 0 : index
      %105 = vector.load %arg3[%c0_46, %c0_47] : memref<8x128xf32, #tpu.memory_space<vmem>>, vector<8x128xf32>
      %c0_48 = arith.constant 0 : index
      %c0_49 = arith.constant 0 : index
      %106 = vector.load %arg13[%c0_48, %c0_49] : memref<8x128xf32, #tpu.memory_space<vmem>>, vector<8x128xf32>
      tpu.vector_store %arg13[%c0_48, %c0_49], %105 {strides = array<i32>} : memref<8x128xf32, #tpu.memory_space<vmem>>, vector<8x128xf32>,
      %c0_50 = arith.constant 0 : index
      %c0_51 = arith.constant 0 : index
      %107 = vector.load %arg4[%c0_50, %c0_51] : memref<8x128xf32, #tpu.memory_space<vmem>>, vector<8x128xf32>
      %c0_52 = arith.constant 0 : index
      %c0_53 = arith.constant 0 : index
      %108 = vector.load %arg14[%c0_52, %c0_53] : memref<8x128xf32, #tpu.memory_space<vmem>>, vector<8x128xf32>
      tpu.vector_store %arg14[%c0_52, %c0_53], %107 {strides = array<i32>} : memref<8x128xf32, #tpu.memory_space<vmem>>, vector<8x128xf32>,
      %c0_54 = arith.constant 0 : index
      %c0_55 = arith.constant 0 : index
      %109 = vector.load %arg5[%c0_54, %c0_55] : memref<32x128xf32, #tpu.memory_space<vmem>>, vector<32x128xf32>
      %110 = vector.shape_cast %109 : vector<32x128xf32> to vector<1x32x128xf32>
      %111 = vector.shape_cast %110 : vector<1x32x128xf32> to vector<1x32x128xf32>
      %112 = vector.broadcast %111 : vector<1x32x128xf32> to vector<8x32x128xf32>
      %c0_56 = arith.constant 0 : index
      %c0_57 = arith.constant 0 : index
      %c0_58 = arith.constant 0 : index
      %113 = vector.load %arg16[%c0_56, %c0_57, %c0_58] : memref<8x32x128xf32, #tpu.memory_space<vmem>>, vector<8x32x128xf32>
      tpu.vector_store %arg16[%c0_56, %c0_57, %c0_58], %112 {strides = array<i32>} : memref<8x32x128xf32, #tpu.memory_space<vmem>>, vector<8x32x128xf32>,
    } else {
    }
    %c0 = arith.constant 0 : index
    %c0_1 = arith.constant 0 : index
    %3 = vector.load %arg13[%c0, %c0_1] : memref<8x128xf32, #tpu.memory_space<vmem>>, vector<8x128xf32>
    %c0_2 = arith.constant 0 : index
    %c0_3 = arith.constant 0 : index
    %4 = vector.load %arg14[%c0_2, %c0_3] : memref<8x128xf32, #tpu.memory_space<vmem>>, vector<8x128xf32>
    %c0_4 = arith.constant 0 : index
    %c0_5 = arith.constant 0 : index
    %c0_6 = arith.constant 0 : index
    %5 = vector.load %arg16[%c0_4, %c0_5, %c0_6] : memref<8x32x128xf32, #tpu.memory_space<vmem>>, vector<8x32x128xf32>
    %c0_7 = arith.constant 0 : index
    %c0_8 = arith.constant 0 : index
    %c0_9 = arith.constant 0 : index
    %6 = vector.load %arg2[%c0_7, %c0_8, %c0_9] : memref<1x8x32xf32, #tpu.memory_space<vmem>>, vector<1x8x32xf32>
    %7 = vector.shape_cast %6 : vector<1x8x32xf32> to vector<8x32xf32>
    %c0_10 = arith.constant 0 : index
    %c0_11 = arith.constant 0 : index
    %8 = vector.load %arg6[%c0_10, %c0_11] : memref<128x640xf32, #tpu.memory_space<vmem>>, vector<128x640xf32>
    %cst = arith.constant dense<0.000000e+00> : vector<8x640xf32>
    %9 = tpu.matmul %3, %8, %cst {dimension_numbers = #tpu.dot_dimension_numbers<[1], [0], [0], [1], [0, 0, 1, 1], [], []>} : vector<8x128xf32>, vector<128x640xf32>, vector<8x640xf32> -> vector<8x640xf32>
    %c0_12 = arith.constant 0 : index
    %c0_13 = arith.constant 0 : index
    %10 = vector.load %arg7[%c0_12, %c0_13] : memref<1x640xf32, #tpu.memory_space<vmem>>, vector<1x640xf32>
    %11 = vector.broadcast %10 : vector<1x640xf32> to vector<8x640xf32>
    %12 = arith.addf %9, %11 : vector<8x640xf32>
    %13 = vector.extract_strided_slice %12 {offsets = [0, 0], sizes = [8, 128], strides = [1, 1]} : vector<8x640xf32> to vector<8x128xf32>
    %cst_14 = arith.constant dense<0xFF800000> : vector<8xf32>
    %14 = vector.multi_reduction <maximumf>, %13, %cst_14 [1] : vector<8x128xf32> to vector<8xf32>
    %15 = vector.shape_cast %14 : vector<8xf32> to vector<8x1xf32>
    %16 = vector.broadcast %15 : vector<8x1xf32> to vector<8x128xf32>
    %17 = arith.subf %13, %16 : vector<8x128xf32>
    %18 = math.exp %17 : vector<8x128xf32>
    %cst_15 = arith.constant dense<0.000000e+00> : vector<8xf32>
    %19 = vector.multi_reduction <add>, %18, %cst_15 [1] : vector<8x128xf32> to vector<8xf32>
    %20 = vector.shape_cast %19 : vector<8xf32> to vector<8x1xf32>
    %21 = tpu.reciprocal %20 : vector<8x1xf32> -> vector<8x1xf32>
    %22 = vector.broadcast %21 : vector<8x1xf32> to vector<8x128xf32>
    %23 = arith.mulf %18, %22 : vector<8x128xf32>
    %24 = vector.shape_cast %23 : vector<8x128xf32> to vector<8x1x128xf32>
    %25 = vector.broadcast %24 : vector<8x1x128xf32> to vector<8x32x128xf32>
    %26 = arith.mulf %25, %5 : vector<8x32x128xf32>
    %cst_16 = arith.constant dense<0.000000e+00> : vector<8x32xf32>
    %27 = vector.multi_reduction <add>, %26, %cst_16 [2] : vector<8x32x128xf32> to vector<8x32xf32>
    %c0_17 = arith.constant 0 : index
    %c0_18 = arith.constant 0 : index
    %28 = vector.load %arg9[%c0_17, %c0_18] : memref<32x640xf32, #tpu.memory_space<vmem>>, vector<32x640xf32>
    %cst_19 = arith.constant dense<0.000000e+00> : vector<8x640xf32>
    %29 = tpu.matmul %27, %28, %cst_19 {dimension_numbers = #tpu.dot_dimension_numbers<[1], [0], [0], [1], [0, 0, 1, 1], [], []>} : vector<8x32xf32>, vector<32x640xf32>, vector<8x640xf32> -> vector<8x640xf32>
    %c0_20 = arith.constant 0 : index
    %c0_21 = arith.constant 0 : index
    %30 = vector.load %arg8[%c0_20, %c0_21] : memref<32x512xf32, #tpu.memory_space<vmem>>, vector<32x512xf32>
    %cst_22 = arith.constant dense<0.000000e+00> : vector<8x512xf32>
    %31 = tpu.matmul %7, %30, %cst_22 {dimension_numbers = #tpu.dot_dimension_numbers<[1], [0], [0], [1], [0, 0, 1, 1], [], []>} : vector<8x32xf32>, vector<32x512xf32>, vector<8x512xf32> -> vector<8x512xf32>
    %32 = vector.extract_strided_slice %12 {offsets = [0, 128], sizes = [8, 512], strides = [1, 1]} : vector<8x640xf32> to vector<8x512xf32>
    %33 = vector.extract_strided_slice %29 {offsets = [0, 0], sizes = [8, 512], strides = [1, 1]} : vector<8x640xf32> to vector<8x512xf32>
    %34 = arith.addf %32, %33 : vector<8x512xf32>
    %35 = arith.addf %34, %31 : vector<8x512xf32>
    %36 = vector.extract_strided_slice %35 {offsets = [0, 0], sizes = [8, 128], strides = [1, 1]} : vector<8x512xf32> to vector<8x128xf32>
    %37 = arith.negf %36 : vector<8x128xf32>
    %38 = math.exp %37 : vector<8x128xf32>
    %cst_23 = arith.constant 1.000000e+00 : f32
    %39 = vector.broadcast %cst_23 : f32 to vector<8x128xf32>
    %40 = arith.addf %39, %38 : vector<8x128xf32>
    %41 = arith.divf %39, %40 : vector<8x128xf32>
    %42 = vector.extract_strided_slice %35 {offsets = [0, 128], sizes = [8, 128], strides = [1, 1]} : vector<8x512xf32> to vector<8x128xf32>
    %43 = arith.negf %42 : vector<8x128xf32>
    %44 = math.exp %43 : vector<8x128xf32>
    %cst_24 = arith.constant 1.000000e+00 : f32
    %45 = vector.broadcast %cst_24 : f32 to vector<8x128xf32>
    %46 = arith.addf %45, %44 : vector<8x128xf32>
    %47 = arith.divf %45, %46 : vector<8x128xf32>
    %48 = vector.extract_strided_slice %35 {offsets = [0, 256], sizes = [8, 128], strides = [1, 1]} : vector<8x512xf32> to vector<8x128xf32>
    %49 = math.tanh %48 : vector<8x128xf32>
    %50 = vector.extract_strided_slice %35 {offsets = [0, 384], sizes = [8, 128], strides = [1, 1]} : vector<8x512xf32> to vector<8x128xf32>
    %51 = arith.negf %50 : vector<8x128xf32>
    %52 = math.exp %51 : vector<8x128xf32>
    %cst_25 = arith.constant 1.000000e+00 : f32
    %53 = vector.broadcast %cst_25 : f32 to vector<8x128xf32>
    %54 = arith.addf %53, %52 : vector<8x128xf32>
    %55 = arith.divf %53, %54 : vector<8x128xf32>
    %56 = arith.mulf %47, %4 : vector<8x128xf32>
    %57 = arith.mulf %41, %49 : vector<8x128xf32>
    %58 = arith.addf %56, %57 : vector<8x128xf32>
    %59 = math.tanh %58 : vector<8x128xf32>
    %60 = arith.mulf %55, %59 : vector<8x128xf32>
    %c0_26 = arith.constant 0 : index
    %c0_27 = arith.constant 0 : index
    %61 = vector.load %arg10[%c0_26, %c0_27] : memref<128x512xf32, #tpu.memory_space<vmem>>, vector<128x512xf32>
    %cst_28 = arith.constant dense<0.000000e+00> : vector<8x512xf32>
    %62 = tpu.matmul %60, %61, %cst_28 {dimension_numbers = #tpu.dot_dimension_numbers<[1], [0], [0], [1], [0, 0, 1, 1], [], []>} : vector<8x128xf32>, vector<128x512xf32>, vector<8x512xf32> -> vector<8x512xf32>
    %c0_29 = arith.constant 0 : index
    %c0_30 = arith.constant 0 : index
    %63 = vector.load %arg11[%c0_29, %c0_30] : memref<1x512xf32, #tpu.memory_space<vmem>>, vector<1x512xf32>
    %64 = vector.broadcast %63 : vector<1x512xf32> to vector<8x512xf32>
    %65 = arith.addf %62, %64 : vector<8x512xf32>
    %66 = vector.extract_strided_slice %65 {offsets = [0, 0], sizes = [8, 128], strides = [1, 1]} : vector<8x512xf32> to vector<8x128xf32>
    %cst_31 = arith.constant dense<0xFF800000> : vector<8xf32>
    %67 = vector.multi_reduction <maximumf>, %66, %cst_31 [1] : vector<8x128xf32> to vector<8xf32>
    %68 = vector.shape_cast %67 : vector<8xf32> to vector<8x1xf32>
    %69 = vector.broadcast %68 : vector<8x1xf32> to vector<8x128xf32>
    %70 = arith.subf %66, %69 : vector<8x128xf32>
    %71 = math.exp %70 : vector<8x128xf32>
    %cst_32 = arith.constant dense<0.000000e+00> : vector<8xf32>
    %72 = vector.multi_reduction <add>, %71, %cst_32 [1] : vector<8x128xf32> to vector<8xf32>
    %73 = vector.shape_cast %72 : vector<8xf32> to vector<8x1xf32>
    %74 = tpu.reciprocal %73 : vector<8x1xf32> -> vector<8x1xf32>
    %75 = vector.broadcast %74 : vector<8x1xf32> to vector<8x128xf32>
    %76 = arith.mulf %71, %75 : vector<8x128xf32>
    %77 = vector.extract_strided_slice %65 {offsets = [0, 128], sizes = [8, 32], strides = [1, 1]} : vector<8x512xf32> to vector<8x32xf32>
    %78 = arith.negf %77 : vector<8x32xf32>
    %79 = math.exp %78 : vector<8x32xf32>
    %cst_33 = arith.constant 1.000000e+00 : f32
    %80 = vector.broadcast %cst_33 : f32 to vector<8x32xf32>
    %81 = arith.addf %80, %79 : vector<8x32xf32>
    %82 = arith.divf %80, %81 : vector<8x32xf32>
    %83 = vector.extract_strided_slice %65 {offsets = [0, 256], sizes = [8, 32], strides = [1, 1]} : vector<8x512xf32> to vector<8x32xf32>
    %84 = math.tanh %83 : vector<8x32xf32>
    %85 = vector.extract_strided_slice %65 {offsets = [0, 384], sizes = [8, 128], strides = [1, 1]} : vector<8x512xf32> to vector<8x128xf32>
    %86 = vector.extract_strided_slice %29 {offsets = [0, 512], sizes = [8, 128], strides = [1, 1]} : vector<8x640xf32> to vector<8x128xf32>
    %87 = arith.addf %85, %86 : vector<8x128xf32>
    %88 = vector.shape_cast %76 : vector<8x128xf32> to vector<8x1x128xf32>
    %89 = vector.shape_cast %84 : vector<8x32xf32> to vector<8x32x1xf32>
    %90 = vector.shape_cast %82 : vector<8x32xf32> to vector<8x32x1xf32>
    %91 = vector.broadcast %90 : vector<8x32x1xf32> to vector<8x32x128xf32>
    %92 = arith.mulf %5, %91 : vector<8x32x128xf32>
    %93 = vector.broadcast %89 : vector<8x32x1xf32> to vector<8x32x128xf32>
    %94 = arith.subf %93, %92 : vector<8x32x128xf32>
    %95 = vector.broadcast %88 : vector<8x1x128xf32> to vector<8x32x128xf32>
    %96 = arith.mulf %95, %94 : vector<8x32x128xf32>
    %97 = arith.addf %5, %96 : vector<8x32x128xf32>
    %c0_34 = arith.constant 0 : index
    %c0_35 = arith.constant 0 : index
    %c0_36 = arith.constant 0 : index
    %98 = vector.load %arg16[%c0_34, %c0_35, %c0_36] : memref<8x32x128xf32, #tpu.memory_space<vmem>>, vector<8x32x128xf32>
    tpu.vector_store %arg16[%c0_34, %c0_35, %c0_36], %97 {strides = array<i32>} : memref<8x32x128xf32, #tpu.memory_space<vmem>>, vector<8x32x128xf32>,
    %c0_37 = arith.constant 0 : index
    %c0_38 = arith.constant 0 : index
    %c0_39 = arith.constant 0 : index
    %99 = vector.load %arg12[%c0_37, %c0_38, %c0_39] : memref<1x8x128xf32, #tpu.memory_space<vmem>>, vector<1x8x128xf32>
    %100 = vector.shape_cast %99 : vector<1x8x128xf32> to vector<8x128xf32>
    %101 = vector.shape_cast %87 : vector<8x128xf32> to vector<1x8x128xf32>
    tpu.vector_store %arg12[%c0_37, %c0_38, %c0_39], %101 {strides = array<i32>} : memref<1x8x128xf32, #tpu.memory_space<vmem>>, vector<1x8x128xf32>,
    %c0_40 = arith.constant 0 : index
    %c0_41 = arith.constant 0 : index
    %102 = vector.load %arg13[%c0_40, %c0_41] : memref<8x128xf32, #tpu.memory_space<vmem>>, vector<8x128xf32>
    tpu.vector_store %arg13[%c0_40, %c0_41], %60 {strides = array<i32>} : memref<8x128xf32, #tpu.memory_space<vmem>>, vector<8x128xf32>,
    %c0_42 = arith.constant 0 : index
    %c0_43 = arith.constant 0 : index
    %103 = vector.load %arg14[%c0_42, %c0_43] : memref<8x128xf32, #tpu.memory_space<vmem>>, vector<8x128xf32>
    tpu.vector_store %arg14[%c0_42, %c0_43], %58 {strides = array<i32>} : memref<8x128xf32, #tpu.memory_space<vmem>>, vector<8x128xf32>,
    %c0_44 = arith.constant 0 : index
    %c0_45 = arith.constant 0 : index
    %104 = vector.load %arg15[%c0_44, %c0_45] : memref<8x128xf32, #tpu.memory_space<vmem>>, vector<8x128xf32>
    tpu.vector_store %arg15[%c0_44, %c0_45], %76 {strides = array<i32>} : memref<8x128xf32, #tpu.memory_space<vmem>>, vector<8x128xf32>,
    return
  }
  func.func @transform_0(%arg0: i32, %arg1: i32) -> (i32, i32, i32) {
    %c0_i32 = arith.constant 0 : i32
    %c0_i32_0 = arith.constant 0 : i32
    return %arg1, %arg0, %c0_i32 : i32, i32, i32
  }
  func.func @transform_1(%arg0: i32, %arg1: i32) -> (i32, i32) {
    %c0_i32 = arith.constant 0 : i32
    %c0_i32_0 = arith.constant 0 : i32
    return %arg0, %c0_i32 : i32, i32
  }
  func.func @transform_2(%arg0: i32, %arg1: i32) -> (i32, i32) {
    %c0_i32 = arith.constant 0 : i32
    %c0_i32_0 = arith.constant 0 : i32
    return %arg0, %c0_i32 : i32, i32
  }
  func.func @transform_3(%arg0: i32, %arg1: i32) -> (i32, i32) {
    %c0_i32 = arith.constant 0 : i32
    %c0_i32_0 = arith.constant 0 : i32
    %c0_i32_1 = arith.constant 0 : i32
    return %c0_i32, %c0_i32_0 : i32, i32
  }
  func.func @transform_4(%arg0: i32, %arg1: i32) -> (i32, i32) {
    %c0_i32 = arith.constant 0 : i32
    %c0_i32_0 = arith.constant 0 : i32
    %c0_i32_1 = arith.constant 0 : i32
    return %c0_i32, %c0_i32_0 : i32, i32
  }
  func.func @transform_5(%arg0: i32, %arg1: i32) -> (i32, i32) {
    %c0_i32 = arith.constant 0 : i32
    %c0_i32_0 = arith.constant 0 : i32
    %c0_i32_1 = arith.constant 0 : i32
    return %c0_i32, %c0_i32_0 : i32, i32
  }
  func.func @transform_6(%arg0: i32, %arg1: i32) -> (i32, i32) {
    %c0_i32 = arith.constant 0 : i32
    %c0_i32_0 = arith.constant 0 : i32
    %c0_i32_1 = arith.constant 0 : i32
    return %c0_i32, %c0_i32_0 : i32, i32
  }
  func.func @transform_7(%arg0: i32, %arg1: i32) -> (i32, i32) {
    %c0_i32 = arith.constant 0 : i32
    %c0_i32_0 = arith.constant 0 : i32
    %c0_i32_1 = arith.constant 0 : i32
    return %c0_i32, %c0_i32_0 : i32, i32
  }
  func.func @transform_8(%arg0: i32, %arg1: i32) -> (i32, i32) {
    %c0_i32 = arith.constant 0 : i32
    %c0_i32_0 = arith.constant 0 : i32
    %c0_i32_1 = arith.constant 0 : i32
    return %c0_i32, %c0_i32_0 : i32, i32
  }
  func.func @transform_9(%arg0: i32, %arg1: i32) -> (i32, i32) {
    %c0_i32 = arith.constant 0 : i32
    %c0_i32_0 = arith.constant 0 : i32
    %c0_i32_1 = arith.constant 0 : i32
    return %c0_i32, %c0_i32_0 : i32, i32
  }
  func.func @transform_10(%arg0: i32, %arg1: i32) -> (i32, i32, i32) {
    %c0_i32 = arith.constant 0 : i32
    %c0_i32_0 = arith.constant 0 : i32
    return %arg1, %arg0, %c0_i32 : i32, i32, i32
  }
  func.func @transform_11(%arg0: i32, %arg1: i32) -> (i32, i32) {
    %c0_i32 = arith.constant 0 : i32
    %c0_i32_0 = arith.constant 0 : i32
    return %arg0, %c0_i32 : i32, i32
  }
  func.func @transform_12(%arg0: i32, %arg1: i32) -> (i32, i32) {
    %c0_i32 = arith.constant 0 : i32
    %c0_i32_0 = arith.constant 0 : i32
    return %arg0, %c0_i32 : i32, i32
  }
  func.func @transform_13(%arg0: i32, %arg1: i32) -> (i32, i32) {
    %c0_i32 = arith.constant 0 : i32
    %c0_i32_0 = arith.constant 0 : i32
    return %arg0, %c0_i32 : i32, i32
  }
  func.func @transform_14(%arg0: i32, %arg1: i32) -> (i32, i32, i32) {
    %c0_i32 = arith.constant 0 : i32
    %c0_i32_0 = arith.constant 0 : i32
    %c0_i32_1 = arith.constant 0 : i32
    return %arg0, %c0_i32, %c0_i32_0 : i32, i32, i32
  }
}

</mosaic_0001>

<llo_original>
// kernel: tpu_custom_call.1
$region0: #{tpu_custom_call.1}
  #allocation0 [shape = 'u32[]', space=smem, size = 0x4, offset = 0x4, fixed_abs, tag = 'smem constant byte address 0x4 - core index']
  #allocation1 [shape = 'u32[144,128]{1,0:T(1,128)}', space=vmem, size = 0x12000, scoped, tag = 'internal scratch']
  %s0 = inlined_call_operand.hbm [shape: f32[8,8,32], index: 0, kind: input, shape index: {}]
  %s1 = inlined_call_operand.hbm [shape: f32[8,128], index: 1, kind: input, shape index: {}]
  %s2 = inlined_call_operand.hbm [shape: f32[8,128], index: 2, kind: input, shape index: {}]
  %s3 = inlined_call_operand.hbm [shape: f32[32,128], index: 3, kind: input, shape index: {}]
  %s4 = inlined_call_operand.hbm [shape: f32[128,640], index: 4, kind: input, shape index: {}]
  %s5 = inlined_call_operand.vmem [shape: f32[1,640], index: 5, kind: input, shape index: {}]
  %s6 = inlined_call_operand.hbm [shape: f32[32,512], index: 6, kind: input, shape index: {}]
  %s7 = inlined_call_operand.hbm [shape: f32[32,640], index: 7, kind: input, shape index: {}]
  %s8 = inlined_call_operand.hbm [shape: f32[128,512], index: 8, kind: input, shape index: {}]
  %s9 = inlined_call_operand.vmem [shape: f32[1,512], index: 9, kind: input, shape index: {}]
  %s10 = inlined_call_operand.hbm [shape: f32[8,8,128], index: 10, kind: output, shape index: {0}]
  %s11 = inlined_call_operand.hbm [shape: f32[8,128], index: 11, kind: output, shape index: {1}]
  %s12 = inlined_call_operand.hbm [shape: f32[8,128], index: 12, kind: output, shape index: {2}]
  %s13 = inlined_call_operand.hbm [shape: f32[8,128], index: 13, kind: output, shape index: {3}]
  %s14 = inlined_call_operand.hbm [shape: f32[8,32,128], index: 14, kind: output, shape index: {4}]
  %15 = xla_tuple %s10, %s11, %s12, %s13, %s14
  %s16 = sld [smem:[#allocation0]]
  $region141: #{tpu_custom_call.1} parent=0
    _
  %s18 = ssub.s32 1, %s16
  %s19 = scalar_select 0, %s18, %s16
  $region1: #{tpu_custom_call.1} parent=0
    #allocation2 [shape = 'u8[8192]{0}', space=vmem, size = 0x2000, scoped, tag = 'input window, operand 0']
    #allocation3 [shape = 's32[2]{0}', space=sflag, size = 0x8, scoped, tag = 'scoped memory for tpu_custom_call.1']
    #allocation4 [shape = 's32[2]{0}', space=sflag, size = 0x8, scoped, tag = 'scoped memory for tpu_custom_call.1']
    #allocation5 [shape = 'u8[4096]{0}', space=vmem, size = 0x1000, scoped, tag = 'input window, operand 1, single buffered']
    #allocation6 [shape = 's32[1]{0}', space=sflag, size = 0x4, scoped, tag = 'scoped memory for tpu_custom_call.1']
    #allocation7 [shape = 'u8[4096]{0}', space=vmem, size = 0x1000, scoped, tag = 'input window, operand 2, single buffered']
    #allocation8 [shape = 'u8[16384]{0}', space=vmem, size = 0x4000, scoped, tag = 'input window, operand 3, single buffered']
    #allocation9 [shape = 's32[1]{0}', space=sflag, size = 0x4, scoped, tag = 'scoped memory for tpu_custom_call.1']
    #allocation10 [shape = 'u8[327680]{0}', space=vmem, size = 0x50000, scoped, tag = 'input window, operand 4, single buffered']
    #allocation11 [shape = 'u8[65536]{0}', space=vmem, size = 0x10000, scoped, tag = 'input window, operand 6, single buffered']
    #allocation12 [shape = 's32[1]{0}', space=sflag, size = 0x4, scoped, tag = 'scoped memory for tpu_custom_call.1']
    #allocation13 [shape = 'u8[81920]{0}', space=vmem, size = 0x14000, scoped, tag = 'input window, operand 7, single buffered']
    #allocation14 [shape = 'u8[262144]{0}', space=vmem, size = 0x40000, scoped, tag = 'input window, operand 8, single buffered']
    #allocation15 [shape = 's32[1]{0}', space=sflag, size = 0x4, scoped, tag = 'scoped memory for tpu_custom_call.1']
    #allocation16 [shape = 'u8[8192]{0}', space=vmem, size = 0x2000, scoped, tag = 'output window, operand 0']
    #allocation17 [shape = 'u8[4096]{0}', space=vmem, size = 0x1000, scoped, tag = 'output window, operand 1, single buffered']
    #allocation18 [shape = 's32[1]{0}', space=sflag, size = 0x4, scoped, tag = 'scoped memory for tpu_custom_call.1']
    #allocation19 [shape = 'u8[4096]{0}', space=vmem, size = 0x1000, scoped, tag = 'output window, operand 2, single buffered']
    #allocation20 [shape = 'u8[4096]{0}', space=vmem, size = 0x1000, scoped, tag = 'output window, operand 3, single buffered']
    #allocation21 [shape = 's32[1]{0}', space=sflag, size = 0x4, scoped, tag = 'scoped memory for tpu_custom_call.1']
    #allocation22 [shape = 'u8[131072]{0}', space=vmem, size = 0x20000, scoped, tag = 'output window, operand 4, single buffered']
    %20 = vsyncpa [#allocation3], 0
    %s21 = scalar_lea.sflag [#allocation3], 1
    %22 = vsyncpa %s21, 0
    %23 = vsyncpa [#allocation6], 0
    %24 = vsyncpa [#allocation9], 0
    %25 = vsyncpa [#allocation12], 0
    %26 = vsyncpa [#allocation15], 0
    %27 = vsyncpa [#allocation4], 0
    %s28 = scalar_lea.sflag [#allocation4], 1
    %29 = vsyncpa %s28, 0
    %30 = vsyncpa [#allocation18], 0
    %31 = vsyncpa [#allocation21], 0
    loop: start=0, step=1, limit=10
    $region2: #{tpu_custom_call.1} parent=1 // loop_pre_header
      _
    $region3: #{tpu_custom_call.1} parent=1 // loop_header
      %s33 = sphi 0, %s37
      %p34 = scmp.ge.s32.totalorder %s33, 10
      %s40 = sphi 0, %s52
      %s41 = sphi 0, %s48
      %s42 = sphi 0, %s40
      %s43 = sphi 0, %s41
      %s44 = sphi 0, %s42
      %s45 = sphi 0, %s43
      %s57 = sphi 0, %s59
      %s60 = sphi 0, %s57
      %s61 = sphi 0, %s60
      %s77 = sphi 0, %s61
      %s83 = sphi 0, %s85
      %s86 = sphi 0, %s83
      %s87 = sphi 0, %s86
      %s103 = sphi 0, %s87
      %s109 = sphi 0, %s111
      %s112 = sphi 0, %s109
      %s113 = sphi 0, %s112
      %s129 = sphi 0, %s113
      %s133 = sphi 0, %s133
      %s135 = sphi 0, %s133
      %s136 = sphi 0, %s135
      %s150 = sphi 0, %s136
      %s154 = sphi 0, %s154
      %s156 = sphi 0, %s154
      %s157 = sphi 0, %s156
      %s171 = sphi 0, %s157
      %s175 = sphi 0, %s175
      %s177 = sphi 0, %s175
      %s178 = sphi 0, %s177
      %s192 = sphi 0, %s178
      %s196 = sphi 0, %s196
      %s198 = sphi 0, %s196
      %s199 = sphi 0, %s198
      %s213 = sphi 0, %s199
      %s217 = sphi 0, %s217
      %s219 = sphi 0, %s217
      %s220 = sphi 0, %s219
      %s234 = sphi 0, %s220
      %s238 = sphi 0, %s238
      %s240 = sphi 0, %s238
      %s241 = sphi 0, %s240
      %s255 = sphi 0, %s241
      %s259 = sphi 0, %s259
      %s261 = sphi 0, %s259
      %s262 = sphi 0, %s261
      %s276 = sphi 0, %s262
      %s284 = sphi 0, %s286
      %s287 = sphi 0, %s284
      %s288 = sphi 0, %s287
      %s304 = sphi 0, %s288
      %s310 = sphi 0, %s312
      %s313 = sphi 0, %s310
      %s314 = sphi 0, %s313
      %s330 = sphi 0, %s314
      %s336 = sphi 0, %s338
      %s339 = sphi 0, %s336
      %s340 = sphi 0, %s339
      %s356 = sphi 0, %s340
      %s362 = sphi 0, %s364
      %s365 = sphi 0, %s362
      %s366 = sphi 0, %s365
      %s382 = sphi 0, %s366
      %s388 = sphi 0, %s390
      %s391 = sphi 0, %s388
      %s392 = sphi 0, %s391
      %s408 = sphi 0, %s392
    $region4: #{tpu_custom_call.1} parent=1 // loop_header_branch
      %36 = sbr.rel (%p34) target = $region8
    $region5: #{tpu_custom_call.1} parent=1 // loop_body
      %s38 = ssub.s32 %s33, 1
      %s39 = ssub.s32 %s33, 2
      %s46 = sadd.s32 1, %s41
      %p47 = scmp.ge.s32.totalorder %s46, 8
      %s48 = scalar_select %p47, 0, %s46
      %s49 = sadd.s32 1, %s40
      %s50 = scalar_select %p47, %s49, %s40
      %p51 = scmp.ge.s32.totalorder %s50, 1
      %s52 = scalar_select %p51, 0, %s50
      %s53 = ssub.s32 %s41, %s48
      %s54 = ssub.s32 %s40, %s52
      %s55 = sor.u32 %s53, %s54
      %p56 = scmp.eq.s32.totalorder %s55, 0
      %s58 = sadd.s32 %s57, 1
      %s59 = scalar_select %p56, %s57, %s58
      %p62 = pneg %p56
      %p63 = scmp.eq.s32.totalorder %s33, 7
      %p64 = por %p62, %p63
      %p65 = scmp.ne.s32.totalorder %s57, %s60
      %p66 = scmp.eq.s32.totalorder %s33, 0
      %p67 = por %p65, %p66
      %p68 = scmp.ne.s32.totalorder %s57, %s60
      %p69 = scmp.eq.s32.totalorder %s38, 7
      %p70 = por %p68, %p69
      %p71 = scmp.ne.s32.totalorder %s60, %s61
      %p72 = scmp.eq.s32.totalorder %s38, 0
      %p73 = por %p71, %p72
      %p74 = scmp.ne.s32.totalorder %s60, %s61
      %p75 = scmp.eq.s32.totalorder %s39, 7
      %p76 = por %p74, %p75
      %p78 = scmp.ne.s32.totalorder %s61, %s77
      %p79 = scmp.eq.s32.totalorder %s39, 0
      %p80 = por %p78, %p79
      %s81 = ssub.s32 %s40, %s52
      %p82 = scmp.eq.s32.totalorder %s81, 0
      %s84 = sadd.s32 %s83, 1
      %s85 = scalar_select %p82, %s83, %s84
      %p88 = pneg %p82
      %p89 = scmp.eq.s32.totalorder %s33, 7
      %p90 = por %p88, %p89
      %p91 = scmp.ne.s32.totalorder %s83, %s86
      %p92 = scmp.eq.s32.totalorder %s33, 0
      %p93 = por %p91, %p92
      %p94 = scmp.ne.s32.totalorder %s83, %s86
      %p95 = scmp.eq.s32.totalorder %s38, 7
      %p96 = por %p94, %p95
      %p97 = scmp.ne.s32.totalorder %s86, %s87
      %p98 = scmp.eq.s32.totalorder %s38, 0
      %p99 = por %p97, %p98
      %p100 = scmp.ne.s32.totalorder %s86, %s87
      %p101 = scmp.eq.s32.totalorder %s39, 7
      %p102 = por %p100, %p101
      %p104 = scmp.ne.s32.totalorder %s87, %s103
      %p105 = scmp.eq.s32.totalorder %s39, 0
      %p106 = por %p104, %p105
      %s107 = ssub.s32 %s40, %s52
      %p108 = scmp.eq.s32.totalorder %s107, 0
      %s110 = sadd.s32 %s109, 1
      %s111 = scalar_select %p108, %s109, %s110
      %p114 = pneg %p108
      %p115 = scmp.eq.s32.totalorder %s33, 7
      %p116 = por %p114, %p115
      %p117 = scmp.ne.s32.totalorder %s109, %s112
      %p118 = scmp.eq.s32.totalorder %s33, 0
      %p119 = por %p117, %p118
      %p120 = scmp.ne.s32.totalorder %s109, %s112
      %p121 = scmp.eq.s32.totalorder %s38, 7
      %p122 = por %p120, %p121
      %p123 = scmp.ne.s32.totalorder %s112, %s113
      %p124 = scmp.eq.s32.totalorder %s38, 0
      %p125 = por %p123, %p124
      %p126 = scmp.ne.s32.totalorder %s112, %s113
      %p127 = scmp.eq.s32.totalorder %s39, 7
      %p128 = por %p126, %p127
      %p130 = scmp.ne.s32.totalorder %s113, %s129
      %p131 = scmp.eq.s32.totalorder %s39, 0
      %p132 = por %p130, %p131
      %s134 = sadd.s32 %s133, 1
      %p137 = scmp.eq.s32.totalorder %s33, 7
      %p138 = scmp.ne.s32.totalorder %s133, %s135
      %p139 = scmp.eq.s32.totalorder %s33, 0
      %p140 = por %p138, %p139
      %p141 = scmp.ne.s32.totalorder %s133, %s135
      %p142 = scmp.eq.s32.totalorder %s38, 7
      %p143 = por %p141, %p142
      %p144 = scmp.ne.s32.totalorder %s135, %s136
      %p145 = scmp.eq.s32.totalorder %s38, 0
      %p146 = por %p144, %p145
      %p147 = scmp.ne.s32.totalorder %s135, %s136
      %p148 = scmp.eq.s32.totalorder %s39, 7
      %p149 = por %p147, %p148
      %p151 = scmp.ne.s32.totalorder %s136, %s150
      %p152 = scmp.eq.s32.totalorder %s39, 0
      %p153 = por %p151, %p152
      %s155 = sadd.s32 %s154, 1
      %p158 = scmp.eq.s32.totalorder %s33, 7
      %p159 = scmp.ne.s32.totalorder %s154, %s156
      %p160 = scmp.eq.s32.totalorder %s33, 0
      %p161 = por %p159, %p160
      %p162 = scmp.ne.s32.totalorder %s154, %s156
      %p163 = scmp.eq.s32.totalorder %s38, 7
      %p164 = por %p162, %p163
      %p165 = scmp.ne.s32.totalorder %s156, %s157
      %p166 = scmp.eq.s32.totalorder %s38, 0
      %p167 = por %p165, %p166
      %p168 = scmp.ne.s32.totalorder %s156, %s157
      %p169 = scmp.eq.s32.totalorder %s39, 7
      %p170 = por %p168, %p169
      %p172 = scmp.ne.s32.totalorder %s157, %s171
      %p173 = scmp.eq.s32.totalorder %s39, 0
      %p174 = por %p172, %p173
      %s176 = sadd.s32 %s175, 1
      %p179 = scmp.eq.s32.totalorder %s33, 7
      %p180 = scmp.ne.s32.totalorder %s175, %s177
      %p181 = scmp.eq.s32.totalorder %s33, 0
      %p182 = por %p180, %p181
      %p183 = scmp.ne.s32.totalorder %s175, %s177
      %p184 = scmp.eq.s32.totalorder %s38, 7
      %p185 = por %p183, %p184
      %p186 = scmp.ne.s32.totalorder %s177, %s178
      %p187 = scmp.eq.s32.totalorder %s38, 0
      %p188 = por %p186, %p187
      %p189 = scmp.ne.s32.totalorder %s177, %s178
      %p190 = scmp.eq.s32.totalorder %s39, 7
      %p191 = por %p189, %p190
      %p193 = scmp.ne.s32.totalorder %s178, %s192
      %p194 = scmp.eq.s32.totalorder %s39, 0
      %p195 = por %p193, %p194
      %s197 = sadd.s32 %s196, 1
      %p200 = scmp.eq.s32.totalorder %s33, 7
      %p201 = scmp.ne.s32.totalorder %s196, %s198
      %p202 = scmp.eq.s32.totalorder %s33, 0
      %p203 = por %p201, %p202
      %p204 = scmp.ne.s32.totalorder %s196, %s198
      %p205 = scmp.eq.s32.totalorder %s38, 7
      %p206 = por %p204, %p205
      %p207 = scmp.ne.s32.totalorder %s198, %s199
      %p208 = scmp.eq.s32.totalorder %s38, 0
      %p209 = por %p207, %p208
      %p210 = scmp.ne.s32.totalorder %s198, %s199
      %p211 = scmp.eq.s32.totalorder %s39, 7
      %p212 = por %p210, %p211
      %p214 = scmp.ne.s32.totalorder %s199, %s213
      %p215 = scmp.eq.s32.totalorder %s39, 0
      %p216 = por %p214, %p215
      %s218 = sadd.s32 %s217, 1
      %p221 = scmp.eq.s32.totalorder %s33, 7
      %p222 = scmp.ne.s32.totalorder %s217, %s219
      %p223 = scmp.eq.s32.totalorder %s33, 0
      %p224 = por %p222, %p223
      %p225 = scmp.ne.s32.totalorder %s217, %s219
      %p226 = scmp.eq.s32.totalorder %s38, 7
      %p227 = por %p225, %p226
      %p228 = scmp.ne.s32.totalorder %s219, %s220
      %p229 = scmp.eq.s32.totalorder %s38, 0
      %p230 = por %p228, %p229
      %p231 = scmp.ne.s32.totalorder %s219, %s220
      %p232 = scmp.eq.s32.totalorder %s39, 7
      %p233 = por %p231, %p232
      %p235 = scmp.ne.s32.totalorder %s220, %s234
      %p236 = scmp.eq.s32.totalorder %s39, 0
      %p237 = por %p235, %p236
      %s239 = sadd.s32 %s238, 1
      %p242 = scmp.eq.s32.totalorder %s33, 7
      %p243 = scmp.ne.s32.totalorder %s238, %s240
      %p244 = scmp.eq.s32.totalorder %s33, 0
      %p245 = por %p243, %p244
      %p246 = scmp.ne.s32.totalorder %s238, %s240
      %p247 = scmp.eq.s32.totalorder %s38, 7
      %p248 = por %p246, %p247
      %p249 = scmp.ne.s32.totalorder %s240, %s241
      %p250 = scmp.eq.s32.totalorder %s38, 0
      %p251 = por %p249, %p250
      %p252 = scmp.ne.s32.totalorder %s240, %s241
      %p253 = scmp.eq.s32.totalorder %s39, 7
      %p254 = por %p252, %p253
      %p256 = scmp.ne.s32.totalorder %s241, %s255
      %p257 = scmp.eq.s32.totalorder %s39, 0
      %p258 = por %p256, %p257
      %s260 = sadd.s32 %s259, 1
      %p263 = scmp.eq.s32.totalorder %s33, 7
      %p264 = scmp.ne.s32.totalorder %s259, %s261
      %p265 = scmp.eq.s32.totalorder %s33, 0
      %p266 = por %p264, %p265
      %p267 = scmp.ne.s32.totalorder %s259, %s261
      %p268 = scmp.eq.s32.totalorder %s38, 7
      %p269 = por %p267, %p268
      %p270 = scmp.ne.s32.totalorder %s261, %s262
      %p271 = scmp.eq.s32.totalorder %s38, 0
      %p272 = por %p270, %p271
      %p273 = scmp.ne.s32.totalorder %s261, %s262
      %p274 = scmp.eq.s32.totalorder %s39, 7
      %p275 = por %p273, %p274
      %p277 = scmp.ne.s32.totalorder %s262, %s276
      %p278 = scmp.eq.s32.totalorder %s39, 0
      %p279 = por %p277, %p278
      %s280 = ssub.s32 %s41, %s48
      %s281 = ssub.s32 %s40, %s52
      %s282 = sor.u32 %s280, %s281
      %p283 = scmp.eq.s32.totalorder %s282, 0
      %s285 = sadd.s32 %s284, 1
      %s286 = scalar_select %p283, %s284, %s285
      %p289 = pneg %p283
      %p290 = scmp.eq.s32.totalorder %s33, 7
      %p291 = por %p289, %p290
      %p292 = scmp.ne.s32.totalorder %s284, %s287
      %p293 = scmp.eq.s32.totalorder %s33, 0
      %p294 = por %p292, %p293
      %p295 = scmp.ne.s32.totalorder %s284, %s287
      %p296 = scmp.eq.s32.totalorder %s38, 7
      %p297 = por %p295, %p296
      %p298 = scmp.ne.s32.totalorder %s287, %s288
      %p299 = scmp.eq.s32.totalorder %s38, 0
      %p300 = por %p298, %p299
      %p301 = scmp.ne.s32.totalorder %s287, %s288
      %p302 = scmp.eq.s32.totalorder %s39, 7
      %p303 = por %p301, %p302
      %p305 = scmp.ne.s32.totalorder %s288, %s304
      %p306 = scmp.eq.s32.totalorder %s39, 0
      %p307 = por %p305, %p306
      %s308 = ssub.s32 %s40, %s52
      %p309 = scmp.eq.s32.totalorder %s308, 0
      %s311 = sadd.s32 %s310, 1
      %s312 = scalar_select %p309, %s310, %s311
      %p315 = pneg %p309
      %p316 = scmp.eq.s32.totalorder %s33, 7
      %p317 = por %p315, %p316
      %p318 = scmp.ne.s32.totalorder %s310, %s313
      %p319 = scmp.eq.s32.totalorder %s33, 0
      %p320 = por %p318, %p319
      %p321 = scmp.ne.s32.totalorder %s310, %s313
      %p322 = scmp.eq.s32.totalorder %s38, 7
      %p323 = por %p321, %p322
      %p324 = scmp.ne.s32.totalorder %s313, %s314
      %p325 = scmp.eq.s32.totalorder %s38, 0
      %p326 = por %p324, %p325
      %p327 = scmp.ne.s32.totalorder %s313, %s314
      %p328 = scmp.eq.s32.totalorder %s39, 7
      %p329 = por %p327, %p328
      %p331 = scmp.ne.s32.totalorder %s314, %s330
      %p332 = scmp.eq.s32.totalorder %s39, 0
      %p333 = por %p331, %p332
      %s334 = ssub.s32 %s40, %s52
      %p335 = scmp.eq.s32.totalorder %s334, 0
      %s337 = sadd.s32 %s336, 1
      %s338 = scalar_select %p335, %s336, %s337
      %p341 = pneg %p335
      %p342 = scmp.eq.s32.totalorder %s33, 7
      %p343 = por %p341, %p342
      %p344 = scmp.ne.s32.totalorder %s336, %s339
      %p345 = scmp.eq.s32.totalorder %s33, 0
      %p346 = por %p344, %p345
      %p347 = scmp.ne.s32.totalorder %s336, %s339
      %p348 = scmp.eq.s32.totalorder %s38, 7
      %p349 = por %p347, %p348
      %p350 = scmp.ne.s32.totalorder %s339, %s340
      %p351 = scmp.eq.s32.totalorder %s38, 0
      %p352 = por %p350, %p351
      %p353 = scmp.ne.s32.totalorder %s339, %s340
      %p354 = scmp.eq.s32.totalorder %s39, 7
      %p355 = por %p353, %p354
      %p357 = scmp.ne.s32.totalorder %s340, %s356
      %p358 = scmp.eq.s32.totalorder %s39, 0
      %p359 = por %p357, %p358
      %s360 = ssub.s32 %s40, %s52
      %p361 = scmp.eq.s32.totalorder %s360, 0
      %s363 = sadd.s32 %s362, 1
      %s364 = scalar_select %p361, %s362, %s363
      %p367 = pneg %p361
      %p368 = scmp.eq.s32.totalorder %s33, 7
      %p369 = por %p367, %p368
      %p370 = scmp.ne.s32.totalorder %s362, %s365
      %p371 = scmp.eq.s32.totalorder %s33, 0
      %p372 = por %p370, %p371
      %p373 = scmp.ne.s32.totalorder %s362, %s365
      %p374 = scmp.eq.s32.totalorder %s38, 7
      %p375 = por %p373, %p374
      %p376 = scmp.ne.s32.totalorder %s365, %s366
      %p377 = scmp.eq.s32.totalorder %s38, 0
      %p378 = por %p376, %p377
      %p379 = scmp.ne.s32.totalorder %s365, %s366
      %p380 = scmp.eq.s32.totalorder %s39, 7
      %p381 = por %p379, %p380
      %p383 = scmp.ne.s32.totalorder %s366, %s382
      %p384 = scmp.eq.s32.totalorder %s39, 0
      %p385 = por %p383, %p384
      %s386 = ssub.s32 %s40, %s52
      %p387 = scmp.eq.s32.totalorder %s386, 0
      %s389 = sadd.s32 %s388, 1
      %s390 = scalar_select %p387, %s388, %s389
      %p393 = pneg %p387
      %p394 = scmp.eq.s32.totalorder %s33, 7
      %p395 = por %p393, %p394
      %p396 = scmp.ne.s32.totalorder %s388, %s391
      %p397 = scmp.eq.s32.totalorder %s33, 0
      %p398 = por %p396, %p397
      %p399 = scmp.ne.s32.totalorder %s388, %s391
      %p400 = scmp.eq.s32.totalorder %s38, 7
      %p401 = por %p399, %p400
      %p402 = scmp.ne.s32.totalorder %s391, %s392
      %p403 = scmp.eq.s32.totalorder %s38, 0
      %p404 = por %p402, %p403
      %p405 = scmp.ne.s32.totalorder %s391, %s392
      %p406 = scmp.eq.s32.totalorder %s39, 7
      %p407 = por %p405, %p406
      %p409 = scmp.ne.s32.totalorder %s392, %s408
      %p410 = scmp.eq.s32.totalorder %s39, 0
      %p411 = por %p409, %p410
      %p412 = scmp.le.s32.totalorder 1, %s33
      %p413 = scmp.lt.s32.totalorder %s33, 9
      %p414 = pnand %p412, %p413
      %p415 = pneg %p414
      // Predicated region
      $region9: #{tpu_custom_call.1} parent=5 // pred_check
        _
      $region10: #{tpu_custom_call.1} parent=5 // pred_check_branch
        %417 = sbr.rel (%p414) target = $region12
      $region11: #{tpu_custom_call.1} parent=5 // pred_region
        %s418 = ssub.s32 %s33, 1
        // Predicated region
        $region13: #{tpu_custom_call.1} parent=11 // pred_check
          %p419 = pneg %p99
        $region14: #{tpu_custom_call.1} parent=11 // pred_check_branch
          %421 = sbr.rel (%p419) target = $region16
        $region15: #{tpu_custom_call.1} parent=11 // pred_region
          %s423 = ssub.s32 128, 128
          %424 = vsyncadd [#allocation6], %s423
          %s425 = smul.addr %s42, 128
          %s426 = scalar_lea.hbm %s1, %s425
          %s428 = sshll.u32 [#allocation5], 4
          %s429 = int_to_ptr.vmem [resolvable:$true] %s428
          %431 = dma.hbm_to_vmem [thread:$0]  %s426, 128, %s429, [#allocation6]
        $region16: #{tpu_custom_call.1} parent=11 // pred_fallthru
          _
        // Predicated region
        $region17: #{tpu_custom_call.1} parent=11 // pred_check
          %p432 = pneg %p125
        $region18: #{tpu_custom_call.1} parent=11 // pred_check_branch
          %434 = sbr.rel (%p432) target = $region20
        $region19: #{tpu_custom_call.1} parent=11 // pred_region
          %s436 = ssub.s32 128, 128
          %437 = vsyncadd [#allocation6], %s436
          %s438 = smul.addr %s42, 128
          %s439 = scalar_lea.hbm %s2, %s438
          %s441 = sshll.u32 [#allocation7], 4
          %s442 = int_to_ptr.vmem [resolvable:$true] %s441
          %444 = dma.hbm_to_vmem [thread:$0]  %s439, 128, %s442, [#allocation6]
        $region20: #{tpu_custom_call.1} parent=11 // pred_fallthru
          _
        // Predicated region
        $region21: #{tpu_custom_call.1} parent=11 // pred_check
          %p445 = pneg %p146
        $region22: #{tpu_custom_call.1} parent=11 // pred_check_branch
          %447 = sbr.rel (%p445) target = $region24
        $region23: #{tpu_custom_call.1} parent=11 // pred_region
          %s449 = ssub.s32 512, 512
          %450 = vsyncadd [#allocation9], %s449
          %s451 = sshll.u32 [#allocation8], 4
          %s452 = int_to_ptr.vmem [resolvable:$true] %s451
          %457 = dma.hbm_to_vmem [thread:$0]  %s3, 512, %s452, [#allocation9], 128, 128, 8
        $region24: #{tpu_custom_call.1} parent=11 // pred_fallthru
          _
        // Predicated region
        $region25: #{tpu_custom_call.1} parent=11 // pred_check
          %p458 = pneg %p167
        $region26: #{tpu_custom_call.1} parent=11 // pred_check_branch
          %460 = sbr.rel (%p458) target = $region28
        $region27: #{tpu_custom_call.1} parent=11 // pred_region
          %s462 = ssub.s32 10240, 10240
          %463 = vsyncadd [#allocation9], %s462
          %s464 = sshll.u32 [#allocation10], 4
          %s465 = int_to_ptr.vmem [resolvable:$true] %s464
          %470 = dma.hbm_to_vmem [thread:$0]  %s4, 10240, %s465, [#allocation9], 640, 640, 40
        $region28: #{tpu_custom_call.1} parent=11 // pred_fallthru
          _
        // Predicated region
        $region29: #{tpu_custom_call.1} parent=11 // pred_check
          %p471 = pneg %p188
        $region30: #{tpu_custom_call.1} parent=11 // pred_check_branch
          %473 = sbr.rel (%p471) target = $region32
        $region31: #{tpu_custom_call.1} parent=11 // pred_region
          _
        $region32: #{tpu_custom_call.1} parent=11 // pred_fallthru
          _
        // Predicated region
        $region33: #{tpu_custom_call.1} parent=11 // pred_check
          %p474 = pneg %p209
        $region34: #{tpu_custom_call.1} parent=11 // pred_check_branch
          %476 = sbr.rel (%p474) target = $region36
        $region35: #{tpu_custom_call.1} parent=11 // pred_region
          %s478 = ssub.s32 2048, 2048
          %479 = vsyncadd [#allocation12], %s478
          %s480 = sshll.u32 [#allocation11], 4
          %s481 = int_to_ptr.vmem [resolvable:$true] %s480
          %486 = dma.hbm_to_vmem [thread:$0]  %s6, 2048, %s481, [#allocation12], 512, 512, 32
        $region36: #{tpu_custom_call.1} parent=11 // pred_fallthru
          _
        // Predicated region
        $region37: #{tpu_custom_call.1} parent=11 // pred_check
          %p487 = pneg %p230
        $region38: #{tpu_custom_call.1} parent=11 // pred_check_branch
          %489 = sbr.rel (%p487) target = $region40
        $region39: #{tpu_custom_call.1} parent=11 // pred_region
          %s491 = ssub.s32 2560, 2560
          %492 = vsyncadd [#allocation12], %s491
          %s493 = sshll.u32 [#allocation13], 4
          %s494 = int_to_ptr.vmem [resolvable:$true] %s493
          %499 = dma.hbm_to_vmem [thread:$0]  %s7, 2560, %s494, [#allocation12], 640, 640, 40
        $region40: #{tpu_custom_call.1} parent=11 // pred_fallthru
          _
        // Predicated region
        $region41: #{tpu_custom_call.1} parent=11 // pred_check
          %p500 = pneg %p251
        $region42: #{tpu_custom_call.1} parent=11 // pred_check_branch
          %502 = sbr.rel (%p500) target = $region44
        $region43: #{tpu_custom_call.1} parent=11 // pred_region
          %s504 = ssub.s32 8192, 8192
          %505 = vsyncadd [#allocation15], %s504
          %s506 = sshll.u32 [#allocation14], 4
          %s507 = int_to_ptr.vmem [resolvable:$true] %s506
          %512 = dma.hbm_to_vmem [thread:$0]  %s8, 8192, %s507, [#allocation15], 512, 512, 32
        $region44: #{tpu_custom_call.1} parent=11 // pred_fallthru
          _
        // Predicated region
        $region45: #{tpu_custom_call.1} parent=11 // pred_check
          %p513 = pneg %p272
        $region46: #{tpu_custom_call.1} parent=11 // pred_check_branch
          %515 = sbr.rel (%p513) target = $region48
        $region47: #{tpu_custom_call.1} parent=11 // pred_region
          _
        $region48: #{tpu_custom_call.1} parent=11 // pred_fallthru
          _
      $region12: #{tpu_custom_call.1} parent=5 // pred_fallthru
        _
      %p516 = scmp.lt.s32.totalorder %s33, 8
      // Predicated region
      $region49: #{tpu_custom_call.1} parent=5 // pred_check
        %p517 = pneg %p516
      $region50: #{tpu_custom_call.1} parent=5 // pred_check_branch
        %519 = sbr.rel (%p517) target = $region52
      $region51: #{tpu_custom_call.1} parent=5 // pred_region
        // Predicated region
        $region53: #{tpu_custom_call.1} parent=51 // pred_check
          %p520 = pneg %p67
        $region54: #{tpu_custom_call.1} parent=51 // pred_check_branch
          %522 = sbr.rel (%p520) target = $region56
        $region55: #{tpu_custom_call.1} parent=51 // pred_region
          %s523 = sand.u32 %s57, 1
          %s524 = scalar_lea.sflag [#allocation3], %s523
          %s525 = sand.u32 %s57, 1
          %s526 = smul.addr %s525, 8
          %s527 = scalar_lea.vmem [#allocation2], %s526
          %s529 = ssub.s32 128, 128
          %530 = vsyncadd %s524, %s529
          %s531 = sadd.s32 %s40, %s41
          %s532 = smul.addr %s531, 128
          %s533 = scalar_lea.hbm %s0, %s532
          %s535 = sshll.u32 %s527, 4
          %s536 = int_to_ptr.vmem [resolvable:$true] %s535
          %538 = dma.hbm_to_vmem [thread:$0]  %s533, 128, %s536, %s524
        $region56: #{tpu_custom_call.1} parent=51 // pred_fallthru
          _
      $region52: #{tpu_custom_call.1} parent=5 // pred_fallthru
        _
      %p539 = scmp.le.s32.totalorder 1, %s33
      %p540 = scmp.lt.s32.totalorder %s33, 9
      %p541 = pnand %p539, %p540
      %p542 = pneg %p541
      // Predicated region
      $region57: #{tpu_custom_call.1} parent=5 // pred_check
        _
      $region58: #{tpu_custom_call.1} parent=5 // pred_check_branch
        %544 = sbr.rel (%p541) target = $region60
      $region59: #{tpu_custom_call.1} parent=5 // pred_region
        %s545 = ssub.s32 %s33, 1
        %s546 = sand.u32 %s60, 1
        %s547 = scalar_lea.sflag [#allocation3], %s546
        %s548 = sand.u32 %s60, 1
        %s549 = smul.addr %s548, 8
        %s550 = scalar_lea.vmem [#allocation2], %s549
        // Predicated region
        $region61: #{tpu_custom_call.1} parent=59 // pred_check
          %p551 = pneg %p73
        $region62: #{tpu_custom_call.1} parent=59 // pred_check_branch
          %553 = sbr.rel (%p551) target = $region64
        $region63: #{tpu_custom_call.1} parent=59 // pred_region
          %554 = dma.done %s547, 128
        $region64: #{tpu_custom_call.1} parent=59 // pred_fallthru
          _
        // Predicated region
        $region65: #{tpu_custom_call.1} parent=59 // pred_check
          %p555 = pneg %p99
        $region66: #{tpu_custom_call.1} parent=59 // pred_check_branch
          %557 = sbr.rel (%p555) target = $region68
        $region67: #{tpu_custom_call.1} parent=59 // pred_region
          %558 = dma.done [#allocation6], 128
        $region68: #{tpu_custom_call.1} parent=59 // pred_fallthru
          _
        // Predicated region
        $region69: #{tpu_custom_call.1} parent=59 // pred_check
          %p559 = pneg %p125
        $region70: #{tpu_custom_call.1} parent=59 // pred_check_branch
          %561 = sbr.rel (%p559) target = $region72
        $region71: #{tpu_custom_call.1} parent=59 // pred_region
          %562 = dma.done [#allocation6], 128
        $region72: #{tpu_custom_call.1} parent=59 // pred_fallthru
          _
        // Predicated region
        $region73: #{tpu_custom_call.1} parent=59 // pred_check
          %p563 = pneg %p146
        $region74: #{tpu_custom_call.1} parent=59 // pred_check_branch
          %565 = sbr.rel (%p563) target = $region76
        $region75: #{tpu_custom_call.1} parent=59 // pred_region
          %566 = dma.done [#allocation9], 512
        $region76: #{tpu_custom_call.1} parent=59 // pred_fallthru
          _
        // Predicated region
        $region77: #{tpu_custom_call.1} parent=59 // pred_check
          %p567 = pneg %p167
        $region78: #{tpu_custom_call.1} parent=59 // pred_check_branch
          %569 = sbr.rel (%p567) target = $region80
        $region79: #{tpu_custom_call.1} parent=59 // pred_region
          %570 = dma.done [#allocation9], 10240
        $region80: #{tpu_custom_call.1} parent=59 // pred_fallthru
          _
        // Predicated region
        $region81: #{tpu_custom_call.1} parent=59 // pred_check
          %p571 = pneg %p209
        $region82: #{tpu_custom_call.1} parent=59 // pred_check_branch
          %573 = sbr.rel (%p571) target = $region84
        $region83: #{tpu_custom_call.1} parent=59 // pred_region
          %574 = dma.done [#allocation12], 2048
        $region84: #{tpu_custom_call.1} parent=59 // pred_fallthru
          _
        // Predicated region
        $region85: #{tpu_custom_call.1} parent=59 // pred_check
          %p575 = pneg %p230
        $region86: #{tpu_custom_call.1} parent=59 // pred_check_branch
          %577 = sbr.rel (%p575) target = $region88
        $region87: #{tpu_custom_call.1} parent=59 // pred_region
          %578 = dma.done [#allocation12], 2560
        $region88: #{tpu_custom_call.1} parent=59 // pred_fallthru
          _
        // Predicated region
        $region89: #{tpu_custom_call.1} parent=59 // pred_check
          %p579 = pneg %p251
        $region90: #{tpu_custom_call.1} parent=59 // pred_check_branch
          %581 = sbr.rel (%p579) target = $region92
        $region91: #{tpu_custom_call.1} parent=59 // pred_region
          %582 = dma.done [#allocation15], 8192
        $region92: #{tpu_custom_call.1} parent=59 // pred_fallthru
          _
        %s583 = sand.u32 %s60, 1
        %s584 = scalar_lea.sflag [#allocation3], %s583
        %s585 = sand.u32 %s60, 1
        %s586 = smul.addr %s585, 8
        %s587 = scalar_lea.vmem [#allocation2], %s586
        %p588 = pneg %p73
        %p589 = pneg %p70
        %p590 = pneg %p99
        %p591 = pneg %p96
        %p592 = pneg %p125
        %p593 = pneg %p122
        %p594 = pneg %p146
        %p595 = pneg %p143
        %p596 = pneg %p167
        %p597 = pneg %p164
        %p598 = pneg %p188
        %p599 = pneg %p185
        %p600 = pneg %p209
        %p601 = pneg %p206
        %p602 = pneg %p230
        %p603 = pneg %p227
        %p604 = pneg %p251
        %p605 = pneg %p248
        %p606 = pneg %p272
        %p607 = pneg %p269
        %p608 = pneg %p300
        %p609 = pneg %p297
        %s610 = sand.u32 %s287, 1
        %s611 = scalar_lea.sflag [#allocation4], %s610
        %s612 = sand.u32 %s287, 1
        %s613 = smul.addr %s612, 8
        %s614 = scalar_lea.vmem [#allocation16], %s613
        %p615 = pneg %p326
        %p616 = pneg %p323
        %p617 = pneg %p352
        %p618 = pneg %p349
        %p619 = pneg %p378
        %p620 = pneg %p375
        %p621 = pneg %p404
        %p622 = pneg %p401
        %s623 = smul.u32 8, %s42
        %p624 = scmp.eq.s32.totalorder %s43, 0
        // Predicated region
        $region93: #{tpu_custom_call.1} parent=59 // pred_check
          %p625 = pneg %p624
        $region94: #{tpu_custom_call.1} parent=59 // pred_check_branch
          %627 = sbr.rel (%p625) target = $region96
        $region95: #{tpu_custom_call.1} parent=59 // pred_region
          %v628 = vld [vmem:[#allocation5] sm:$0xff]
          %629 = vst [vmem:[#allocation17] sm:$0xff] %v628
          %v630 = vld [vmem:[#allocation7] sm:$0xff]
          %631 = vst [vmem:[#allocation19] sm:$0xff] %v630
          %v632 = vld [vmem:[#allocation8] sm:$0xff]
          %v633 = vld [vmem:[#allocation8 + $0x8] sm:$0xff]
          %v634 = vld [vmem:[#allocation8 + $0x10] sm:$0xff]
          %v635 = vld [vmem:[#allocation8 + $0x18] sm:$0xff]
          %636 = vst [vmem:[#allocation22] sm:$0xff] %v632
          %637 = vst [vmem:[#allocation22 + $0x8] sm:$0xff] %v633
          %638 = vst [vmem:[#allocation22 + $0x10] sm:$0xff] %v634
          %639 = vst [vmem:[#allocation22 + $0x18] sm:$0xff] %v635
          %640 = vst [vmem:[#allocation22 + $0x20] sm:$0xff] %v632
          %641 = vst [vmem:[#allocation22 + $0x28] sm:$0xff] %v633
          %642 = vst [vmem:[#allocation22 + $0x30] sm:$0xff] %v634
          %643 = vst [vmem:[#allocation22 + $0x38] sm:$0xff] %v635
          %644 = vst [vmem:[#allocation22 + $0x40] sm:$0xff] %v632
          %645 = vst [vmem:[#allocation22 + $0x48] sm:$0xff] %v633
          %646 = vst [vmem:[#allocation22 + $0x50] sm:$0xff] %v634
          %647 = vst [vmem:[#allocation22 + $0x58] sm:$0xff] %v635
          %648 = vst [vmem:[#allocation22 + $0x60] sm:$0xff] %v632
          %649 = vst [vmem:[#allocation22 + $0x68] sm:$0xff] %v633
          %650 = vst [vmem:[#allocation22 + $0x70] sm:$0xff] %v634
          %651 = vst [vmem:[#allocation22 + $0x78] sm:$0xff] %v635
          %652 = vst [vmem:[#allocation22 + $0x80] sm:$0xff] %v632
          %653 = vst [vmem:[#allocation22 + $0x88] sm:$0xff] %v633
          %654 = vst [vmem:[#allocation22 + $0x90] sm:$0xff] %v634
          %655 = vst [vmem:[#allocation22 + $0x98] sm:$0xff] %v635
          %656 = vst [vmem:[#allocation22 + $0xa0] sm:$0xff] %v632
          %657 = vst [vmem:[#allocation22 + $0xa8] sm:$0xff] %v633
          %658 = vst [vmem:[#allocation22 + $0xb0] sm:$0xff] %v634
          %659 = vst [vmem:[#allocation22 + $0xb8] sm:$0xff] %v635
          %660 = vst [vmem:[#allocation22 + $0xc0] sm:$0xff] %v632
          %661 = vst [vmem:[#allocation22 + $0xc8] sm:$0xff] %v633
          %662 = vst [vmem:[#allocation22 + $0xd0] sm:$0xff] %v634
          %663 = vst [vmem:[#allocation22 + $0xd8] sm:$0xff] %v635
          %664 = vst [vmem:[#allocation22 + $0xe0] sm:$0xff] %v632
          %665 = vst [vmem:[#allocation22 + $0xe8] sm:$0xff] %v633
          %666 = vst [vmem:[#allocation22 + $0xf0] sm:$0xff] %v634
          %667 = vst [vmem:[#allocation22 + $0xf8] sm:$0xff] %v635
        $region96: #{tpu_custom_call.1} parent=59 // pred_fallthru
          _
        %v668 = vld [vmem:[#allocation17] sm:$0xff]
        %v669 = vld [vmem:[#allocation19] sm:$0xff]
        %v670 = vld [vmem:[#allocation22] sm:$0xff]
        %v671 = vld [vmem:[#allocation22 + $0x8] sm:$0xff]
        %v672 = vld [vmem:[#allocation22 + $0x10] sm:$0xff]
        %v673 = vld [vmem:[#allocation22 + $0x18] sm:$0xff]
        %v674 = vld [vmem:[#allocation22 + $0x20] sm:$0xff]
        %v675 = vld [vmem:[#allocation22 + $0x28] sm:$0xff]
        %v676 = vld [vmem:[#allocation22 + $0x30] sm:$0xff]
        %v677 = vld [vmem:[#allocation22 + $0x38] sm:$0xff]
        %v678 = vld [vmem:[#allocation22 + $0x40] sm:$0xff]
        %v679 = vld [vmem:[#allocation22 + $0x48] sm:$0xff]
        %v680 = vld [vmem:[#allocation22 + $0x50] sm:$0xff]
        %v681 = vld [vmem:[#allocation22 + $0x58] sm:$0xff]
        %v682 = vld [vmem:[#allocation22 + $0x60] sm:$0xff]
        %v683 = vld [vmem:[#allocation22 + $0x68] sm:$0xff]
        %v684 = vld [vmem:[#allocation22 + $0x70] sm:$0xff]
        %v685 = vld [vmem:[#allocation22 + $0x78] sm:$0xff]
        %v686 = vld [vmem:[#allocation22 + $0x80] sm:$0xff]
        %v687 = vld [vmem:[#allocation22 + $0x88] sm:$0xff]
        %v688 = vld [vmem:[#allocation22 + $0x90] sm:$0xff]
        %v689 = vld [vmem:[#allocation22 + $0x98] sm:$0xff]
        %v690 = vld [vmem:[#allocation22 + $0xa0] sm:$0xff]
        %v691 = vld [vmem:[#allocation22 + $0xa8] sm:$0xff]
        %v692 = vld [vmem:[#allocation22 + $0xb0] sm:$0xff]
        %v693 = vld [vmem:[#allocation22 + $0xb8] sm:$0xff]
        %v694 = vld [vmem:[#allocation22 + $0xc0] sm:$0xff]
        %v695 = vld [vmem:[#allocation22 + $0xc8] sm:$0xff]
        %v696 = vld [vmem:[#allocation22 + $0xd0] sm:$0xff]
        %v697 = vld [vmem:[#allocation22 + $0xd8] sm:$0xff]
        %v698 = vld [vmem:[#allocation22 + $0xe0] sm:$0xff]
        %v699 = vld [vmem:[#allocation22 + $0xe8] sm:$0xff]
        %v700 = vld [vmem:[#allocation22 + $0xf0] sm:$0xff]
        %v701 = vld [vmem:[#allocation22 + $0xf8] sm:$0xff]
        %v702 = vld [vmem:[%s550] sm:$0xff]
        %v703 = vld [vmem:[#allocation10] sm:$0xff]
        %v704 = vld [vmem:[#allocation10 + $0x8] sm:$0xff]
        %v705 = vld [vmem:[#allocation10 + $0x10] sm:$0xff]
        %v706 = vld [vmem:[#allocation10 + $0x18] sm:$0xff]
        %v707 = vld [vmem:[#allocation10 + $0x20] sm:$0xff]
        %v708 = vld [vmem:[#allocation10 + $0x28] sm:$0xff]
        %v709 = vld [vmem:[#allocation10 + $0x30] sm:$0xff]
        %v710 = vld [vmem:[#allocation10 + $0x38] sm:$0xff]
        %v711 = vld [vmem:[#allocation10 + $0x40] sm:$0xff]
        %v712 = vld [vmem:[#allocation10 + $0x48] sm:$0xff]
        %v713 = vld [vmem:[#allocation10 + $0x50] sm:$0xff]
        %v714 = vld [vmem:[#allocation10 + $0x58] sm:$0xff]
        %v715 = vld [vmem:[#allocation10 + $0x60] sm:$0xff]
        %v716 = vld [vmem:[#allocation10 + $0x68] sm:$0xff]
        %v717 = vld [vmem:[#allocation10 + $0x70] sm:$0xff]
        %v718 = vld [vmem:[#allocation10 + $0x78] sm:$0xff]
        %v719 = vld [vmem:[#allocation10 + $0x80] sm:$0xff]
        %v720 = vld [vmem:[#allocation10 + $0x88] sm:$0xff]
        %v721 = vld [vmem:[#allocation10 + $0x90] sm:$0xff]
        %v722 = vld [vmem:[#allocation10 + $0x98] sm:$0xff]
        %v723 = vld [vmem:[#allocation10 + $0xa0] sm:$0xff]
        %v724 = vld [vmem:[#allocation10 + $0xa8] sm:$0xff]
        %v725 = vld [vmem:[#allocation10 + $0xb0] sm:$0xff]
        %v726 = vld [vmem:[#allocation10 + $0xb8] sm:$0xff]
        %v727 = vld [vmem:[#allocation10 + $0xc0] sm:$0xff]
        %v728 = vld [vmem:[#allocation10 + $0xc8] sm:$0xff]
        %v729 = vld [vmem:[#allocation10 + $0xd0] sm:$0xff]
        %v730 = vld [vmem:[#allocation10 + $0xd8] sm:$0xff]
        %v731 = vld [vmem:[#allocation10 + $0xe0] sm:$0xff]
        %v732 = vld [vmem:[#allocation10 + $0xe8] sm:$0xff]
        %v733 = vld [vmem:[#allocation10 + $0xf0] sm:$0xff]
        %v734 = vld [vmem:[#allocation10 + $0xf8] sm:$0xff]
        %v735 = vld [vmem:[#allocation10 + $0x100] sm:$0xff]
        %v736 = vld [vmem:[#allocation10 + $0x108] sm:$0xff]
        %v737 = vld [vmem:[#allocation10 + $0x110] sm:$0xff]
        %v738 = vld [vmem:[#allocation10 + $0x118] sm:$0xff]
        %v739 = vld [vmem:[#allocation10 + $0x120] sm:$0xff]
        %v740 = vld [vmem:[#allocation10 + $0x128] sm:$0xff]
        %v741 = vld [vmem:[#allocation10 + $0x130] sm:$0xff]
        %v742 = vld [vmem:[#allocation10 + $0x138] sm:$0xff]
        %v743 = vld [vmem:[#allocation10 + $0x140] sm:$0xff]
        %v744 = vld [vmem:[#allocation10 + $0x148] sm:$0xff]
        %v745 = vld [vmem:[#allocation10 + $0x150] sm:$0xff]
        %v746 = vld [vmem:[#allocation10 + $0x158] sm:$0xff]
        %v747 = vld [vmem:[#allocation10 + $0x160] sm:$0xff]
        %v748 = vld [vmem:[#allocation10 + $0x168] sm:$0xff]
        %v749 = vld [vmem:[#allocation10 + $0x170] sm:$0xff]
        %v750 = vld [vmem:[#allocation10 + $0x178] sm:$0xff]
        %v751 = vld [vmem:[#allocation10 + $0x180] sm:$0xff]
        %v752 = vld [vmem:[#allocation10 + $0x188] sm:$0xff]
        %v753 = vld [vmem:[#allocation10 + $0x190] sm:$0xff]
        %v754 = vld [vmem:[#allocation10 + $0x198] sm:$0xff]
        %v755 = vld [vmem:[#allocation10 + $0x1a0] sm:$0xff]
        %v756 = vld [vmem:[#allocation10 + $0x1a8] sm:$0xff]
        %v757 = vld [vmem:[#allocation10 + $0x1b0] sm:$0xff]
        %v758 = vld [vmem:[#allocation10 + $0x1b8] sm:$0xff]
        %v759 = vld [vmem:[#allocation10 + $0x1c0] sm:$0xff]
        %v760 = vld [vmem:[#allocation10 + $0x1c8] sm:$0xff]
        %v761 = vld [vmem:[#allocation10 + $0x1d0] sm:$0xff]
        %v762 = vld [vmem:[#allocation10 + $0x1d8] sm:$0xff]
        %v763 = vld [vmem:[#allocation10 + $0x1e0] sm:$0xff]
        %v764 = vld [vmem:[#allocation10 + $0x1e8] sm:$0xff]
        %v765 = vld [vmem:[#allocation10 + $0x1f0] sm:$0xff]
        %v766 = vld [vmem:[#allocation10 + $0x1f8] sm:$0xff]
        %v767 = vld [vmem:[#allocation10 + $0x200] sm:$0xff]
        %v768 = vld [vmem:[#allocation10 + $0x208] sm:$0xff]
        %v769 = vld [vmem:[#allocation10 + $0x210] sm:$0xff]
        %v770 = vld [vmem:[#allocation10 + $0x218] sm:$0xff]
        %v771 = vld [vmem:[#allocation10 + $0x220] sm:$0xff]
        %v772 = vld [vmem:[#allocation10 + $0x228] sm:$0xff]
        %v773 = vld [vmem:[#allocation10 + $0x230] sm:$0xff]
        %v774 = vld [vmem:[#allocation10 + $0x238] sm:$0xff]
        %v775 = vld [vmem:[#allocation10 + $0x240] sm:$0xff]
        %v776 = vld [vmem:[#allocation10 + $0x248] sm:$0xff]
        %v777 = vld [vmem:[#allocation10 + $0x250] sm:$0xff]
        %v778 = vld [vmem:[#allocation10 + $0x258] sm:$0xff]
        %v779 = vld [vmem:[#allocation10 + $0x260] sm:$0xff]
        %v780 = vld [vmem:[#allocation10 + $0x268] sm:$0xff]
        %v781 = vld [vmem:[#allocation10 + $0x270] sm:$0xff]
        %v782 = vld [vmem:[#allocation10 + $0x278] sm:$0xff]
        %v783 = vld [vmem:[%s5] sm:$0x1f]
        %v785 = vlaneseq
        %v786 = vshrl.u32 %v785, 7
        %v787 = vsub.s32 0, %v786
        %v788 = vrot.slane %v783, %v787
        %v789 = vlaneseq
        %v790 = vshrl.u32 %v789, 7
        %v791 = vsub.s32 1, %v790
        %v792 = vrot.slane %v783, %v791
        %v793 = vlaneseq
        %v794 = vshrl.u32 %v793, 7
        %v795 = vsub.s32 2, %v794
        %v796 = vrot.slane %v783, %v795
        %v797 = vlaneseq
        %v798 = vshrl.u32 %v797, 7
        %v799 = vsub.s32 3, %v798
        %v800 = vrot.slane %v783, %v799
        %v801 = vlaneseq
        %v802 = vshrl.u32 %v801, 7
        %v803 = vsub.s32 4, %v802
        %v804 = vrot.slane %v783, %v803
        %810 = vmatprep.subr.mxu0 %v779
        %811 = vmatpush1.msra.mxu0 %v778
        %812 = vmatprep.subr.mxu0 %v774
        %813 = vmatpush1.msra.mxu0 %v773
        %814 = vmatprep.subr.mxu0 %v769
        %815 = vmatpush1.msra.mxu0 %v768
        %816 = vmatprep.subr.mxu0 %v764
        %817 = vmatpush1.msra.mxu0 %v763
        %818 = vmatprep.subr.mxu0 %v759
        %819 = vmatpush1.msra.mxu0 %v758
        %820 = vmatprep.subr.mxu0 %v754
        %821 = vmatpush1.msra.mxu0 %v753
        %822 = vmatprep.subr.mxu0 %v749
        %823 = vmatpush1.msra.mxu0 %v748
        %824 = vmatprep.subr.mxu0 %v744
        %825 = vmatpush1.msra.mxu0 %v743
        %826 = vmatprep.subr.mxu0 %v739
        %827 = vmatpush1.msra.mxu0 %v738
        %828 = vmatprep.subr.mxu0 %v734
        %829 = vmatpush1.msra.mxu0 %v733
        %830 = vmatprep.subr.mxu0 %v729
        %831 = vmatpush1.msra.mxu0 %v728
        %832 = vmatprep.subr.mxu0 %v724
        %833 = vmatpush1.msra.mxu0 %v723
        %834 = vmatprep.subr.mxu0 %v719
        %835 = vmatpush1.msra.mxu0 %v718
        %836 = vmatprep.subr.mxu0 %v714
        %837 = vmatpush1.msra.mxu0 %v713
        %838 = vmatprep.subr.mxu0 %v709
        %839 = vmatpush1.msra.mxu0 %v708
        %840 = vmatprep.subr.mxu0 %v704
        %841 = vmatpush1.msra.mxu0 %v703
        %842 = vmatprep.subr.mxu0 0.0
        %843 = vmatpush2.msra.mxu0 0.0
        %844 = vmatprep.subr.mxu0 0.0
        %845 = vmatpush2.msra.mxu0 0.0
        %846 = vmatprep.subr.mxu0 0.0
        %847 = vmatpush2.msra.mxu0 0.0
        %848 = vmatprep.subr.mxu0 0.0
        %849 = vmatpush2.msra.mxu0 0.0
        %850 = vmatprep.subr.mxu0 0.0
        %851 = vmatpush2.msra.mxu0 0.0
        %852 = vmatprep.subr.mxu0 0.0
        %853 = vmatpush2.msra.mxu0 0.0
        %854 = vmatprep.subr.mxu0 0.0
        %855 = vmatpush2.msra.mxu0 0.0
        %856 = vmatprep.subr.mxu0 0.0
        %857 = vmatpush2.msra.mxu0 0.0
        %858 = vmatprep.subr.mxu0 0.0
        %859 = vmatpush2.msra.mxu0 0.0
        %860 = vmatprep.subr.mxu0 0.0
        %861 = vmatpush2.msra.mxu0 0.0
        %862 = vmatprep.subr.mxu0 0.0
        %863 = vmatpush2.msra.mxu0 0.0
        %864 = vmatprep.subr.mxu0 0.0
        %865 = vmatpush2.msra.mxu0 0.0
        %866 = vmatprep.subr.mxu0 0.0
        %867 = vmatpush2.msra.mxu0 0.0
        %868 = vmatprep.subr.mxu0 0.0
        %869 = vmatpush2.msra.mxu0 0.0
        %870 = vmatprep.subr.mxu0 0.0
        %871 = vmatpush2.msra.mxu0 0.0
        %872 = vmatprep.subr.mxu0 0.0
        %873 = vmatpush2.msra.mxu0 0.0
        %874 = vmatprep.mubr.f32.mxu0 0.0
        %875 = vmatmul.mubr.f32.gmra.mxu0 %v668
        %v876 = vpop.f32.mrf.mxu0
        %v877 = vadd.f32 %v788, %v876
        %v878 = vpop.f32.mrf.mxu0
        %v879 = vadd.f32 %v792, %v878
        %880 = vdwg.mxu0
        %881 = vmatprep.subr.mxu0 %v781
        %882 = vmatpush1.msra.mxu0 %v780
        %883 = vmatprep.subr.mxu0 %v776
        %884 = vmatpush1.msra.mxu0 %v775
        %885 = vmatprep.subr.mxu0 %v771
        %886 = vmatpush1.msra.mxu0 %v770
        %887 = vmatprep.subr.mxu0 %v766
        %888 = vmatpush1.msra.mxu0 %v765
        %889 = vmatprep.subr.mxu0 %v761
        %890 = vmatpush1.msra.mxu0 %v760
        %891 = vmatprep.subr.mxu0 %v756
        %892 = vmatpush1.msra.mxu0 %v755
        %893 = vmatprep.subr.mxu0 %v751
        %894 = vmatpush1.msra.mxu0 %v750
        %895 = vmatprep.subr.mxu0 %v746
        %896 = vmatpush1.msra.mxu0 %v745
        %897 = vmatprep.subr.mxu0 %v741
        %898 = vmatpush1.msra.mxu0 %v740
        %899 = vmatprep.subr.mxu0 %v736
        %900 = vmatpush1.msra.mxu0 %v735
        %901 = vmatprep.subr.mxu0 %v731
        %902 = vmatpush1.msra.mxu0 %v730
        %903 = vmatprep.subr.mxu0 %v726
        %904 = vmatpush1.msra.mxu0 %v725
        %905 = vmatprep.subr.mxu0 %v721
        %906 = vmatpush1.msra.mxu0 %v720
        %907 = vmatprep.subr.mxu0 %v716
        %908 = vmatpush1.msra.mxu0 %v715
        %909 = vmatprep.subr.mxu0 %v711
        %910 = vmatpush1.msra.mxu0 %v710
        %911 = vmatprep.subr.mxu0 %v706
        %912 = vmatpush1.msra.mxu0 %v705
        %913 = vmatprep.subr.mxu0 0.0
        %914 = vmatpush2.msra.mxu0 0.0
        %915 = vmatprep.subr.mxu0 0.0
        %916 = vmatpush2.msra.mxu0 0.0
        %917 = vmatprep.subr.mxu0 0.0
        %918 = vmatpush2.msra.mxu0 0.0
        %919 = vmatprep.subr.mxu0 0.0
        %920 = vmatpush2.msra.mxu0 0.0
        %921 = vmatprep.subr.mxu0 0.0
        %922 = vmatpush2.msra.mxu0 0.0
        %923 = vmatprep.subr.mxu0 0.0
        %924 = vmatpush2.msra.mxu0 0.0
        %925 = vmatprep.subr.mxu0 0.0
        %926 = vmatpush2.msra.mxu0 0.0
        %927 = vmatprep.subr.mxu0 0.0
        %928 = vmatpush2.msra.mxu0 0.0
        %929 = vmatprep.subr.mxu0 0.0
        %930 = vmatpush2.msra.mxu0 0.0
        %931 = vmatprep.subr.mxu0 0.0
        %932 = vmatpush2.msra.mxu0 0.0
        %933 = vmatprep.subr.mxu0 0.0
        %934 = vmatpush2.msra.mxu0 0.0
        %935 = vmatprep.subr.mxu0 0.0
        %936 = vmatpush2.msra.mxu0 0.0
        %937 = vmatprep.subr.mxu0 0.0
        %938 = vmatpush2.msra.mxu0 0.0
        %939 = vmatprep.subr.mxu0 0.0
        %940 = vmatpush2.msra.mxu0 0.0
        %941 = vmatprep.subr.mxu0 0.0
        %942 = vmatpush2.msra.mxu0 0.0
        %943 = vmatprep.subr.mxu0 0.0
        %944 = vmatpush2.msra.mxu0 0.0
        %945 = vmatprep.mubr.f32.mxu0 0.0
        %946 = vmatmul.mubr.f32.gmra.mxu0 %v668
        %v947 = vpop.f32.mrf.mxu0
        %v948 = vadd.f32 %v796, %v947
        %v949 = vpop.f32.mrf.mxu0
        %v950 = vadd.f32 %v800, %v949
        %951 = vdwg.mxu0
        %952 = vmatprep.subr.mxu0 0.0
        %953 = vmatpush1.msra.mxu0 %v782
        %954 = vmatprep.subr.mxu0 0.0
        %955 = vmatpush1.msra.mxu0 %v777
        %956 = vmatprep.subr.mxu0 0.0
        %957 = vmatpush1.msra.mxu0 %v772
        %958 = vmatprep.subr.mxu0 0.0
        %959 = vmatpush1.msra.mxu0 %v767
        %960 = vmatprep.subr.mxu0 0.0
        %961 = vmatpush1.msra.mxu0 %v762
        %962 = vmatprep.subr.mxu0 0.0
        %963 = vmatpush1.msra.mxu0 %v757
        %964 = vmatprep.subr.mxu0 0.0
        %965 = vmatpush1.msra.mxu0 %v752
        %966 = vmatprep.subr.mxu0 0.0
        %967 = vmatpush1.msra.mxu0 %v747
        %968 = vmatprep.subr.mxu0 0.0
        %969 = vmatpush1.msra.mxu0 %v742
        %970 = vmatprep.subr.mxu0 0.0
        %971 = vmatpush1.msra.mxu0 %v737
        %972 = vmatprep.subr.mxu0 0.0
        %973 = vmatpush1.msra.mxu0 %v732
        %974 = vmatprep.subr.mxu0 0.0
        %975 = vmatpush1.msra.mxu0 %v727
        %976 = vmatprep.subr.mxu0 0.0
        %977 = vmatpush1.msra.mxu0 %v722
        %978 = vmatprep.subr.mxu0 0.0
        %979 = vmatpush1.msra.mxu0 %v717
        %980 = vmatprep.subr.mxu0 0.0
        %981 = vmatpush1.msra.mxu0 %v712
        %982 = vmatprep.subr.mxu0 0.0
        %983 = vmatpush1.msra.mxu0 %v707
        %984 = vmatprep.subr.mxu0 0.0
        %985 = vmatpush2.msra.mxu0 0.0
        %986 = vmatprep.subr.mxu0 0.0
        %987 = vmatpush2.msra.mxu0 0.0
        %988 = vmatprep.subr.mxu0 0.0
        %989 = vmatpush2.msra.mxu0 0.0
        %990 = vmatprep.subr.mxu0 0.0
        %991 = vmatpush2.msra.mxu0 0.0
        %992 = vmatprep.subr.mxu0 0.0
        %993 = vmatpush2.msra.mxu0 0.0
        %994 = vmatprep.subr.mxu0 0.0
        %995 = vmatpush2.msra.mxu0 0.0
        %996 = vmatprep.subr.mxu0 0.0
        %997 = vmatpush2.msra.mxu0 0.0
        %998 = vmatprep.subr.mxu0 0.0
        %999 = vmatpush2.msra.mxu0 0.0
        %1000 = vmatprep.subr.mxu0 0.0
        %1001 = vmatpush2.msra.mxu0 0.0
        %1002 = vmatprep.subr.mxu0 0.0
        %1003 = vmatpush2.msra.mxu0 0.0
        %1004 = vmatprep.subr.mxu0 0.0
        %1005 = vmatpush2.msra.mxu0 0.0
        %1006 = vmatprep.subr.mxu0 0.0
        %1007 = vmatpush2.msra.mxu0 0.0
        %1008 = vmatprep.subr.mxu0 0.0
        %1009 = vmatpush2.msra.mxu0 0.0
        %1010 = vmatprep.subr.mxu0 0.0
        %1011 = vmatpush2.msra.mxu0 0.0
        %1012 = vmatprep.subr.mxu0 0.0
        %1013 = vmatpush2.msra.mxu0 0.0
        %1014 = vmatprep.subr.mxu0 0.0
        %1015 = vmatpush2.msra.mxu0 0.0
        %1016 = vmatprep.mubr.f32.mxu0 0.0
        %1017 = vmatmul.mubr.f32.gmra.mxu0 %v668
        %v1018 = vpop.f32.mrf.mxu0
        %v1019 = vadd.f32 %v804, %v1018
        %v1020 = vpop.f32.mrf.mxu0
        %1021 = vdwg.mxu0
        %1022 = vmax.xlane.f32.xlu0 %v877
        %v1023 = vpop.xlane.xlu0 %1022
        %v1024 = vsub.f32 %v877, %v1023
        %v1025 = vmul.f32 %v1024, 1.442695
        %v1026 = vpow.pop %v1025
        %1027 = vadd.xlane.f32.xlu0 %v1026
        %v1028 = vpop.xlane.xlu0 %1027
        %v1029 = vrcp.pop %v1028
        %v1030 = vmul.f32 %v1026, %v1029
        %v1032 = vcombine.high %v1030, %v1030
        %v1034 = vunpack.c.l.s4 1966171168
        %v1035 = vunpack.c.0.s8 %v1034
        %v1036 = vlaneseq
        %v1037 = vshrl.u32 %v1036, 7
        %v1038 = vsub.s32 %v1035, %v1037
        %v1039 = vrot.slane %v1030, %v1038
        %v1041 = vunpack.c.l.s4 1966171168
        %v1042 = vunpack.c.0.s8 %v1041
        %v1043 = vlaneseq
        %v1044 = vshrl.u32 %v1043, 7
        %v1045 = vsub.s32 %v1042, %v1044
        %v1046 = vrot.slane %v1032, %v1045
        %v1047 = vcombine.high %v1039, %v1039
        %v1048 = vcombine.high %v1046, %v1046
        %v1050 = vunpack.c.l.s4 1966171168
        %v1051 = vunpack.c.0.s8 %v1050
        %v1052 = vlaneseq
        %v1053 = vshrl.u32 %v1052, 7
        %v1054 = vsub.s32 %v1051, %v1053
        %v1055 = vrot.slane %v1039, %v1054
        %v1057 = vunpack.c.l.s4 1966171168
        %v1058 = vunpack.c.0.s8 %v1057
        %v1059 = vlaneseq
        %v1060 = vshrl.u32 %v1059, 7
        %v1061 = vsub.s32 %v1058, %v1060
        %v1062 = vrot.slane %v1046, %v1061
        %v1064 = vunpack.c.l.s4 1966171168
        %v1065 = vunpack.c.0.s8 %v1064
        %v1066 = vlaneseq
        %v1067 = vshrl.u32 %v1066, 7
        %v1068 = vsub.s32 %v1065, %v1067
        %v1069 = vrot.slane %v1047, %v1068
        %v1071 = vunpack.c.l.s4 1966171168
        %v1072 = vunpack.c.0.s8 %v1071
        %v1073 = vlaneseq
        %v1074 = vshrl.u32 %v1073, 7
        %v1075 = vsub.s32 %v1072, %v1074
        %v1076 = vrot.slane %v1048, %v1075
        %v1077 = vcombine.high %v1055, %v1055
        %v1078 = vcombine.high %v1062, %v1062
        %v1079 = vcombine.high %v1069, %v1069
        %v1080 = vcombine.high %v1076, %v1076
        %v1081 = vlaneseq
        %v1082 = vshrl.u32 %v1081, 7
        %v1083 = vsub.s32 0, %v1082
        %v1084 = vrot.slane %v1055, %v1083
        %v1085 = vlaneseq
        %v1086 = vshrl.u32 %v1085, 7
        %v1087 = vsub.s32 0, %v1086
        %v1088 = vrot.slane %v1069, %v1087
        %v1089 = vlaneseq
        %v1090 = vshrl.u32 %v1089, 7
        %v1091 = vsub.s32 0, %v1090
        %v1092 = vrot.slane %v1077, %v1091
        %v1093 = vlaneseq
        %v1094 = vshrl.u32 %v1093, 7
        %v1095 = vsub.s32 0, %v1094
        %v1096 = vrot.slane %v1079, %v1095
        %v1097 = vlaneseq
        %v1098 = vshrl.u32 %v1097, 7
        %v1099 = vsub.s32 0, %v1098
        %v1100 = vrot.slane %v1062, %v1099
        %v1101 = vlaneseq
        %v1102 = vshrl.u32 %v1101, 7
        %v1103 = vsub.s32 0, %v1102
        %v1104 = vrot.slane %v1076, %v1103
        %v1105 = vlaneseq
        %v1106 = vshrl.u32 %v1105, 7
        %v1107 = vsub.s32 0, %v1106
        %v1108 = vrot.slane %v1078, %v1107
        %v1109 = vlaneseq
        %v1110 = vshrl.u32 %v1109, 7
        %v1111 = vsub.s32 0, %v1110
        %v1112 = vrot.slane %v1080, %v1111
        %v1121 = vmul.f32 %v1084, %v670
        %v1122 = vmul.f32 %v1084, %v671
        %v1123 = vmul.f32 %v1084, %v672
        %v1124 = vmul.f32 %v1084, %v673
        %v1125 = vmul.f32 %v1088, %v674
        %v1126 = vmul.f32 %v1088, %v675
        %v1127 = vmul.f32 %v1088, %v676
        %v1128 = vmul.f32 %v1088, %v677
        %v1129 = vmul.f32 %v1092, %v678
        %v1130 = vmul.f32 %v1092, %v679
        %v1131 = vmul.f32 %v1092, %v680
        %v1132 = vmul.f32 %v1092, %v681
        %v1133 = vmul.f32 %v1096, %v682
        %v1134 = vmul.f32 %v1096, %v683
        %v1135 = vmul.f32 %v1096, %v684
        %v1136 = vmul.f32 %v1096, %v685
        %v1137 = vmul.f32 %v1100, %v686
        %v1138 = vmul.f32 %v1100, %v687
        %v1139 = vmul.f32 %v1100, %v688
        %v1140 = vmul.f32 %v1100, %v689
        %v1141 = vmul.f32 %v1104, %v690
        %v1142 = vmul.f32 %v1104, %v691
        %v1143 = vmul.f32 %v1104, %v692
        %v1144 = vmul.f32 %v1104, %v693
        %v1145 = vmul.f32 %v1108, %v694
        %v1146 = vmul.f32 %v1108, %v695
        %v1147 = vmul.f32 %v1108, %v696
        %v1148 = vmul.f32 %v1108, %v697
        %v1149 = vmul.f32 %v1112, %v698
        %v1150 = vmul.f32 %v1112, %v699
        %v1151 = vmul.f32 %v1112, %v700
        %v1152 = vmul.f32 %v1112, %v701
        %1153 = vadd.xlane.f32.xlu0 %v1121
        %v1154 = vpop.xlane.xlu0 %1153
        %1155 = vadd.xlane.f32.xlu0 %v1122
        %v1156 = vpop.xlane.xlu0 %1155
        %1157 = vadd.xlane.f32.xlu0 %v1123
        %v1158 = vpop.xlane.xlu0 %1157
        %1159 = vadd.xlane.f32.xlu0 %v1124
        %v1160 = vpop.xlane.xlu0 %1159
        %1161 = vadd.xlane.f32.xlu0 %v1125
        %v1162 = vpop.xlane.xlu0 %1161
        %1163 = vadd.xlane.f32.xlu0 %v1126
        %v1164 = vpop.xlane.xlu0 %1163
        %1165 = vadd.xlane.f32.xlu0 %v1127
        %v1166 = vpop.xlane.xlu0 %1165
        %1167 = vadd.xlane.f32.xlu0 %v1128
        %v1168 = vpop.xlane.xlu0 %1167
        %1169 = vadd.xlane.f32.xlu0 %v1129
        %v1170 = vpop.xlane.xlu0 %1169
        %1171 = vadd.xlane.f32.xlu0 %v1130
        %v1172 = vpop.xlane.xlu0 %1171
        %1173 = vadd.xlane.f32.xlu0 %v1131
        %v1174 = vpop.xlane.xlu0 %1173
        %1175 = vadd.xlane.f32.xlu0 %v1132
        %v1176 = vpop.xlane.xlu0 %1175
        %1177 = vadd.xlane.f32.xlu0 %v1133
        %v1178 = vpop.xlane.xlu0 %1177
        %1179 = vadd.xlane.f32.xlu0 %v1134
        %v1180 = vpop.xlane.xlu0 %1179
        %1181 = vadd.xlane.f32.xlu0 %v1135
        %v1182 = vpop.xlane.xlu0 %1181
        %1183 = vadd.xlane.f32.xlu0 %v1136
        %v1184 = vpop.xlane.xlu0 %1183
        %1185 = vadd.xlane.f32.xlu0 %v1137
        %v1186 = vpop.xlane.xlu0 %1185
        %1187 = vadd.xlane.f32.xlu0 %v1138
        %v1188 = vpop.xlane.xlu0 %1187
        %1189 = vadd.xlane.f32.xlu0 %v1139
        %v1190 = vpop.xlane.xlu0 %1189
        %1191 = vadd.xlane.f32.xlu0 %v1140
        %v1192 = vpop.xlane.xlu0 %1191
        %1193 = vadd.xlane.f32.xlu0 %v1141
        %v1194 = vpop.xlane.xlu0 %1193
        %1195 = vadd.xlane.f32.xlu0 %v1142
        %v1196 = vpop.xlane.xlu0 %1195
        %1197 = vadd.xlane.f32.xlu0 %v1143
        %v1198 = vpop.xlane.xlu0 %1197
        %1199 = vadd.xlane.f32.xlu0 %v1144
        %v1200 = vpop.xlane.xlu0 %1199
        %1201 = vadd.xlane.f32.xlu0 %v1145
        %v1202 = vpop.xlane.xlu0 %1201
        %1203 = vadd.xlane.f32.xlu0 %v1146
        %v1204 = vpop.xlane.xlu0 %1203
        %1205 = vadd.xlane.f32.xlu0 %v1147
        %v1206 = vpop.xlane.xlu0 %1205
        %1207 = vadd.xlane.f32.xlu0 %v1148
        %v1208 = vpop.xlane.xlu0 %1207
        %1209 = vadd.xlane.f32.xlu0 %v1149
        %v1210 = vpop.xlane.xlu0 %1209
        %1211 = vadd.xlane.f32.xlu0 %v1150
        %v1212 = vpop.xlane.xlu0 %1211
        %1213 = vadd.xlane.f32.xlu0 %v1151
        %v1214 = vpop.xlane.xlu0 %1213
        %1215 = vadd.xlane.f32.xlu0 %v1152
        %v1216 = vpop.xlane.xlu0 %1215
        %v1217 = vld [vmem:[#allocation13] sm:$0xff]
        %v1218 = vld [vmem:[#allocation13 + $0x8] sm:$0xff]
        %v1219 = vld [vmem:[#allocation13 + $0x10] sm:$0xff]
        %v1220 = vld [vmem:[#allocation13 + $0x18] sm:$0xff]
        %v1221 = vld [vmem:[#allocation13 + $0x20] sm:$0xff]
        %v1222 = vld [vmem:[#allocation13 + $0x28] sm:$0xff]
        %v1223 = vld [vmem:[#allocation13 + $0x30] sm:$0xff]
        %v1224 = vld [vmem:[#allocation13 + $0x38] sm:$0xff]
        %v1225 = vld [vmem:[#allocation13 + $0x40] sm:$0xff]
        %v1226 = vld [vmem:[#allocation13 + $0x48] sm:$0xff]
        %v1227 = vld [vmem:[#allocation13 + $0x50] sm:$0xff]
        %v1228 = vld [vmem:[#allocation13 + $0x58] sm:$0xff]
        %v1229 = vld [vmem:[#allocation13 + $0x60] sm:$0xff]
        %v1230 = vld [vmem:[#allocation13 + $0x68] sm:$0xff]
        %v1231 = vld [vmem:[#allocation13 + $0x70] sm:$0xff]
        %v1232 = vld [vmem:[#allocation13 + $0x78] sm:$0xff]
        %v1233 = vld [vmem:[#allocation13 + $0x80] sm:$0xff]
        %v1234 = vld [vmem:[#allocation13 + $0x88] sm:$0xff]
        %v1235 = vld [vmem:[#allocation13 + $0x90] sm:$0xff]
        %v1236 = vld [vmem:[#allocation13 + $0x98] sm:$0xff]
        %v1269 = vlaneseq
        %v1270 = vand.u32 %v1269, 127
        %v1271 = vlaneseq
        %v1272 = vshrl.u32 %v1271, 7
        %v1273 = vsub.s32 %v1270, %v1272
        %v1274 = vrot.slane %v1154, %v1273
        %v1275 = vadd.s32 %v1270, 4294967288
        %v1276 = vlaneseq
        %v1277 = vshrl.u32 %v1276, 7
        %v1278 = vsub.s32 %v1275, %v1277
        %v1279 = vrot.slane %v1156, %v1278
        %vm1280 = vcmask 130112
        %v1281 = vsel %vm1280, %v1279, %v1274
        %v1282 = vadd.s32 %v1270, 4294967280
        %v1283 = vlaneseq
        %v1284 = vshrl.u32 %v1283, 7
        %v1285 = vsub.s32 %v1282, %v1284
        %v1286 = vrot.slane %v1158, %v1285
        %vm1287 = vcmask 195712
        %v1288 = vsel %vm1287, %v1286, %v1281
        %v1289 = vadd.s32 %v1270, 4294967272
        %v1290 = vlaneseq
        %v1291 = vshrl.u32 %v1290, 7
        %v1292 = vsub.s32 %v1289, %v1291
        %v1293 = vrot.slane %v1160, %v1292
        %vm1294 = vcmask 261312
        %v1295 = vsel %vm1294, %v1293, %v1288
        %v1296 = vlaneseq
        %v1297 = vshrl.u32 %v1296, 7
        %v1298 = vsub.s32 %v1270, %v1297
        %v1299 = vrot.slane %v1162, %v1298
        %v1300 = vlaneseq
        %v1301 = vshrl.u32 %v1300, 7
        %v1302 = vsub.s32 %v1275, %v1301
        %v1303 = vrot.slane %v1164, %v1302
        %v1304 = vsel %vm1280, %v1303, %v1299
        %v1305 = vlaneseq
        %v1306 = vshrl.u32 %v1305, 7
        %v1307 = vsub.s32 %v1282, %v1306
        %v1308 = vrot.slane %v1166, %v1307
        %v1309 = vsel %vm1287, %v1308, %v1304
        %v1310 = vlaneseq
        %v1311 = vshrl.u32 %v1310, 7
        %v1312 = vsub.s32 %v1289, %v1311
        %v1313 = vrot.slane %v1168, %v1312
        %v1314 = vsel %vm1294, %v1313, %v1309
        %v1315 = vlaneseq
        %v1316 = vshrl.u32 %v1315, 7
        %v1317 = vsub.s32 %v1270, %v1316
        %v1318 = vrot.slane %v1170, %v1317
        %v1319 = vlaneseq
        %v1320 = vshrl.u32 %v1319, 7
        %v1321 = vsub.s32 %v1275, %v1320
        %v1322 = vrot.slane %v1172, %v1321
        %v1323 = vsel %vm1280, %v1322, %v1318
        %v1324 = vlaneseq
        %v1325 = vshrl.u32 %v1324, 7
        %v1326 = vsub.s32 %v1282, %v1325
        %v1327 = vrot.slane %v1174, %v1326
        %v1328 = vsel %vm1287, %v1327, %v1323
        %v1329 = vlaneseq
        %v1330 = vshrl.u32 %v1329, 7
        %v1331 = vsub.s32 %v1289, %v1330
        %v1332 = vrot.slane %v1176, %v1331
        %v1333 = vsel %vm1294, %v1332, %v1328
        %v1334 = vlaneseq
        %v1335 = vshrl.u32 %v1334, 7
        %v1336 = vsub.s32 %v1270, %v1335
        %v1337 = vrot.slane %v1178, %v1336
        %v1338 = vlaneseq
        %v1339 = vshrl.u32 %v1338, 7
        %v1340 = vsub.s32 %v1275, %v1339
        %v1341 = vrot.slane %v1180, %v1340
        %v1342 = vsel %vm1280, %v1341, %v1337
        %v1343 = vlaneseq
        %v1344 = vshrl.u32 %v1343, 7
        %v1345 = vsub.s32 %v1282, %v1344
        %v1346 = vrot.slane %v1182, %v1345
        %v1347 = vsel %vm1287, %v1346, %v1342
        %v1348 = vlaneseq
        %v1349 = vshrl.u32 %v1348, 7
        %v1350 = vsub.s32 %v1289, %v1349
        %v1351 = vrot.slane %v1184, %v1350
        %v1352 = vsel %vm1294, %v1351, %v1347
        %v1353 = vlaneseq
        %v1354 = vshrl.u32 %v1353, 7
        %v1355 = vsub.s32 %v1270, %v1354
        %v1356 = vrot.slane %v1186, %v1355
        %v1357 = vlaneseq
        %v1358 = vshrl.u32 %v1357, 7
        %v1359 = vsub.s32 %v1275, %v1358
        %v1360 = vrot.slane %v1188, %v1359
        %v1361 = vsel %vm1280, %v1360, %v1356
        %v1362 = vlaneseq
        %v1363 = vshrl.u32 %v1362, 7
        %v1364 = vsub.s32 %v1282, %v1363
        %v1365 = vrot.slane %v1190, %v1364
        %v1366 = vsel %vm1287, %v1365, %v1361
        %v1367 = vlaneseq
        %v1368 = vshrl.u32 %v1367, 7
        %v1369 = vsub.s32 %v1289, %v1368
        %v1370 = vrot.slane %v1192, %v1369
        %v1371 = vsel %vm1294, %v1370, %v1366
        %v1372 = vlaneseq
        %v1373 = vshrl.u32 %v1372, 7
        %v1374 = vsub.s32 %v1270, %v1373
        %v1375 = vrot.slane %v1194, %v1374
        %v1376 = vlaneseq
        %v1377 = vshrl.u32 %v1376, 7
        %v1378 = vsub.s32 %v1275, %v1377
        %v1379 = vrot.slane %v1196, %v1378
        %v1380 = vsel %vm1280, %v1379, %v1375
        %v1381 = vlaneseq
        %v1382 = vshrl.u32 %v1381, 7
        %v1383 = vsub.s32 %v1282, %v1382
        %v1384 = vrot.slane %v1198, %v1383
        %v1385 = vsel %vm1287, %v1384, %v1380
        %v1386 = vlaneseq
        %v1387 = vshrl.u32 %v1386, 7
        %v1388 = vsub.s32 %v1289, %v1387
        %v1389 = vrot.slane %v1200, %v1388
        %v1390 = vsel %vm1294, %v1389, %v1385
        %v1391 = vlaneseq
        %v1392 = vshrl.u32 %v1391, 7
        %v1393 = vsub.s32 %v1270, %v1392
        %v1394 = vrot.slane %v1202, %v1393
        %v1395 = vlaneseq
        %v1396 = vshrl.u32 %v1395, 7
        %v1397 = vsub.s32 %v1275, %v1396
        %v1398 = vrot.slane %v1204, %v1397
        %v1399 = vsel %vm1280, %v1398, %v1394
        %v1400 = vlaneseq
        %v1401 = vshrl.u32 %v1400, 7
        %v1402 = vsub.s32 %v1282, %v1401
        %v1403 = vrot.slane %v1206, %v1402
        %v1404 = vsel %vm1287, %v1403, %v1399
        %v1405 = vlaneseq
        %v1406 = vshrl.u32 %v1405, 7
        %v1407 = vsub.s32 %v1289, %v1406
        %v1408 = vrot.slane %v1208, %v1407
        %v1409 = vsel %vm1294, %v1408, %v1404
        %v1410 = vlaneseq
        %v1411 = vshrl.u32 %v1410, 7
        %v1412 = vsub.s32 %v1270, %v1411
        %v1413 = vrot.slane %v1210, %v1412
        %v1414 = vlaneseq
        %v1415 = vshrl.u32 %v1414, 7
        %v1416 = vsub.s32 %v1275, %v1415
        %v1417 = vrot.slane %v1212, %v1416
        %v1418 = vsel %vm1280, %v1417, %v1413
        %v1419 = vlaneseq
        %v1420 = vshrl.u32 %v1419, 7
        %v1421 = vsub.s32 %v1282, %v1420
        %v1422 = vrot.slane %v1214, %v1421
        %v1423 = vsel %vm1287, %v1422, %v1418
        %v1424 = vlaneseq
        %v1425 = vshrl.u32 %v1424, 7
        %v1426 = vsub.s32 %v1289, %v1425
        %v1427 = vrot.slane %v1216, %v1426
        %v1428 = vsel %vm1294, %v1427, %v1423
        %vm1429 = vcmask 1041409
        %v1430 = vsel %vm1429, %v1314, %v1295
        %vm1431 = vcmask 1042434
        %v1432 = vsel %vm1431, %v1333, %v1430
        %vm1433 = vcmask 1043459
        %v1434 = vsel %vm1433, %v1352, %v1432
        %vm1435 = vcmask 1044484
        %v1436 = vsel %vm1435, %v1371, %v1434
        %vm1437 = vcmask 1045509
        %v1438 = vsel %vm1437, %v1390, %v1436
        %vm1439 = vcmask 1046534
        %v1440 = vsel %vm1439, %v1409, %v1438
        %vm1441 = vcmask 1047559
        %v1442 = vsel %vm1441, %v1428, %v1440
        %vm1443 = vcmask 261120
        %v1444 = vsel %vm1443, %v1442, 0
        %1446 = vmatprep.subr.mxu0 0.0
        %1447 = vmatpush1.msra.mxu0 0.0
        %1448 = vmatprep.subr.mxu0 0.0
        %1449 = vmatpush1.msra.mxu0 0.0
        %1450 = vmatprep.subr.mxu0 0.0
        %1451 = vmatpush1.msra.mxu0 0.0
        %1452 = vmatprep.subr.mxu0 0.0
        %1453 = vmatpush1.msra.mxu0 0.0
        %1454 = vmatprep.subr.mxu0 0.0
        %1455 = vmatpush1.msra.mxu0 0.0
        %1456 = vmatprep.subr.mxu0 0.0
        %1457 = vmatpush1.msra.mxu0 0.0
        %1458 = vmatprep.subr.mxu0 0.0
        %1459 = vmatpush1.msra.mxu0 0.0
        %1460 = vmatprep.subr.mxu0 0.0
        %1461 = vmatpush1.msra.mxu0 0.0
        %1462 = vmatprep.subr.mxu0 0.0
        %1463 = vmatpush1.msra.mxu0 0.0
        %1464 = vmatprep.subr.mxu0 0.0
        %1465 = vmatpush1.msra.mxu0 0.0
        %1466 = vmatprep.subr.mxu0 0.0
        %1467 = vmatpush1.msra.mxu0 0.0
        %1468 = vmatprep.subr.mxu0 0.0
        %1469 = vmatpush1.msra.mxu0 0.0
        %1470 = vmatprep.subr.mxu0 %v1233
        %1471 = vmatpush1.msra.mxu0 %v1232
        %1472 = vmatprep.subr.mxu0 %v1228
        %1473 = vmatpush1.msra.mxu0 %v1227
        %1474 = vmatprep.subr.mxu0 %v1223
        %1475 = vmatpush1.msra.mxu0 %v1222
        %1476 = vmatprep.subr.mxu0 %v1218
        %1477 = vmatpush1.msra.mxu0 %v1217
        %1478 = vmatprep.subr.mxu0 0.0
        %1479 = vmatpush2.msra.mxu0 0.0
        %1480 = vmatprep.subr.mxu0 0.0
        %1481 = vmatpush2.msra.mxu0 0.0
        %1482 = vmatprep.subr.mxu0 0.0
        %1483 = vmatpush2.msra.mxu0 0.0
        %1484 = vmatprep.subr.mxu0 0.0
        %1485 = vmatpush2.msra.mxu0 0.0
        %1486 = vmatprep.subr.mxu0 0.0
        %1487 = vmatpush2.msra.mxu0 0.0
        %1488 = vmatprep.subr.mxu0 0.0
        %1489 = vmatpush2.msra.mxu0 0.0
        %1490 = vmatprep.subr.mxu0 0.0
        %1491 = vmatpush2.msra.mxu0 0.0
        %1492 = vmatprep.subr.mxu0 0.0
        %1493 = vmatpush2.msra.mxu0 0.0
        %1494 = vmatprep.subr.mxu0 0.0
        %1495 = vmatpush2.msra.mxu0 0.0
        %1496 = vmatprep.subr.mxu0 0.0
        %1497 = vmatpush2.msra.mxu0 0.0
        %1498 = vmatprep.subr.mxu0 0.0
        %1499 = vmatpush2.msra.mxu0 0.0
        %1500 = vmatprep.subr.mxu0 0.0
        %1501 = vmatpush2.msra.mxu0 0.0
        %1502 = vmatprep.subr.mxu0 0.0
        %1503 = vmatpush2.msra.mxu0 0.0
        %1504 = vmatprep.subr.mxu0 0.0
        %1505 = vmatpush2.msra.mxu0 0.0
        %1506 = vmatprep.subr.mxu0 0.0
        %1507 = vmatpush2.msra.mxu0 0.0
        %1508 = vmatprep.subr.mxu0 0.0
        %1509 = vmatpush2.msra.mxu0 0.0
        %1510 = vmatprep.mubr.f32.mxu0 0.0
        %1511 = vmatmul.mubr.f32.gmra.mxu0 %v1444
        %v1512 = vpop.f32.mrf.mxu0
        %v1513 = vadd.f32 0.0, %v1512
        %v1514 = vpop.f32.mrf.mxu0
        %v1515 = vadd.f32 0.0, %v1514
        %1516 = vdwg.mxu0
        %1517 = vmatprep.subr.mxu0 0.0
        %1518 = vmatpush1.msra.mxu0 0.0
        %1519 = vmatprep.subr.mxu0 0.0
        %1520 = vmatpush1.msra.mxu0 0.0
        %1521 = vmatprep.subr.mxu0 0.0
        %1522 = vmatpush1.msra.mxu0 0.0
        %1523 = vmatprep.subr.mxu0 0.0
        %1524 = vmatpush1.msra.mxu0 0.0
        %1525 = vmatprep.subr.mxu0 0.0
        %1526 = vmatpush1.msra.mxu0 0.0
        %1527 = vmatprep.subr.mxu0 0.0
        %1528 = vmatpush1.msra.mxu0 0.0
        %1529 = vmatprep.subr.mxu0 0.0
        %1530 = vmatpush1.msra.mxu0 0.0
        %1531 = vmatprep.subr.mxu0 0.0
        %1532 = vmatpush1.msra.mxu0 0.0
        %1533 = vmatprep.subr.mxu0 0.0
        %1534 = vmatpush1.msra.mxu0 0.0
        %1535 = vmatprep.subr.mxu0 0.0
        %1536 = vmatpush1.msra.mxu0 0.0
        %1537 = vmatprep.subr.mxu0 0.0
        %1538 = vmatpush1.msra.mxu0 0.0
        %1539 = vmatprep.subr.mxu0 0.0
        %1540 = vmatpush1.msra.mxu0 0.0
        %1541 = vmatprep.subr.mxu0 %v1235
        %1542 = vmatpush1.msra.mxu0 %v1234
        %1543 = vmatprep.subr.mxu0 %v1230
        %1544 = vmatpush1.msra.mxu0 %v1229
        %1545 = vmatprep.subr.mxu0 %v1225
        %1546 = vmatpush1.msra.mxu0 %v1224
        %1547 = vmatprep.subr.mxu0 %v1220
        %1548 = vmatpush1.msra.mxu0 %v1219
        %1549 = vmatprep.subr.mxu0 0.0
        %1550 = vmatpush2.msra.mxu0 0.0
        %1551 = vmatprep.subr.mxu0 0.0
        %1552 = vmatpush2.msra.mxu0 0.0
        %1553 = vmatprep.subr.mxu0 0.0
        %1554 = vmatpush2.msra.mxu0 0.0
        %1555 = vmatprep.subr.mxu0 0.0
        %1556 = vmatpush2.msra.mxu0 0.0
        %1557 = vmatprep.subr.mxu0 0.0
        %1558 = vmatpush2.msra.mxu0 0.0
        %1559 = vmatprep.subr.mxu0 0.0
        %1560 = vmatpush2.msra.mxu0 0.0
        %1561 = vmatprep.subr.mxu0 0.0
        %1562 = vmatpush2.msra.mxu0 0.0
        %1563 = vmatprep.subr.mxu0 0.0
        %1564 = vmatpush2.msra.mxu0 0.0
        %1565 = vmatprep.subr.mxu0 0.0
        %1566 = vmatpush2.msra.mxu0 0.0
        %1567 = vmatprep.subr.mxu0 0.0
        %1568 = vmatpush2.msra.mxu0 0.0
        %1569 = vmatprep.subr.mxu0 0.0
        %1570 = vmatpush2.msra.mxu0 0.0
        %1571 = vmatprep.subr.mxu0 0.0
        %1572 = vmatpush2.msra.mxu0 0.0
        %1573 = vmatprep.subr.mxu0 0.0
        %1574 = vmatpush2.msra.mxu0 0.0
        %1575 = vmatprep.subr.mxu0 0.0
        %1576 = vmatpush2.msra.mxu0 0.0
        %1577 = vmatprep.subr.mxu0 0.0
        %1578 = vmatpush2.msra.mxu0 0.0
        %1579 = vmatprep.subr.mxu0 0.0
        %1580 = vmatpush2.msra.mxu0 0.0
        %1581 = vmatprep.mubr.f32.mxu0 0.0
        %1582 = vmatmul.mubr.f32.gmra.mxu0 %v1444
        %v1583 = vpop.f32.mrf.mxu0
        %v1584 = vadd.f32 0.0, %v1583
        %v1585 = vpop.f32.mrf.mxu0
        %v1586 = vadd.f32 0.0, %v1585
        %1587 = vdwg.mxu0
        %1588 = vmatprep.subr.mxu0 0.0
        %1589 = vmatpush1.msra.mxu0 0.0
        %1590 = vmatprep.subr.mxu0 0.0
        %1591 = vmatpush1.msra.mxu0 0.0
        %1592 = vmatprep.subr.mxu0 0.0
        %1593 = vmatpush1.msra.mxu0 0.0
        %1594 = vmatprep.subr.mxu0 0.0
        %1595 = vmatpush1.msra.mxu0 0.0
        %1596 = vmatprep.subr.mxu0 0.0
        %1597 = vmatpush1.msra.mxu0 0.0
        %1598 = vmatprep.subr.mxu0 0.0
        %1599 = vmatpush1.msra.mxu0 0.0
        %1600 = vmatprep.subr.mxu0 0.0
        %1601 = vmatpush1.msra.mxu0 0.0
        %1602 = vmatprep.subr.mxu0 0.0
        %1603 = vmatpush1.msra.mxu0 0.0
        %1604 = vmatprep.subr.mxu0 0.0
        %1605 = vmatpush1.msra.mxu0 0.0
        %1606 = vmatprep.subr.mxu0 0.0
        %1607 = vmatpush1.msra.mxu0 0.0
        %1608 = vmatprep.subr.mxu0 0.0
        %1609 = vmatpush1.msra.mxu0 0.0
        %1610 = vmatprep.subr.mxu0 0.0
        %1611 = vmatpush1.msra.mxu0 0.0
        %1612 = vmatprep.subr.mxu0 0.0
        %1613 = vmatpush1.msra.mxu0 %v1236
        %1614 = vmatprep.subr.mxu0 0.0
        %1615 = vmatpush1.msra.mxu0 %v1231
        %1616 = vmatprep.subr.mxu0 0.0
        %1617 = vmatpush1.msra.mxu0 %v1226
        %1618 = vmatprep.subr.mxu0 0.0
        %1619 = vmatpush1.msra.mxu0 %v1221
        %1620 = vmatprep.subr.mxu0 0.0
        %1621 = vmatpush2.msra.mxu0 0.0
        %1622 = vmatprep.subr.mxu0 0.0
        %1623 = vmatpush2.msra.mxu0 0.0
        %1624 = vmatprep.subr.mxu0 0.0
        %1625 = vmatpush2.msra.mxu0 0.0
        %1626 = vmatprep.subr.mxu0 0.0
        %1627 = vmatpush2.msra.mxu0 0.0
        %1628 = vmatprep.subr.mxu0 0.0
        %1629 = vmatpush2.msra.mxu0 0.0
        %1630 = vmatprep.subr.mxu0 0.0
        %1631 = vmatpush2.msra.mxu0 0.0
        %1632 = vmatprep.subr.mxu0 0.0
        %1633 = vmatpush2.msra.mxu0 0.0
        %1634 = vmatprep.subr.mxu0 0.0
        %1635 = vmatpush2.msra.mxu0 0.0
        %1636 = vmatprep.subr.mxu0 0.0
        %1637 = vmatpush2.msra.mxu0 0.0
        %1638 = vmatprep.subr.mxu0 0.0
        %1639 = vmatpush2.msra.mxu0 0.0
        %1640 = vmatprep.subr.mxu0 0.0
        %1641 = vmatpush2.msra.mxu0 0.0
        %1642 = vmatprep.subr.mxu0 0.0
        %1643 = vmatpush2.msra.mxu0 0.0
        %1644 = vmatprep.subr.mxu0 0.0
        %1645 = vmatpush2.msra.mxu0 0.0
        %1646 = vmatprep.subr.mxu0 0.0
        %1647 = vmatpush2.msra.mxu0 0.0
        %1648 = vmatprep.subr.mxu0 0.0
        %1649 = vmatpush2.msra.mxu0 0.0
        %1650 = vmatprep.subr.mxu0 0.0
        %1651 = vmatpush2.msra.mxu0 0.0
        %1652 = vmatprep.mubr.f32.mxu0 0.0
        %1653 = vmatmul.mubr.f32.gmra.mxu0 %v1444
        %v1654 = vpop.f32.mrf.mxu0
        %v1655 = vadd.f32 0.0, %v1654
        %v1656 = vpop.f32.mrf.mxu0
        %1657 = vdwg.mxu0
        %v1658 = vld [vmem:[#allocation11] sm:$0xff]
        %v1659 = vld [vmem:[#allocation11 + $0x8] sm:$0xff]
        %v1660 = vld [vmem:[#allocation11 + $0x10] sm:$0xff]
        %v1661 = vld [vmem:[#allocation11 + $0x18] sm:$0xff]
        %v1662 = vld [vmem:[#allocation11 + $0x20] sm:$0xff]
        %v1663 = vld [vmem:[#allocation11 + $0x28] sm:$0xff]
        %v1664 = vld [vmem:[#allocation11 + $0x30] sm:$0xff]
        %v1665 = vld [vmem:[#allocation11 + $0x38] sm:$0xff]
        %v1666 = vld [vmem:[#allocation11 + $0x40] sm:$0xff]
        %v1667 = vld [vmem:[#allocation11 + $0x48] sm:$0xff]
        %v1668 = vld [vmem:[#allocation11 + $0x50] sm:$0xff]
        %v1669 = vld [vmem:[#allocation11 + $0x58] sm:$0xff]
        %v1670 = vld [vmem:[#allocation11 + $0x60] sm:$0xff]
        %v1671 = vld [vmem:[#allocation11 + $0x68] sm:$0xff]
        %v1672 = vld [vmem:[#allocation11 + $0x70] sm:$0xff]
        %v1673 = vld [vmem:[#allocation11 + $0x78] sm:$0xff]
        %v1675 = vsel %vm1443, %v702, 0
        %1677 = vmatprep.subr.mxu0 0.0
        %1678 = vmatpush1.msra.mxu0 0.0
        %1679 = vmatprep.subr.mxu0 0.0
        %1680 = vmatpush1.msra.mxu0 0.0
        %1681 = vmatprep.subr.mxu0 0.0
        %1682 = vmatpush1.msra.mxu0 0.0
        %1683 = vmatprep.subr.mxu0 0.0
        %1684 = vmatpush1.msra.mxu0 0.0
        %1685 = vmatprep.subr.mxu0 0.0
        %1686 = vmatpush1.msra.mxu0 0.0
        %1687 = vmatprep.subr.mxu0 0.0
        %1688 = vmatpush1.msra.mxu0 0.0
        %1689 = vmatprep.subr.mxu0 0.0
        %1690 = vmatpush1.msra.mxu0 0.0
        %1691 = vmatprep.subr.mxu0 0.0
        %1692 = vmatpush1.msra.mxu0 0.0
        %1693 = vmatprep.subr.mxu0 0.0
        %1694 = vmatpush1.msra.mxu0 0.0
        %1695 = vmatprep.subr.mxu0 0.0
        %1696 = vmatpush1.msra.mxu0 0.0
        %1697 = vmatprep.subr.mxu0 0.0
        %1698 = vmatpush1.msra.mxu0 0.0
        %1699 = vmatprep.subr.mxu0 0.0
        %1700 = vmatpush1.msra.mxu0 0.0
        %1701 = vmatprep.subr.mxu0 %v1671
        %1702 = vmatpush1.msra.mxu0 %v1670
        %1703 = vmatprep.subr.mxu0 %v1667
        %1704 = vmatpush1.msra.mxu0 %v1666
        %1705 = vmatprep.subr.mxu0 %v1663
        %1706 = vmatpush1.msra.mxu0 %v1662
        %1707 = vmatprep.subr.mxu0 %v1659
        %1708 = vmatpush1.msra.mxu0 %v1658
        %1709 = vmatprep.subr.mxu0 0.0
        %1710 = vmatpush2.msra.mxu0 0.0
        %1711 = vmatprep.subr.mxu0 0.0
        %1712 = vmatpush2.msra.mxu0 0.0
        %1713 = vmatprep.subr.mxu0 0.0
        %1714 = vmatpush2.msra.mxu0 0.0
        %1715 = vmatprep.subr.mxu0 0.0
        %1716 = vmatpush2.msra.mxu0 0.0
        %1717 = vmatprep.subr.mxu0 0.0
        %1718 = vmatpush2.msra.mxu0 0.0
        %1719 = vmatprep.subr.mxu0 0.0
        %1720 = vmatpush2.msra.mxu0 0.0
        %1721 = vmatprep.subr.mxu0 0.0
        %1722 = vmatpush2.msra.mxu0 0.0
        %1723 = vmatprep.subr.mxu0 0.0
        %1724 = vmatpush2.msra.mxu0 0.0
        %1725 = vmatprep.subr.mxu0 0.0
        %1726 = vmatpush2.msra.mxu0 0.0
        %1727 = vmatprep.subr.mxu0 0.0
        %1728 = vmatpush2.msra.mxu0 0.0
        %1729 = vmatprep.subr.mxu0 0.0
        %1730 = vmatpush2.msra.mxu0 0.0
        %1731 = vmatprep.subr.mxu0 0.0
        %1732 = vmatpush2.msra.mxu0 0.0
        %1733 = vmatprep.subr.mxu0 0.0
        %1734 = vmatpush2.msra.mxu0 0.0
        %1735 = vmatprep.subr.mxu0 0.0
        %1736 = vmatpush2.msra.mxu0 0.0
        %1737 = vmatprep.subr.mxu0 0.0
        %1738 = vmatpush2.msra.mxu0 0.0
        %1739 = vmatprep.subr.mxu0 0.0
        %1740 = vmatpush2.msra.mxu0 0.0
        %1741 = vmatprep.mubr.f32.mxu0 0.0
        %1742 = vmatmul.mubr.f32.gmra.mxu0 %v1675
        %v1743 = vpop.f32.mrf.mxu0
        %v1744 = vadd.f32 0.0, %v1743
        %v1745 = vpop.f32.mrf.mxu0
        %v1746 = vadd.f32 0.0, %v1745
        %1747 = vdwg.mxu0
        %1748 = vmatprep.subr.mxu0 0.0
        %1749 = vmatpush1.msra.mxu0 0.0
        %1750 = vmatprep.subr.mxu0 0.0
        %1751 = vmatpush1.msra.mxu0 0.0
        %1752 = vmatprep.subr.mxu0 0.0
        %1753 = vmatpush1.msra.mxu0 0.0
        %1754 = vmatprep.subr.mxu0 0.0
        %1755 = vmatpush1.msra.mxu0 0.0
        %1756 = vmatprep.subr.mxu0 0.0
        %1757 = vmatpush1.msra.mxu0 0.0
        %1758 = vmatprep.subr.mxu0 0.0
        %1759 = vmatpush1.msra.mxu0 0.0
        %1760 = vmatprep.subr.mxu0 0.0
        %1761 = vmatpush1.msra.mxu0 0.0
        %1762 = vmatprep.subr.mxu0 0.0
        %1763 = vmatpush1.msra.mxu0 0.0
        %1764 = vmatprep.subr.mxu0 0.0
        %1765 = vmatpush1.msra.mxu0 0.0
        %1766 = vmatprep.subr.mxu0 0.0
        %1767 = vmatpush1.msra.mxu0 0.0
        %1768 = vmatprep.subr.mxu0 0.0
        %1769 = vmatpush1.msra.mxu0 0.0
        %1770 = vmatprep.subr.mxu0 0.0
        %1771 = vmatpush1.msra.mxu0 0.0
        %1772 = vmatprep.subr.mxu0 %v1673
        %1773 = vmatpush1.msra.mxu0 %v1672
        %1774 = vmatprep.subr.mxu0 %v1669
        %1775 = vmatpush1.msra.mxu0 %v1668
        %1776 = vmatprep.subr.mxu0 %v1665
        %1777 = vmatpush1.msra.mxu0 %v1664
        %1778 = vmatprep.subr.mxu0 %v1661
        %1779 = vmatpush1.msra.mxu0 %v1660
        %1780 = vmatprep.subr.mxu0 0.0
        %1781 = vmatpush2.msra.mxu0 0.0
        %1782 = vmatprep.subr.mxu0 0.0
        %1783 = vmatpush2.msra.mxu0 0.0
        %1784 = vmatprep.subr.mxu0 0.0
        %1785 = vmatpush2.msra.mxu0 0.0
        %1786 = vmatprep.subr.mxu0 0.0
        %1787 = vmatpush2.msra.mxu0 0.0
        %1788 = vmatprep.subr.mxu0 0.0
        %1789 = vmatpush2.msra.mxu0 0.0
        %1790 = vmatprep.subr.mxu0 0.0
        %1791 = vmatpush2.msra.mxu0 0.0
        %1792 = vmatprep.subr.mxu0 0.0
        %1793 = vmatpush2.msra.mxu0 0.0
        %1794 = vmatprep.subr.mxu0 0.0
        %1795 = vmatpush2.msra.mxu0 0.0
        %1796 = vmatprep.subr.mxu0 0.0
        %1797 = vmatpush2.msra.mxu0 0.0
        %1798 = vmatprep.subr.mxu0 0.0
        %1799 = vmatpush2.msra.mxu0 0.0
        %1800 = vmatprep.subr.mxu0 0.0
        %1801 = vmatpush2.msra.mxu0 0.0
        %1802 = vmatprep.subr.mxu0 0.0
        %1803 = vmatpush2.msra.mxu0 0.0
        %1804 = vmatprep.subr.mxu0 0.0
        %1805 = vmatpush2.msra.mxu0 0.0
        %1806 = vmatprep.subr.mxu0 0.0
        %1807 = vmatpush2.msra.mxu0 0.0
        %1808 = vmatprep.subr.mxu0 0.0
        %1809 = vmatpush2.msra.mxu0 0.0
        %1810 = vmatprep.subr.mxu0 0.0
        %1811 = vmatpush2.msra.mxu0 0.0
        %1812 = vmatprep.mubr.f32.mxu0 0.0
        %1813 = vmatmul.mubr.f32.gmra.mxu0 %v1675
        %v1814 = vpop.f32.mrf.mxu0
        %v1815 = vadd.f32 0.0, %v1814
        %v1816 = vpop.f32.mrf.mxu0
        %v1817 = vadd.f32 0.0, %v1816
        %1818 = vdwg.mxu0
        %v1819 = vadd.f32 %v879, %v1513
        %v1820 = vadd.f32 %v948, %v1515
        %v1821 = vadd.f32 %v950, %v1584
        %v1822 = vadd.f32 %v1019, %v1586
        %v1823 = vadd.f32 %v1819, %v1744
        %v1824 = vadd.f32 %v1820, %v1746
        %v1825 = vadd.f32 %v1821, %v1815
        %v1826 = vadd.f32 %v1822, %v1817
        %v1827 = vxor.u32 %v1823, 2147483648
        %v1828 = vmul.f32 %v1827, 1.442695
        %v1829 = vpow.pop %v1828
        %v1830 = vadd.f32 %v1829, 1.0
        %v1831 = vrcp.pop %v1830
        %v1832 = vmul.f32 1.0, %v1831
        %v1833 = vxor.u32 %v1824, 2147483648
        %v1834 = vmul.f32 %v1833, 1.442695
        %v1835 = vpow.pop %v1834
        %v1836 = vadd.f32 %v1835, 1.0
        %v1837 = vrcp.pop %v1836
        %v1838 = vmul.f32 1.0, %v1837
        %v1839 = vtanh.pop %v1825
        %v1840 = vxor.u32 %v1826, 2147483648
        %v1841 = vmul.f32 %v1840, 1.442695
        %v1842 = vpow.pop %v1841
        %v1843 = vadd.f32 %v1842, 1.0
        %v1844 = vrcp.pop %v1843
        %v1845 = vmul.f32 1.0, %v1844
        %v1846 = vmul.f32 %v1838, %v669
        %v1847 = vmul.f32 %v1832, %v1839
        %v1848 = vadd.f32 %v1846, %v1847
        %v1849 = vtanh.pop %v1848
        %v1850 = vmul.f32 %v1845, %v1849
        %v1851 = vld [vmem:[#allocation14] sm:$0xff]
        %v1852 = vld [vmem:[#allocation14 + $0x8] sm:$0xff]
        %v1853 = vld [vmem:[#allocation14 + $0x10] sm:$0xff]
        %v1854 = vld [vmem:[#allocation14 + $0x18] sm:$0xff]
        %v1855 = vld [vmem:[#allocation14 + $0x20] sm:$0xff]
        %v1856 = vld [vmem:[#allocation14 + $0x28] sm:$0xff]
        %v1857 = vld [vmem:[#allocation14 + $0x30] sm:$0xff]
        %v1858 = vld [vmem:[#allocation14 + $0x38] sm:$0xff]
        %v1859 = vld [vmem:[#allocation14 + $0x40] sm:$0xff]
        %v1860 = vld [vmem:[#allocation14 + $0x48] sm:$0xff]
        %v1861 = vld [vmem:[#allocation14 + $0x50] sm:$0xff]
        %v1862 = vld [vmem:[#allocation14 + $0x58] sm:$0xff]
        %v1863 = vld [vmem:[#allocation14 + $0x60] sm:$0xff]
        %v1864 = vld [vmem:[#allocation14 + $0x68] sm:$0xff]
        %v1865 = vld [vmem:[#allocation14 + $0x70] sm:$0xff]
        %v1866 = vld [vmem:[#allocation14 + $0x78] sm:$0xff]
        %v1867 = vld [vmem:[#allocation14 + $0x80] sm:$0xff]
        %v1868 = vld [vmem:[#allocation14 + $0x88] sm:$0xff]
        %v1869 = vld [vmem:[#allocation14 + $0x90] sm:$0xff]
        %v1870 = vld [vmem:[#allocation14 + $0x98] sm:$0xff]
        %v1871 = vld [vmem:[#allocation14 + $0xa0] sm:$0xff]
        %v1872 = vld [vmem:[#allocation14 + $0xa8] sm:$0xff]
        %v1873 = vld [vmem:[#allocation14 + $0xb0] sm:$0xff]
        %v1874 = vld [vmem:[#allocation14 + $0xb8] sm:$0xff]
        %v1875 = vld [vmem:[#allocation14 + $0xc0] sm:$0xff]
        %v1876 = vld [vmem:[#allocation14 + $0xc8] sm:$0xff]
        %v1877 = vld [vmem:[#allocation14 + $0xd0] sm:$0xff]
        %v1878 = vld [vmem:[#allocation14 + $0xd8] sm:$0xff]
        %v1879 = vld [vmem:[#allocation14 + $0xe0] sm:$0xff]
        %v1880 = vld [vmem:[#allocation14 + $0xe8] sm:$0xff]
        %v1881 = vld [vmem:[#allocation14 + $0xf0] sm:$0xff]
        %v1882 = vld [vmem:[#allocation14 + $0xf8] sm:$0xff]
        %v1883 = vld [vmem:[#allocation14 + $0x100] sm:$0xff]
        %v1884 = vld [vmem:[#allocation14 + $0x108] sm:$0xff]
        %v1885 = vld [vmem:[#allocation14 + $0x110] sm:$0xff]
        %v1886 = vld [vmem:[#allocation14 + $0x118] sm:$0xff]
        %v1887 = vld [vmem:[#allocation14 + $0x120] sm:$0xff]
        %v1888 = vld [vmem:[#allocation14 + $0x128] sm:$0xff]
        %v1889 = vld [vmem:[#allocation14 + $0x130] sm:$0xff]
        %v1890 = vld [vmem:[#allocation14 + $0x138] sm:$0xff]
        %v1891 = vld [vmem:[#allocation14 + $0x140] sm:$0xff]
        %v1892 = vld [vmem:[#allocation14 + $0x148] sm:$0xff]
        %v1893 = vld [vmem:[#allocation14 + $0x150] sm:$0xff]
        %v1894 = vld [vmem:[#allocation14 + $0x158] sm:$0xff]
        %v1895 = vld [vmem:[#allocation14 + $0x160] sm:$0xff]
        %v1896 = vld [vmem:[#allocation14 + $0x168] sm:$0xff]
        %v1897 = vld [vmem:[#allocation14 + $0x170] sm:$0xff]
        %v1898 = vld [vmem:[#allocation14 + $0x178] sm:$0xff]
        %v1899 = vld [vmem:[#allocation14 + $0x180] sm:$0xff]
        %v1900 = vld [vmem:[#allocation14 + $0x188] sm:$0xff]
        %v1901 = vld [vmem:[#allocation14 + $0x190] sm:$0xff]
        %v1902 = vld [vmem:[#allocation14 + $0x198] sm:$0xff]
        %v1903 = vld [vmem:[#allocation14 + $0x1a0] sm:$0xff]
        %v1904 = vld [vmem:[#allocation14 + $0x1a8] sm:$0xff]
        %v1905 = vld [vmem:[#allocation14 + $0x1b0] sm:$0xff]
        %v1906 = vld [vmem:[#allocation14 + $0x1b8] sm:$0xff]
        %v1907 = vld [vmem:[#allocation14 + $0x1c0] sm:$0xff]
        %v1908 = vld [vmem:[#allocation14 + $0x1c8] sm:$0xff]
        %v1909 = vld [vmem:[#allocation14 + $0x1d0] sm:$0xff]
        %v1910 = vld [vmem:[#allocation14 + $0x1d8] sm:$0xff]
        %v1911 = vld [vmem:[#allocation14 + $0x1e0] sm:$0xff]
        %v1912 = vld [vmem:[#allocation14 + $0x1e8] sm:$0xff]
        %v1913 = vld [vmem:[#allocation14 + $0x1f0] sm:$0xff]
        %v1914 = vld [vmem:[#allocation14 + $0x1f8] sm:$0xff]
        %v1915 = vld [vmem:[%s9] sm:$0xf]
        %v1917 = vlaneseq
        %v1918 = vshrl.u32 %v1917, 7
        %v1919 = vsub.s32 0, %v1918
        %v1920 = vrot.slane %v1915, %v1919
        %v1921 = vlaneseq
        %v1922 = vshrl.u32 %v1921, 7
        %v1923 = vsub.s32 1, %v1922
        %v1924 = vrot.slane %v1915, %v1923
        %v1925 = vlaneseq
        %v1926 = vshrl.u32 %v1925, 7
        %v1927 = vsub.s32 2, %v1926
        %v1928 = vrot.slane %v1915, %v1927
        %v1929 = vlaneseq
        %v1930 = vshrl.u32 %v1929, 7
        %v1931 = vsub.s32 3, %v1930
        %v1932 = vrot.slane %v1915, %v1931
        %1937 = vmatprep.subr.mxu0 %v1912
        %1938 = vmatpush1.msra.mxu0 %v1911
        %1939 = vmatprep.subr.mxu0 %v1908
        %1940 = vmatpush1.msra.mxu0 %v1907
        %1941 = vmatprep.subr.mxu0 %v1904
        %1942 = vmatpush1.msra.mxu0 %v1903
        %1943 = vmatprep.subr.mxu0 %v1900
        %1944 = vmatpush1.msra.mxu0 %v1899
        %1945 = vmatprep.subr.mxu0 %v1896
        %1946 = vmatpush1.msra.mxu0 %v1895
        %1947 = vmatprep.subr.mxu0 %v1892
        %1948 = vmatpush1.msra.mxu0 %v1891
        %1949 = vmatprep.subr.mxu0 %v1888
        %1950 = vmatpush1.msra.mxu0 %v1887
        %1951 = vmatprep.subr.mxu0 %v1884
        %1952 = vmatpush1.msra.mxu0 %v1883
        %1953 = vmatprep.subr.mxu0 %v1880
        %1954 = vmatpush1.msra.mxu0 %v1879
        %1955 = vmatprep.subr.mxu0 %v1876
        %1956 = vmatpush1.msra.mxu0 %v1875
        %1957 = vmatprep.subr.mxu0 %v1872
        %1958 = vmatpush1.msra.mxu0 %v1871
        %1959 = vmatprep.subr.mxu0 %v1868
        %1960 = vmatpush1.msra.mxu0 %v1867
        %1961 = vmatprep.subr.mxu0 %v1864
        %1962 = vmatpush1.msra.mxu0 %v1863
        %1963 = vmatprep.subr.mxu0 %v1860
        %1964 = vmatpush1.msra.mxu0 %v1859
        %1965 = vmatprep.subr.mxu0 %v1856
        %1966 = vmatpush1.msra.mxu0 %v1855
        %1967 = vmatprep.subr.mxu0 %v1852
        %1968 = vmatpush1.msra.mxu0 %v1851
        %1969 = vmatprep.subr.mxu0 0.0
        %1970 = vmatpush2.msra.mxu0 0.0
        %1971 = vmatprep.subr.mxu0 0.0
        %1972 = vmatpush2.msra.mxu0 0.0
        %1973 = vmatprep.subr.mxu0 0.0
        %1974 = vmatpush2.msra.mxu0 0.0
        %1975 = vmatprep.subr.mxu0 0.0
        %1976 = vmatpush2.msra.mxu0 0.0
        %1977 = vmatprep.subr.mxu0 0.0
        %1978 = vmatpush2.msra.mxu0 0.0
        %1979 = vmatprep.subr.mxu0 0.0
        %1980 = vmatpush2.msra.mxu0 0.0
        %1981 = vmatprep.subr.mxu0 0.0
        %1982 = vmatpush2.msra.mxu0 0.0
        %1983 = vmatprep.subr.mxu0 0.0
        %1984 = vmatpush2.msra.mxu0 0.0
        %1985 = vmatprep.subr.mxu0 0.0
        %1986 = vmatpush2.msra.mxu0 0.0
        %1987 = vmatprep.subr.mxu0 0.0
        %1988 = vmatpush2.msra.mxu0 0.0
        %1989 = vmatprep.subr.mxu0 0.0
        %1990 = vmatpush2.msra.mxu0 0.0
        %1991 = vmatprep.subr.mxu0 0.0
        %1992 = vmatpush2.msra.mxu0 0.0
        %1993 = vmatprep.subr.mxu0 0.0
        %1994 = vmatpush2.msra.mxu0 0.0
        %1995 = vmatprep.subr.mxu0 0.0
        %1996 = vmatpush2.msra.mxu0 0.0
        %1997 = vmatprep.subr.mxu0 0.0
        %1998 = vmatpush2.msra.mxu0 0.0
        %1999 = vmatprep.subr.mxu0 0.0
        %2000 = vmatpush2.msra.mxu0 0.0
        %2001 = vmatprep.mubr.f32.mxu0 0.0
        %2002 = vmatmul.mubr.f32.gmra.mxu0 %v1850
        %v2003 = vpop.f32.mrf.mxu0
        %v2004 = vadd.f32 %v1920, %v2003
        %v2005 = vpop.f32.mrf.mxu0
        %v2006 = vadd.f32 %v1924, %v2005
        %2007 = vdwg.mxu0
        %2008 = vmatprep.subr.mxu0 %v1914
        %2009 = vmatpush1.msra.mxu0 %v1913
        %2010 = vmatprep.subr.mxu0 %v1910
        %2011 = vmatpush1.msra.mxu0 %v1909
        %2012 = vmatprep.subr.mxu0 %v1906
        %2013 = vmatpush1.msra.mxu0 %v1905
        %2014 = vmatprep.subr.mxu0 %v1902
        %2015 = vmatpush1.msra.mxu0 %v1901
        %2016 = vmatprep.subr.mxu0 %v1898
        %2017 = vmatpush1.msra.mxu0 %v1897
        %2018 = vmatprep.subr.mxu0 %v1894
        %2019 = vmatpush1.msra.mxu0 %v1893
        %2020 = vmatprep.subr.mxu0 %v1890
        %2021 = vmatpush1.msra.mxu0 %v1889
        %2022 = vmatprep.subr.mxu0 %v1886
        %2023 = vmatpush1.msra.mxu0 %v1885
        %2024 = vmatprep.subr.mxu0 %v1882
        %2025 = vmatpush1.msra.mxu0 %v1881
        %2026 = vmatprep.subr.mxu0 %v1878
        %2027 = vmatpush1.msra.mxu0 %v1877
        %2028 = vmatprep.subr.mxu0 %v1874
        %2029 = vmatpush1.msra.mxu0 %v1873
        %2030 = vmatprep.subr.mxu0 %v1870
        %2031 = vmatpush1.msra.mxu0 %v1869
        %2032 = vmatprep.subr.mxu0 %v1866
        %2033 = vmatpush1.msra.mxu0 %v1865
        %2034 = vmatprep.subr.mxu0 %v1862
        %2035 = vmatpush1.msra.mxu0 %v1861
        %2036 = vmatprep.subr.mxu0 %v1858
        %2037 = vmatpush1.msra.mxu0 %v1857
        %2038 = vmatprep.subr.mxu0 %v1854
        %2039 = vmatpush1.msra.mxu0 %v1853
        %2040 = vmatprep.subr.mxu0 0.0
        %2041 = vmatpush2.msra.mxu0 0.0
        %2042 = vmatprep.subr.mxu0 0.0
        %2043 = vmatpush2.msra.mxu0 0.0
        %2044 = vmatprep.subr.mxu0 0.0
        %2045 = vmatpush2.msra.mxu0 0.0
        %2046 = vmatprep.subr.mxu0 0.0
        %2047 = vmatpush2.msra.mxu0 0.0
        %2048 = vmatprep.subr.mxu0 0.0
        %2049 = vmatpush2.msra.mxu0 0.0
        %2050 = vmatprep.subr.mxu0 0.0
        %2051 = vmatpush2.msra.mxu0 0.0
        %2052 = vmatprep.subr.mxu0 0.0
        %2053 = vmatpush2.msra.mxu0 0.0
        %2054 = vmatprep.subr.mxu0 0.0
        %2055 = vmatpush2.msra.mxu0 0.0
        %2056 = vmatprep.subr.mxu0 0.0
        %2057 = vmatpush2.msra.mxu0 0.0
        %2058 = vmatprep.subr.mxu0 0.0
        %2059 = vmatpush2.msra.mxu0 0.0
        %2060 = vmatprep.subr.mxu0 0.0
        %2061 = vmatpush2.msra.mxu0 0.0
        %2062 = vmatprep.subr.mxu0 0.0
        %2063 = vmatpush2.msra.mxu0 0.0
        %2064 = vmatprep.subr.mxu0 0.0
        %2065 = vmatpush2.msra.mxu0 0.0
        %2066 = vmatprep.subr.mxu0 0.0
        %2067 = vmatpush2.msra.mxu0 0.0
        %2068 = vmatprep.subr.mxu0 0.0
        %2069 = vmatpush2.msra.mxu0 0.0
        %2070 = vmatprep.subr.mxu0 0.0
        %2071 = vmatpush2.msra.mxu0 0.0
        %2072 = vmatprep.mubr.f32.mxu0 0.0
        %2073 = vmatmul.mubr.f32.gmra.mxu0 %v1850
        %v2074 = vpop.f32.mrf.mxu0
        %v2075 = vadd.f32 %v1928, %v2074
        %v2076 = vpop.f32.mrf.mxu0
        %v2077 = vadd.f32 %v1932, %v2076
        %2078 = vdwg.mxu0
        %2079 = vmax.xlane.f32.xlu0 %v2004
        %v2080 = vpop.xlane.xlu0 %2079
        %v2081 = vsub.f32 %v2004, %v2080
        %v2082 = vmul.f32 %v2081, 1.442695
        %v2083 = vpow.pop %v2082
        %2084 = vadd.xlane.f32.xlu0 %v2083
        %v2085 = vpop.xlane.xlu0 %2084
        %v2086 = vrcp.pop %v2085
        %v2087 = vmul.f32 %v2083, %v2086
        %v2088 = vxor.u32 %v2006, 2147483648
        %v2089 = vmul.f32 %v2088, 1.442695
        %v2090 = vpow.pop %v2089
        %v2091 = vadd.f32 %v2090, 1.0
        %v2092 = vrcp.pop %v2091
        %v2093 = vmul.f32 1.0, %v2092
        %v2094 = vtanh.pop %v2075
        %v2095 = vadd.f32 %v2077, %v1655
        %v2097 = vcombine.high %v2087, %v2087
        %v2099 = vunpack.c.l.s4 1966171168
        %v2100 = vunpack.c.0.s8 %v2099
        %v2101 = vlaneseq
        %v2102 = vshrl.u32 %v2101, 7
        %v2103 = vsub.s32 %v2100, %v2102
        %v2104 = vrot.slane %v2087, %v2103
        %v2106 = vunpack.c.l.s4 1966171168
        %v2107 = vunpack.c.0.s8 %v2106
        %v2108 = vlaneseq
        %v2109 = vshrl.u32 %v2108, 7
        %v2110 = vsub.s32 %v2107, %v2109
        %v2111 = vrot.slane %v2097, %v2110
        %v2112 = vcombine.high %v2104, %v2104
        %v2113 = vcombine.high %v2111, %v2111
        %v2115 = vunpack.c.l.s4 1966171168
        %v2116 = vunpack.c.0.s8 %v2115
        %v2117 = vlaneseq
        %v2118 = vshrl.u32 %v2117, 7
        %v2119 = vsub.s32 %v2116, %v2118
        %v2120 = vrot.slane %v2104, %v2119
        %v2122 = vunpack.c.l.s4 1966171168
        %v2123 = vunpack.c.0.s8 %v2122
        %v2124 = vlaneseq
        %v2125 = vshrl.u32 %v2124, 7
        %v2126 = vsub.s32 %v2123, %v2125
        %v2127 = vrot.slane %v2111, %v2126
        %v2129 = vunpack.c.l.s4 1966171168
        %v2130 = vunpack.c.0.s8 %v2129
        %v2131 = vlaneseq
        %v2132 = vshrl.u32 %v2131, 7
        %v2133 = vsub.s32 %v2130, %v2132
        %v2134 = vrot.slane %v2112, %v2133
        %v2136 = vunpack.c.l.s4 1966171168
        %v2137 = vunpack.c.0.s8 %v2136
        %v2138 = vlaneseq
        %v2139 = vshrl.u32 %v2138, 7
        %v2140 = vsub.s32 %v2137, %v2139
        %v2141 = vrot.slane %v2113, %v2140
        %v2142 = vcombine.high %v2120, %v2120
        %v2143 = vcombine.high %v2127, %v2127
        %v2144 = vcombine.high %v2134, %v2134
        %v2145 = vcombine.high %v2141, %v2141
        %v2146 = vlaneseq
        %v2147 = vshrl.u32 %v2146, 7
        %v2148 = vsub.s32 0, %v2147
        %v2149 = vrot.slane %v2094, %v2148
        %2151 = vbcast.lane.b32.xlu0 %v2149, 256
        %v2152 = vpop.permute.xlu0 %2151
        %s2154 = sor.u32 256, 8
        %2155 = vbcast.lane.b32.xlu0 %v2149, %s2154
        %v2156 = vpop.permute.xlu0 %2155
        %s2158 = sor.u32 256, 16
        %2159 = vbcast.lane.b32.xlu0 %v2149, %s2158
        %v2160 = vpop.permute.xlu0 %2159
        %s2162 = sor.u32 256, 24
        %2163 = vbcast.lane.b32.xlu0 %v2149, %s2162
        %v2164 = vpop.permute.xlu0 %2163
        %v2165 = vlaneseq
        %v2166 = vshrl.u32 %v2165, 7
        %v2167 = vsub.s32 1, %v2166
        %v2168 = vrot.slane %v2094, %v2167
        %2170 = vbcast.lane.b32.xlu0 %v2168, 256
        %v2171 = vpop.permute.xlu0 %2170
        %s2173 = sor.u32 256, 8
        %2174 = vbcast.lane.b32.xlu0 %v2168, %s2173
        %v2175 = vpop.permute.xlu0 %2174
        %s2177 = sor.u32 256, 16
        %2178 = vbcast.lane.b32.xlu0 %v2168, %s2177
        %v2179 = vpop.permute.xlu0 %2178
        %s2181 = sor.u32 256, 24
        %2182 = vbcast.lane.b32.xlu0 %v2168, %s2181
        %v2183 = vpop.permute.xlu0 %2182
        %v2184 = vlaneseq
        %v2185 = vshrl.u32 %v2184, 7
        %v2186 = vsub.s32 2, %v2185
        %v2187 = vrot.slane %v2094, %v2186
        %2189 = vbcast.lane.b32.xlu0 %v2187, 256
        %v2190 = vpop.permute.xlu0 %2189
        %s2192 = sor.u32 256, 8
        %2193 = vbcast.lane.b32.xlu0 %v2187, %s2192
        %v2194 = vpop.permute.xlu0 %2193
        %s2196 = sor.u32 256, 16
        %2197 = vbcast.lane.b32.xlu0 %v2187, %s2196
        %v2198 = vpop.permute.xlu0 %2197
        %s2200 = sor.u32 256, 24
        %2201 = vbcast.lane.b32.xlu0 %v2187, %s2200
        %v2202 = vpop.permute.xlu0 %2201
        %v2203 = vlaneseq
        %v2204 = vshrl.u32 %v2203, 7
        %v2205 = vsub.s32 3, %v2204
        %v2206 = vrot.slane %v2094, %v2205
        %2208 = vbcast.lane.b32.xlu0 %v2206, 256
        %v2209 = vpop.permute.xlu0 %2208
        %s2211 = sor.u32 256, 8
        %2212 = vbcast.lane.b32.xlu0 %v2206, %s2211
        %v2213 = vpop.permute.xlu0 %2212
        %s2215 = sor.u32 256, 16
        %2216 = vbcast.lane.b32.xlu0 %v2206, %s2215
        %v2217 = vpop.permute.xlu0 %2216
        %s2219 = sor.u32 256, 24
        %2220 = vbcast.lane.b32.xlu0 %v2206, %s2219
        %v2221 = vpop.permute.xlu0 %2220
        %v2222 = vlaneseq
        %v2223 = vshrl.u32 %v2222, 7
        %v2224 = vsub.s32 4, %v2223
        %v2225 = vrot.slane %v2094, %v2224
        %2227 = vbcast.lane.b32.xlu0 %v2225, 256
        %v2228 = vpop.permute.xlu0 %2227
        %s2230 = sor.u32 256, 8
        %2231 = vbcast.lane.b32.xlu0 %v2225, %s2230
        %v2232 = vpop.permute.xlu0 %2231
        %s2234 = sor.u32 256, 16
        %2235 = vbcast.lane.b32.xlu0 %v2225, %s2234
        %v2236 = vpop.permute.xlu0 %2235
        %s2238 = sor.u32 256, 24
        %2239 = vbcast.lane.b32.xlu0 %v2225, %s2238
        %v2240 = vpop.permute.xlu0 %2239
        %v2241 = vlaneseq
        %v2242 = vshrl.u32 %v2241, 7
        %v2243 = vsub.s32 5, %v2242
        %v2244 = vrot.slane %v2094, %v2243
        %2246 = vbcast.lane.b32.xlu0 %v2244, 256
        %v2247 = vpop.permute.xlu0 %2246
        %s2249 = sor.u32 256, 8
        %2250 = vbcast.lane.b32.xlu0 %v2244, %s2249
        %v2251 = vpop.permute.xlu0 %2250
        %s2253 = sor.u32 256, 16
        %2254 = vbcast.lane.b32.xlu0 %v2244, %s2253
        %v2255 = vpop.permute.xlu0 %2254
        %s2257 = sor.u32 256, 24
        %2258 = vbcast.lane.b32.xlu0 %v2244, %s2257
        %v2259 = vpop.permute.xlu0 %2258
        %v2260 = vlaneseq
        %v2261 = vshrl.u32 %v2260, 7
        %v2262 = vsub.s32 6, %v2261
        %v2263 = vrot.slane %v2094, %v2262
        %2265 = vbcast.lane.b32.xlu0 %v2263, 256
        %v2266 = vpop.permute.xlu0 %2265
        %s2268 = sor.u32 256, 8
        %2269 = vbcast.lane.b32.xlu0 %v2263, %s2268
        %v2270 = vpop.permute.xlu0 %2269
        %s2272 = sor.u32 256, 16
        %2273 = vbcast.lane.b32.xlu0 %v2263, %s2272
        %v2274 = vpop.permute.xlu0 %2273
        %s2276 = sor.u32 256, 24
        %2277 = vbcast.lane.b32.xlu0 %v2263, %s2276
        %v2278 = vpop.permute.xlu0 %2277
        %v2279 = vlaneseq
        %v2280 = vshrl.u32 %v2279, 7
        %v2281 = vsub.s32 7, %v2280
        %v2282 = vrot.slane %v2094, %v2281
        %2284 = vbcast.lane.b32.xlu0 %v2282, 256
        %v2285 = vpop.permute.xlu0 %2284
        %s2287 = sor.u32 256, 8
        %2288 = vbcast.lane.b32.xlu0 %v2282, %s2287
        %v2289 = vpop.permute.xlu0 %2288
        %s2291 = sor.u32 256, 16
        %2292 = vbcast.lane.b32.xlu0 %v2282, %s2291
        %v2293 = vpop.permute.xlu0 %2292
        %s2295 = sor.u32 256, 24
        %2296 = vbcast.lane.b32.xlu0 %v2282, %s2295
        %v2297 = vpop.permute.xlu0 %2296
        %v2298 = vlaneseq
        %v2299 = vshrl.u32 %v2298, 7
        %v2300 = vsub.s32 0, %v2299
        %v2301 = vrot.slane %v2093, %v2300
        %2303 = vbcast.lane.b32.xlu0 %v2301, 256
        %v2304 = vpop.permute.xlu0 %2303
        %s2306 = sor.u32 256, 8
        %2307 = vbcast.lane.b32.xlu0 %v2301, %s2306
        %v2308 = vpop.permute.xlu0 %2307
        %s2310 = sor.u32 256, 16
        %2311 = vbcast.lane.b32.xlu0 %v2301, %s2310
        %v2312 = vpop.permute.xlu0 %2311
        %s2314 = sor.u32 256, 24
        %2315 = vbcast.lane.b32.xlu0 %v2301, %s2314
        %v2316 = vpop.permute.xlu0 %2315
        %v2317 = vlaneseq
        %v2318 = vshrl.u32 %v2317, 7
        %v2319 = vsub.s32 1, %v2318
        %v2320 = vrot.slane %v2093, %v2319
        %2322 = vbcast.lane.b32.xlu0 %v2320, 256
        %v2323 = vpop.permute.xlu0 %2322
        %s2325 = sor.u32 256, 8
        %2326 = vbcast.lane.b32.xlu0 %v2320, %s2325
        %v2327 = vpop.permute.xlu0 %2326
        %s2329 = sor.u32 256, 16
        %2330 = vbcast.lane.b32.xlu0 %v2320, %s2329
        %v2331 = vpop.permute.xlu0 %2330
        %s2333 = sor.u32 256, 24
        %2334 = vbcast.lane.b32.xlu0 %v2320, %s2333
        %v2335 = vpop.permute.xlu0 %2334
        %v2336 = vlaneseq
        %v2337 = vshrl.u32 %v2336, 7
        %v2338 = vsub.s32 2, %v2337
        %v2339 = vrot.slane %v2093, %v2338
        %2341 = vbcast.lane.b32.xlu0 %v2339, 256
        %v2342 = vpop.permute.xlu0 %2341
        %s2344 = sor.u32 256, 8
        %2345 = vbcast.lane.b32.xlu0 %v2339, %s2344
        %v2346 = vpop.permute.xlu0 %2345
        %s2348 = sor.u32 256, 16
        %2349 = vbcast.lane.b32.xlu0 %v2339, %s2348
        %v2350 = vpop.permute.xlu0 %2349
        %s2352 = sor.u32 256, 24
        %2353 = vbcast.lane.b32.xlu0 %v2339, %s2352
        %v2354 = vpop.permute.xlu0 %2353
        %v2355 = vlaneseq
        %v2356 = vshrl.u32 %v2355, 7
        %v2357 = vsub.s32 3, %v2356
        %v2358 = vrot.slane %v2093, %v2357
        %2360 = vbcast.lane.b32.xlu0 %v2358, 256
        %v2361 = vpop.permute.xlu0 %2360
        %s2363 = sor.u32 256, 8
        %2364 = vbcast.lane.b32.xlu0 %v2358, %s2363
        %v2365 = vpop.permute.xlu0 %2364
        %s2367 = sor.u32 256, 16
        %2368 = vbcast.lane.b32.xlu0 %v2358, %s2367
        %v2369 = vpop.permute.xlu0 %2368
        %s2371 = sor.u32 256, 24
        %2372 = vbcast.lane.b32.xlu0 %v2358, %s2371
        %v2373 = vpop.permute.xlu0 %2372
        %v2374 = vlaneseq
        %v2375 = vshrl.u32 %v2374, 7
        %v2376 = vsub.s32 4, %v2375
        %v2377 = vrot.slane %v2093, %v2376
        %2379 = vbcast.lane.b32.xlu0 %v2377, 256
        %v2380 = vpop.permute.xlu0 %2379
        %s2382 = sor.u32 256, 8
        %2383 = vbcast.lane.b32.xlu0 %v2377, %s2382
        %v2384 = vpop.permute.xlu0 %2383
        %s2386 = sor.u32 256, 16
        %2387 = vbcast.lane.b32.xlu0 %v2377, %s2386
        %v2388 = vpop.permute.xlu0 %2387
        %s2390 = sor.u32 256, 24
        %2391 = vbcast.lane.b32.xlu0 %v2377, %s2390
        %v2392 = vpop.permute.xlu0 %2391
        %v2393 = vlaneseq
        %v2394 = vshrl.u32 %v2393, 7
        %v2395 = vsub.s32 5, %v2394
        %v2396 = vrot.slane %v2093, %v2395
        %2398 = vbcast.lane.b32.xlu0 %v2396, 256
        %v2399 = vpop.permute.xlu0 %2398
        %s2401 = sor.u32 256, 8
        %2402 = vbcast.lane.b32.xlu0 %v2396, %s2401
        %v2403 = vpop.permute.xlu0 %2402
        %s2405 = sor.u32 256, 16
        %2406 = vbcast.lane.b32.xlu0 %v2396, %s2405
        %v2407 = vpop.permute.xlu0 %2406
        %s2409 = sor.u32 256, 24
        %2410 = vbcast.lane.b32.xlu0 %v2396, %s2409
        %v2411 = vpop.permute.xlu0 %2410
        %v2412 = vlaneseq
        %v2413 = vshrl.u32 %v2412, 7
        %v2414 = vsub.s32 6, %v2413
        %v2415 = vrot.slane %v2093, %v2414
        %2417 = vbcast.lane.b32.xlu0 %v2415, 256
        %v2418 = vpop.permute.xlu0 %2417
        %s2420 = sor.u32 256, 8
        %2421 = vbcast.lane.b32.xlu0 %v2415, %s2420
        %v2422 = vpop.permute.xlu0 %2421
        %s2424 = sor.u32 256, 16
        %2425 = vbcast.lane.b32.xlu0 %v2415, %s2424
        %v2426 = vpop.permute.xlu0 %2425
        %s2428 = sor.u32 256, 24
        %2429 = vbcast.lane.b32.xlu0 %v2415, %s2428
        %v2430 = vpop.permute.xlu0 %2429
        %v2431 = vlaneseq
        %v2432 = vshrl.u32 %v2431, 7
        %v2433 = vsub.s32 7, %v2432
        %v2434 = vrot.slane %v2093, %v2433
        %2436 = vbcast.lane.b32.xlu0 %v2434, 256
        %v2437 = vpop.permute.xlu0 %2436
        %s2439 = sor.u32 256, 8
        %2440 = vbcast.lane.b32.xlu0 %v2434, %s2439
        %v2441 = vpop.permute.xlu0 %2440
        %s2443 = sor.u32 256, 16
        %2444 = vbcast.lane.b32.xlu0 %v2434, %s2443
        %v2445 = vpop.permute.xlu0 %2444
        %s2447 = sor.u32 256, 24
        %2448 = vbcast.lane.b32.xlu0 %v2434, %s2447
        %v2449 = vpop.permute.xlu0 %2448
        %v2450 = vmul.f32 %v670, %v2304
        %v2451 = vmul.f32 %v671, %v2308
        %v2452 = vmul.f32 %v672, %v2312
        %v2453 = vmul.f32 %v673, %v2316
        %v2454 = vmul.f32 %v674, %v2323
        %v2455 = vmul.f32 %v675, %v2327
        %v2456 = vmul.f32 %v676, %v2331
        %v2457 = vmul.f32 %v677, %v2335
        %v2458 = vmul.f32 %v678, %v2342
        %v2459 = vmul.f32 %v679, %v2346
        %v2460 = vmul.f32 %v680, %v2350
        %v2461 = vmul.f32 %v681, %v2354
        %v2462 = vmul.f32 %v682, %v2361
        %v2463 = vmul.f32 %v683, %v2365
        %v2464 = vmul.f32 %v684, %v2369
        %v2465 = vmul.f32 %v685, %v2373
        %v2466 = vmul.f32 %v686, %v2380
        %v2467 = vmul.f32 %v687, %v2384
        %v2468 = vmul.f32 %v688, %v2388
        %v2469 = vmul.f32 %v689, %v2392
        %v2470 = vmul.f32 %v690, %v2399
        %v2471 = vmul.f32 %v691, %v2403
        %v2472 = vmul.f32 %v692, %v2407
        %v2473 = vmul.f32 %v693, %v2411
        %v2474 = vmul.f32 %v694, %v2418
        %v2475 = vmul.f32 %v695, %v2422
        %v2476 = vmul.f32 %v696, %v2426
        %v2477 = vmul.f32 %v697, %v2430
        %v2478 = vmul.f32 %v698, %v2437
        %v2479 = vmul.f32 %v699, %v2441
        %v2480 = vmul.f32 %v700, %v2445
        %v2481 = vmul.f32 %v701, %v2449
        %v2482 = vsub.f32 %v2152, %v2450
        %v2483 = vsub.f32 %v2156, %v2451
        %v2484 = vsub.f32 %v2160, %v2452
        %v2485 = vsub.f32 %v2164, %v2453
        %v2486 = vsub.f32 %v2171, %v2454
        %v2487 = vsub.f32 %v2175, %v2455
        %v2488 = vsub.f32 %v2179, %v2456
        %v2489 = vsub.f32 %v2183, %v2457
        %v2490 = vsub.f32 %v2190, %v2458
        %v2491 = vsub.f32 %v2194, %v2459
        %v2492 = vsub.f32 %v2198, %v2460
        %v2493 = vsub.f32 %v2202, %v2461
        %v2494 = vsub.f32 %v2209, %v2462
        %v2495 = vsub.f32 %v2213, %v2463
        %v2496 = vsub.f32 %v2217, %v2464
        %v2497 = vsub.f32 %v2221, %v2465
        %v2498 = vsub.f32 %v2228, %v2466
        %v2499 = vsub.f32 %v2232, %v2467
        %v2500 = vsub.f32 %v2236, %v2468
        %v2501 = vsub.f32 %v2240, %v2469
        %v2502 = vsub.f32 %v2247, %v2470
        %v2503 = vsub.f32 %v2251, %v2471
        %v2504 = vsub.f32 %v2255, %v2472
        %v2505 = vsub.f32 %v2259, %v2473
        %v2506 = vsub.f32 %v2266, %v2474
        %v2507 = vsub.f32 %v2270, %v2475
        %v2508 = vsub.f32 %v2274, %v2476
        %v2509 = vsub.f32 %v2278, %v2477
        %v2510 = vsub.f32 %v2285, %v2478
        %v2511 = vsub.f32 %v2289, %v2479
        %v2512 = vsub.f32 %v2293, %v2480
        %v2513 = vsub.f32 %v2297, %v2481
        %v2514 = vlaneseq
        %v2515 = vshrl.u32 %v2514, 7
        %v2516 = vsub.s32 0, %v2515
        %v2517 = vrot.slane %v2120, %v2516
        %v2518 = vlaneseq
        %v2519 = vshrl.u32 %v2518, 7
        %v2520 = vsub.s32 0, %v2519
        %v2521 = vrot.slane %v2134, %v2520
        %v2522 = vlaneseq
        %v2523 = vshrl.u32 %v2522, 7
        %v2524 = vsub.s32 0, %v2523
        %v2525 = vrot.slane %v2142, %v2524
        %v2526 = vlaneseq
        %v2527 = vshrl.u32 %v2526, 7
        %v2528 = vsub.s32 0, %v2527
        %v2529 = vrot.slane %v2144, %v2528
        %v2530 = vlaneseq
        %v2531 = vshrl.u32 %v2530, 7
        %v2532 = vsub.s32 0, %v2531
        %v2533 = vrot.slane %v2127, %v2532
        %v2534 = vlaneseq
        %v2535 = vshrl.u32 %v2534, 7
        %v2536 = vsub.s32 0, %v2535
        %v2537 = vrot.slane %v2141, %v2536
        %v2538 = vlaneseq
        %v2539 = vshrl.u32 %v2538, 7
        %v2540 = vsub.s32 0, %v2539
        %v2541 = vrot.slane %v2143, %v2540
        %v2542 = vlaneseq
        %v2543 = vshrl.u32 %v2542, 7
        %v2544 = vsub.s32 0, %v2543
        %v2545 = vrot.slane %v2145, %v2544
        %v2554 = vmul.f32 %v2517, %v2482
        %v2555 = vmul.f32 %v2517, %v2483
        %v2556 = vmul.f32 %v2517, %v2484
        %v2557 = vmul.f32 %v2517, %v2485
        %v2558 = vmul.f32 %v2521, %v2486
        %v2559 = vmul.f32 %v2521, %v2487
        %v2560 = vmul.f32 %v2521, %v2488
        %v2561 = vmul.f32 %v2521, %v2489
        %v2562 = vmul.f32 %v2525, %v2490
        %v2563 = vmul.f32 %v2525, %v2491
        %v2564 = vmul.f32 %v2525, %v2492
        %v2565 = vmul.f32 %v2525, %v2493
        %v2566 = vmul.f32 %v2529, %v2494
        %v2567 = vmul.f32 %v2529, %v2495
        %v2568 = vmul.f32 %v2529, %v2496
        %v2569 = vmul.f32 %v2529, %v2497
        %v2570 = vmul.f32 %v2533, %v2498
        %v2571 = vmul.f32 %v2533, %v2499
        %v2572 = vmul.f32 %v2533, %v2500
        %v2573 = vmul.f32 %v2533, %v2501
        %v2574 = vmul.f32 %v2537, %v2502
        %v2575 = vmul.f32 %v2537, %v2503
        %v2576 = vmul.f32 %v2537, %v2504
        %v2577 = vmul.f32 %v2537, %v2505
        %v2578 = vmul.f32 %v2541, %v2506
        %v2579 = vmul.f32 %v2541, %v2507
        %v2580 = vmul.f32 %v2541, %v2508
        %v2581 = vmul.f32 %v2541, %v2509
        %v2582 = vmul.f32 %v2545, %v2510
        %v2583 = vmul.f32 %v2545, %v2511
        %v2584 = vmul.f32 %v2545, %v2512
        %v2585 = vmul.f32 %v2545, %v2513
        %v2586 = vadd.f32 %v670, %v2554
        %v2587 = vadd.f32 %v671, %v2555
        %v2588 = vadd.f32 %v672, %v2556
        %v2589 = vadd.f32 %v673, %v2557
        %v2590 = vadd.f32 %v674, %v2558
        %v2591 = vadd.f32 %v675, %v2559
        %v2592 = vadd.f32 %v676, %v2560
        %v2593 = vadd.f32 %v677, %v2561
        %v2594 = vadd.f32 %v678, %v2562
        %v2595 = vadd.f32 %v679, %v2563
        %v2596 = vadd.f32 %v680, %v2564
        %v2597 = vadd.f32 %v681, %v2565
        %v2598 = vadd.f32 %v682, %v2566
        %v2599 = vadd.f32 %v683, %v2567
        %v2600 = vadd.f32 %v684, %v2568
        %v2601 = vadd.f32 %v685, %v2569
        %v2602 = vadd.f32 %v686, %v2570
        %v2603 = vadd.f32 %v687, %v2571
        %v2604 = vadd.f32 %v688, %v2572
        %v2605 = vadd.f32 %v689, %v2573
        %v2606 = vadd.f32 %v690, %v2574
        %v2607 = vadd.f32 %v691, %v2575
        %v2608 = vadd.f32 %v692, %v2576
        %v2609 = vadd.f32 %v693, %v2577
        %v2610 = vadd.f32 %v694, %v2578
        %v2611 = vadd.f32 %v695, %v2579
        %v2612 = vadd.f32 %v696, %v2580
        %v2613 = vadd.f32 %v697, %v2581
        %v2614 = vadd.f32 %v698, %v2582
        %v2615 = vadd.f32 %v699, %v2583
        %v2616 = vadd.f32 %v700, %v2584
        %v2617 = vadd.f32 %v701, %v2585
        %2618 = vst [vmem:[#allocation22] sm:$0xff] %v2586
        %2619 = vst [vmem:[#allocation22 + $0x8] sm:$0xff] %v2587
        %2620 = vst [vmem:[#allocation22 + $0x10] sm:$0xff] %v2588
        %2621 = vst [vmem:[#allocation22 + $0x18] sm:$0xff] %v2589
        %2622 = vst [vmem:[#allocation22 + $0x20] sm:$0xff] %v2590
        %2623 = vst [vmem:[#allocation22 + $0x28] sm:$0xff] %v2591
        %2624 = vst [vmem:[#allocation22 + $0x30] sm:$0xff] %v2592
        %2625 = vst [vmem:[#allocation22 + $0x38] sm:$0xff] %v2593
        %2626 = vst [vmem:[#allocation22 + $0x40] sm:$0xff] %v2594
        %2627 = vst [vmem:[#allocation22 + $0x48] sm:$0xff] %v2595
        %2628 = vst [vmem:[#allocation22 + $0x50] sm:$0xff] %v2596
        %2629 = vst [vmem:[#allocation22 + $0x58] sm:$0xff] %v2597
        %2630 = vst [vmem:[#allocation22 + $0x60] sm:$0xff] %v2598
        %2631 = vst [vmem:[#allocation22 + $0x68] sm:$0xff] %v2599
        %2632 = vst [vmem:[#allocation22 + $0x70] sm:$0xff] %v2600
        %2633 = vst [vmem:[#allocation22 + $0x78] sm:$0xff] %v2601
        %2634 = vst [vmem:[#allocation22 + $0x80] sm:$0xff] %v2602
        %2635 = vst [vmem:[#allocation22 + $0x88] sm:$0xff] %v2603
        %2636 = vst [vmem:[#allocation22 + $0x90] sm:$0xff] %v2604
        %2637 = vst [vmem:[#allocation22 + $0x98] sm:$0xff] %v2605
        %2638 = vst [vmem:[#allocation22 + $0xa0] sm:$0xff] %v2606
        %2639 = vst [vmem:[#allocation22 + $0xa8] sm:$0xff] %v2607
        %2640 = vst [vmem:[#allocation22 + $0xb0] sm:$0xff] %v2608
        %2641 = vst [vmem:[#allocation22 + $0xb8] sm:$0xff] %v2609
        %2642 = vst [vmem:[#allocation22 + $0xc0] sm:$0xff] %v2610
        %2643 = vst [vmem:[#allocation22 + $0xc8] sm:$0xff] %v2611
        %2644 = vst [vmem:[#allocation22 + $0xd0] sm:$0xff] %v2612
        %2645 = vst [vmem:[#allocation22 + $0xd8] sm:$0xff] %v2613
        %2646 = vst [vmem:[#allocation22 + $0xe0] sm:$0xff] %v2614
        %2647 = vst [vmem:[#allocation22 + $0xe8] sm:$0xff] %v2615
        %2648 = vst [vmem:[#allocation22 + $0xf0] sm:$0xff] %v2616
        %2649 = vst [vmem:[#allocation22 + $0xf8] sm:$0xff] %v2617
        %2650 = vst [vmem:[%s614] sm:$0xff] %v2095
        %2651 = vst [vmem:[#allocation17] sm:$0xff] %v1850
        %2652 = vst [vmem:[#allocation19] sm:$0xff] %v1848
        %2653 = vst [vmem:[#allocation20] sm:$0xff] %v2087
        %s2654 = sand.u32 %s287, 1
        %s2655 = scalar_lea.sflag [#allocation4], %s2654
        %s2656 = sand.u32 %s287, 1
        %s2657 = smul.addr %s2656, 8
        %s2658 = scalar_lea.vmem [#allocation16], %s2657
        // Predicated region
        $region97: #{tpu_custom_call.1} parent=59 // pred_check
          %p2659 = pneg %p297
        $region98: #{tpu_custom_call.1} parent=59 // pred_check_branch
          %2661 = sbr.rel (%p2659) target = $region100
        $region99: #{tpu_custom_call.1} parent=59 // pred_region
          %s2663 = ssub.s32 128, 128
          %2664 = vsyncadd %s2655, %s2663
          %s2665 = sadd.s32 %s42, %s43
          %s2666 = smul.addr %s2665, 128
          %s2667 = scalar_lea.hbm %s10, %s2666
          %s2669 = sshll.u32 %s2658, 4
          %s2670 = int_to_ptr.vmem [resolvable:$true] %s2669
          %2672 = dma.vmem_to_hbm [thread:$0]  %s2670, 128, %s2667, %s2655
        $region100: #{tpu_custom_call.1} parent=59 // pred_fallthru
          _
        // Predicated region
        $region101: #{tpu_custom_call.1} parent=59 // pred_check
          %p2673 = pneg %p323
        $region102: #{tpu_custom_call.1} parent=59 // pred_check_branch
          %2675 = sbr.rel (%p2673) target = $region104
        $region103: #{tpu_custom_call.1} parent=59 // pred_region
          %s2677 = ssub.s32 128, 128
          %2678 = vsyncadd [#allocation18], %s2677
          %s2679 = smul.addr %s42, 128
          %s2680 = scalar_lea.hbm %s11, %s2679
          %s2682 = sshll.u32 [#allocation17], 4
          %s2683 = int_to_ptr.vmem [resolvable:$true] %s2682
          %2685 = dma.vmem_to_hbm [thread:$0]  %s2683, 128, %s2680, [#allocation18]
        $region104: #{tpu_custom_call.1} parent=59 // pred_fallthru
          _
        // Predicated region
        $region105: #{tpu_custom_call.1} parent=59 // pred_check
          %p2686 = pneg %p349
        $region106: #{tpu_custom_call.1} parent=59 // pred_check_branch
          %2688 = sbr.rel (%p2686) target = $region108
        $region107: #{tpu_custom_call.1} parent=59 // pred_region
          %s2690 = ssub.s32 128, 128
          %2691 = vsyncadd [#allocation18], %s2690
          %s2692 = smul.addr %s42, 128
          %s2693 = scalar_lea.hbm %s12, %s2692
          %s2695 = sshll.u32 [#allocation19], 4
          %s2696 = int_to_ptr.vmem [resolvable:$true] %s2695
          %2698 = dma.vmem_to_hbm [thread:$0]  %s2696, 128, %s2693, [#allocation18]
        $region108: #{tpu_custom_call.1} parent=59 // pred_fallthru
          _
        // Predicated region
        $region109: #{tpu_custom_call.1} parent=59 // pred_check
          %p2699 = pneg %p375
        $region110: #{tpu_custom_call.1} parent=59 // pred_check_branch
          %2701 = sbr.rel (%p2699) target = $region112
        $region111: #{tpu_custom_call.1} parent=59 // pred_region
          %s2703 = ssub.s32 128, 128
          %2704 = vsyncadd [#allocation21], %s2703
          %s2705 = smul.addr %s42, 128
          %s2706 = scalar_lea.hbm %s13, %s2705
          %s2708 = sshll.u32 [#allocation20], 4
          %s2709 = int_to_ptr.vmem [resolvable:$true] %s2708
          %2711 = dma.vmem_to_hbm [thread:$0]  %s2709, 128, %s2706, [#allocation21]
        $region112: #{tpu_custom_call.1} parent=59 // pred_fallthru
          _
        // Predicated region
        $region113: #{tpu_custom_call.1} parent=59 // pred_check
          %p2712 = pneg %p401
        $region114: #{tpu_custom_call.1} parent=59 // pred_check_branch
          %2714 = sbr.rel (%p2712) target = $region116
        $region115: #{tpu_custom_call.1} parent=59 // pred_region
          %s2715 = smul.u32 8, %s42
          %s2717 = ssub.s32 4096, 4096
          %2718 = vsyncadd [#allocation21], %s2717
          %s2719 = smul.addr %s2715, 4
          %s2720 = smul.addr %s2719, 128
          %s2721 = scalar_lea.hbm %s14, %s2720
          %s2722 = sshll.u32 [#allocation22], 4
          %s2723 = int_to_ptr.vmem [resolvable:$true] %s2722
          %2728 = dma.vmem_to_hbm [thread:$0]  %s2723, 4096, %s2721, [#allocation21], 128, 128, 8
        $region116: #{tpu_custom_call.1} parent=59 // pred_fallthru
          _
        // Predicated region
        $region117: #{tpu_custom_call.1} parent=59 // pred_check
          %p2729 = pneg %p323
        $region118: #{tpu_custom_call.1} parent=59 // pred_check_branch
          %2731 = sbr.rel (%p2729) target = $region120
        $region119: #{tpu_custom_call.1} parent=59 // pred_region
          %2732 = dma.done [#allocation18], 128
        $region120: #{tpu_custom_call.1} parent=59 // pred_fallthru
          _
        // Predicated region
        $region121: #{tpu_custom_call.1} parent=59 // pred_check
          %p2733 = pneg %p349
        $region122: #{tpu_custom_call.1} parent=59 // pred_check_branch
          %2735 = sbr.rel (%p2733) target = $region124
        $region123: #{tpu_custom_call.1} parent=59 // pred_region
          %2736 = dma.done [#allocation18], 128
        $region124: #{tpu_custom_call.1} parent=59 // pred_fallthru
          _
        // Predicated region
        $region125: #{tpu_custom_call.1} parent=59 // pred_check
          %p2737 = pneg %p375
        $region126: #{tpu_custom_call.1} parent=59 // pred_check_branch
          %2739 = sbr.rel (%p2737) target = $region128
        $region127: #{tpu_custom_call.1} parent=59 // pred_region
          %2740 = dma.done [#allocation21], 128
        $region128: #{tpu_custom_call.1} parent=59 // pred_fallthru
          _
        // Predicated region
        $region129: #{tpu_custom_call.1} parent=59 // pred_check
          %p2741 = pneg %p401
        $region130: #{tpu_custom_call.1} parent=59 // pred_check_branch
          %2743 = sbr.rel (%p2741) target = $region132
        $region131: #{tpu_custom_call.1} parent=59 // pred_region
          %2744 = dma.done [#allocation21], 4096
        $region132: #{tpu_custom_call.1} parent=59 // pred_fallthru
          _
      $region60: #{tpu_custom_call.1} parent=5 // pred_fallthru
        _
      %p2745 = scmp.le.s32.totalorder 2, %s33
      // Predicated region
      $region133: #{tpu_custom_call.1} parent=5 // pred_check
        %p2746 = pneg %p2745
      $region134: #{tpu_custom_call.1} parent=5 // pred_check_branch
        %2748 = sbr.rel (%p2746) target = $region136
      $region135: #{tpu_custom_call.1} parent=5 // pred_region
        %s2749 = ssub.s32 %s33, 2
        // Predicated region
        $region137: #{tpu_custom_call.1} parent=135 // pred_check
          %p2750 = pneg %p303
        $region138: #{tpu_custom_call.1} parent=135 // pred_check_branch
          %2752 = sbr.rel (%p2750) target = $region140
        $region139: #{tpu_custom_call.1} parent=135 // pred_region
          %s2753 = sand.u32 %s288, 1
          %s2754 = scalar_lea.sflag [#allocation4], %s2753
          %s2755 = sand.u32 %s288, 1
          %s2756 = smul.addr %s2755, 8
          %s2757 = scalar_lea.vmem [#allocation16], %s2756
          %2758 = dma.done %s2754, 128
        $region140: #{tpu_custom_call.1} parent=135 // pred_fallthru
          _
      $region136: #{tpu_custom_call.1} parent=5 // pred_fallthru
        _
    $region6: #{tpu_custom_call.1} parent=1 // loop_footer
      %s37 = sadd.s32 1, %s33
    $region7: #{tpu_custom_call.1} parent=1 // loop_footer_branch
      %32 = sbr.rel target = $region3
    $region8: #{tpu_custom_call.1} parent=1 // loop_exit
      _
    %2759 = vsyncpa [#allocation3], 1
    %s2760 = scalar_lea.sflag [#allocation3], 1
    %2761 = vsyncpa %s2760, 1
    %2762 = vsyncpa [#allocation6], 1
    %2763 = vsyncpa [#allocation9], 1
    %2764 = vsyncpa [#allocation12], 1
    %2765 = vsyncpa [#allocation15], 1
    %2766 = vsyncpa [#allocation4], 1
    %s2767 = scalar_lea.sflag [#allocation4], 1
    %2768 = vsyncpa %s2767, 1
    %2769 = vsyncpa [#allocation18], 1
    %2770 = vsyncpa [#allocation21], 1

</llo_original>
